<compile_context>
chip_gen: v6e
topology: v6e:2x2x1
jax: 0.10.0
libtpu: 0.0.40
codegen_flags: <defaults>
</compile_context>

<pallas_src>
import jax
import jax.numpy as jnp
from jax import lax
from jax.experimental import pallas as pl
from jax.experimental.pallas import tpu as pltpu

# --------------------- small synthetic model dims ---------------------
B     = 8      # batch
T_SRC = 12     # source length
T_TGT = 8      # target length
E_ENC = 32     # src embedding dim
E_DEC = 32     # tgt embedding dim
H_ENC = 32     # encoder hidden (encoder.get_output_dim())
H_DEC = 32     # decoder hidden (decoder.get_output_dim())
P_HID = H_ENC  # pmi_hid_dim (so concat input dim == 2*H_ENC, as in module)
V     = 128    # tgt vocab == generator.get_output_dim()
SRC_V = 64     # src vocab
SRC_V_PAD = 128  # src gate table zero-padded to 128 rows -> lane-dense gather

_VMEM = pl.BlockSpec(memory_space=pltpu.MemorySpace.VMEM)


def _lstm_step(xp, h, c, whh_bf16):
    """One fused LSTM step.  Gate lane layout: [i | f | o | g], each H wide.

    xp already holds  x @ W_ih + b  with the sigmoid-as-tanh 0.5 pre-scale
    folded into the i/f/o columns (done once at prepare_params time), so the
    whole (B, 4H) gate slab needs exactly ONE EUP tanh:
        sigmoid(z) = 0.5 * tanh(z / 2) + 0.5
    The recurrent matmul runs with bf16 operands on the MXU (f32 accumulate).
    """
    gates = xp + jnp.dot(h.astype(jnp.bfloat16), whh_bf16,
                         preferred_element_type=jnp.float32)       # (B, 4H)
    H = gates.shape[-1] // 4
    th = jnp.tanh(gates)                        # single full-vreg EUP pass
    sig = 0.5 * th[:, :3 * H] + 0.5             # == sigmoid of unscaled i/f/o
    i = sig[:, 0:H]
    f = sig[:, H:2 * H]
    o = sig[:, 2 * H:3 * H]
    g = th[:, 3 * H:]
    c_new = f * c + i * g
    h_new = o * jnp.tanh(c_new)
    return h_new, c_new


# ============================ fused seq2seq kernel ============================
def seq2seq_kernel(src_ids_ref, tgt_ids_ref, pmi_ref,
                   src_tab_ref, tgt_tab_ref,
                   enc_whh_ref, dec_whh_ref,
                   w_vf_ref, b_vf_ref,
                   w_c1h_ref, w_c1p_ref, b_c1_ref,
                   w_c2h_ref, w_c2p_ref, b_c2_ref,
                   w_lam_ref, b_lam_ref,
                   w_gen_ref, b_gen_ref,
                   logits_ref):
    f32 = jnp.float32

    # ---- prologue: embedding + input-projection gather for ALL timesteps ----
    # src_tab / tgt_tab are the precomputed (Vocab, 4H) tables  emb @ W_ih + b
    # (weight-only, built once at prepare_params time).  The per-token gather
    # is one lane-dense one-hot matmul per sequence (exact: rows are 0/1).
    # Out-of-range token ids map to a zero row (torch embedding would fault).
    src_ids = src_ids_ref[...]                                  # (T_src*B, 1)
    tgt_ids = tgt_ids_ref[...]                                  # ((T_tgt-1)*B, 1)
    oh_src = (src_ids == lax.broadcasted_iota(
        jnp.int32, (src_ids.shape[0], SRC_V_PAD), 1)).astype(f32)
    oh_tgt = (tgt_ids == lax.broadcasted_iota(
        jnp.int32, (tgt_ids.shape[0], V), 1)).astype(f32)
    xs_enc = jnp.dot(oh_src, src_tab_ref[...], preferred_element_type=f32)
    xs_dec = jnp.dot(oh_tgt, tgt_tab_ref[...], preferred_element_type=f32)

    # ---- pmi branch (vf_mlp) + pmi-dependent halves of the decoder init,
    #      hoisted BEFORE the encoder recurrence so these MXU pushes can fill
    #      the bubbles of the latency-bound serial loop. ----
    pmi = pmi_ref[...]                                          # pmi_origin (B, V)
    pmi_h = jnp.maximum(
        jnp.dot(pmi, w_vf_ref[...], preferred_element_type=f32) + b_vf_ref[...],
        0.0)
    hd_p = jnp.dot(pmi_h, w_c1p_ref[...], preferred_element_type=f32) + b_c1_ref[...]
    cd_p = jnp.dot(pmi_h, w_c2p_ref[...], preferred_element_type=f32) + b_c2_ref[...]

    # ---- encoder recurrence: only h @ W_hh inside the loop ----
    # TODO(synk): hold W_hh resident in MXU staging registers
    # (pltpu.matmul_push_rhs / matmul_acc_lhs, MRB accumulate on v7x, generator
    # pinned to the second MXU) once that explicit-MXU path is validated; the
    # jnp.dot path re-pushes the 32x128 RHS every step.
    enc_whh = enc_whh_ref[...]                                  # bf16 (H, 4H)
    h = jnp.zeros((B, H_ENC), f32)
    c = jnp.zeros((B, H_ENC), f32)
    for t in range(T_SRC):               # static slices, single basic block
        h, c = _lstm_step(xs_enc[t * B:(t + 1) * B, :], h, c, enc_whh)

    # concat([state, pmi_h], -1) @ W  ==  state @ W[:H] + pmi_h @ W[H:]
    h_d = jnp.dot(h, w_c1h_ref[...], preferred_element_type=f32) + hd_p
    c_d = jnp.dot(c, w_c2h_ref[...], preferred_element_type=f32) + cd_p

    # ---- decoder recurrence + lamda gate + generator ----
    dec_whh = dec_whh_ref[...]                                  # bf16 (H, 4H)
    w_gen = w_gen_ref[...]                                      # bf16 (H, V)
    # hoist loop-invariant broadcasts out of the step body
    bgen = jnp.broadcast_to(b_gen_ref[...], (B, V))
    w_lam = jnp.broadcast_to(w_lam_ref[...], (B, H_DEC))
    blam = jnp.broadcast_to(b_lam_ref[...], (B, 1))

    logits_ref[0] = jnp.zeros((B, V), f32)
    h, c = h_d, c_d
    for t in range(1, T_TGT):
        h, c = _lstm_step(xs_dec[(t - 1) * B:t * B, :], h, c, dec_whh)  # tgt[t-1]
        # lamda = Sigmoid(Linear(H_dec, 1)) — cross-lane reduce stays on the XLU
        lam = jax.nn.sigmoid(jnp.sum(h * w_lam, axis=-1, keepdims=True) + blam)
        # generator = Linear(H_dec, V), lane-dense (B,H)@(H,128) bf16 MXU push
        pred = jnp.dot(h.astype(jnp.bfloat16), w_gen,
                       preferred_element_type=f32) + bgen
        logits_ref[t] = (1.0 - lam) * pred + lam * pmi


def run_seq2seq(src, tgt, pmi, prep):
    src_ids = src.reshape(T_SRC * B, 1)
    tgt_ids = tgt[:-1].reshape((T_TGT - 1) * B, 1)   # only tgt[t-1] is consumed
    args = (src_ids, tgt_ids, pmi,
            prep["src_tab"], prep["tgt_tab"],
            prep["enc_whh"], prep["dec_whh"],
            prep["w_vf"], prep["b_vf"],
            prep["w_c1h"], prep["w_c1p"], prep["b_c1"],
            prep["w_c2h"], prep["w_c2p"], prep["b_c2"],
            prep["w_lam"], prep["b_lam"],
            prep["w_gen"], prep["b_gen"])
    # TODO(synk): for production batches > 8, add a leading grid axis over
    # 8-row batch tiles with dimension_semantics=("parallel",) so the work
    # shards across v7x's two TensorCores; with B=8 the kernel stays gridless.
    return pl.pallas_call(
        seq2seq_kernel,
        out_shape=jax.ShapeDtypeStruct((T_TGT, B, V), jnp.float32),
        in_specs=[_VMEM] * len(args),
        out_specs=_VMEM,
    )(*args)


# ============================ parameters ============================
def init_params(key):
    ks = jax.random.split(key, 20)

    def n(k, shape, scale=0.1):
        return scale * jax.random.normal(k, shape, dtype=jnp.float32)

    return dict(
        emb_src=n(ks[0], (SRC_V, E_ENC)),
        emb_tgt=n(ks[1], (V, E_DEC)),
        enc_wih=n(ks[2], (E_ENC, 4 * H_ENC)),   # gates fused along lanes [i|f|o|g]
        enc_whh=n(ks[3], (H_ENC, 4 * H_ENC)),
        enc_b=n(ks[4], (1, 4 * H_ENC)),
        w_vf=n(ks[5], (V, P_HID)),              # vf_mlp Linear
        b_vf=n(ks[6], (1, P_HID)),
        w_c1h=n(ks[7], (H_ENC, H_DEC)),         # concat1, split into two blocks
        w_c1p=n(ks[8], (P_HID, H_DEC)),
        b_c1=n(ks[9], (1, H_DEC)),
        w_c2h=n(ks[10], (H_ENC, H_DEC)),        # concat2
        w_c2p=n(ks[11], (P_HID, H_DEC)),
        b_c2=n(ks[12], (1, H_DEC)),
        dec_wih=n(ks[13], (E_DEC, 4 * H_DEC)),
        dec_whh=n(ks[14], (H_DEC, 4 * H_DEC)),
        dec_b=n(ks[15], (1, 4 * H_DEC)),
        w_lam=n(ks[16], (1, H_DEC)),            # lamda Linear(H_dec, 1)
        b_lam=n(ks[17], (1, 1)),
        w_gen=n(ks[18], (H_DEC, V)),            # generator Linear(H_dec, V)
        b_gen=n(ks[19], (1, V)),
    )


def prepare_params(p):
    """One-time, weight-only preprocessing (outside the kernel, amortized).

    * folds the 0.5 pre-scale of the sigmoid-as-tanh trick into the i/f/o
      columns of W_ih / W_hh / b (exact: *0.5 only shifts exponents),
    * folds embedding lookup + input projection into per-vocab gate tables
      emb @ W_ih + b  (src table zero-padded to 128 rows, lane-dense gather),
    * pre-casts the matmul weights used inside the recurrences to bf16.
    """
    f32 = jnp.float32

    def fold_gates(w):
        h3 = 3 * (w.shape[-1] // 4)
        return jnp.concatenate([0.5 * w[..., :h3], w[..., h3:]], axis=-1)

    enc_wih = fold_gates(p["enc_wih"])
    enc_whh = fold_gates(p["enc_whh"])
    enc_b = fold_gates(p["enc_b"])
    dec_wih = fold_gates(p["dec_wih"])
    dec_whh = fold_gates(p["dec_whh"])
    dec_b = fold_gates(p["dec_b"])

    emb_src_pad = jnp.concatenate(
        [p["emb_src"], jnp.zeros((SRC_V_PAD - SRC_V, E_ENC), f32)], axis=0)
    src_tab = jnp.dot(emb_src_pad, enc_wih) + enc_b      # (128, 4H_enc)
    tgt_tab = jnp.dot(p["emb_tgt"], dec_wih) + dec_b     # (V,   4H_dec)

    return dict(
        src_tab=src_tab, tgt_tab=tgt_tab,
        enc_whh=enc_whh.astype(jnp.bfloat16),
        dec_whh=dec_whh.astype(jnp.bfloat16),
        w_vf=p["w_vf"], b_vf=p["b_vf"],
        w_c1h=p["w_c1h"], w_c1p=p["w_c1p"], b_c1=p["b_c1"],
        w_c2h=p["w_c2h"], w_c2p=p["w_c2p"], b_c2=p["b_c2"],
        w_lam=p["w_lam"], b_lam=p["b_lam"],
        w_gen=p["w_gen"].astype(jnp.bfloat16), b_gen=p["b_gen"],
    )


# ============================ full forward ============================
@jax.jit
def forward(prep, src, tgt, pmi):
    # TODO(synk): encoder_output is forwarded to the decoder in the torch module;
    # this concrete decoder (plain LSTM, no attention) does not consume it, so it
    # is not materialized at all.
    return run_seq2seq(src, tgt, pmi, prep)


# ============================ pure-JAX reference ============================
def reference_forward(params, src, tgt, pmi):
    src_emb = jnp.take(params["emb_src"], src, axis=0)
    tgt_emb = jnp.take(params["emb_tgt"], tgt, axis=0)

    def cell(x, h, c, wih, whh, b):
        H = whh.shape[0]
        gates = x @ wih + h @ whh + b           # fused layout [i|f|o|g]
        i = jax.nn.sigmoid(gates[:, 0:H])
        f = jax.nn.sigmoid(gates[:, H:2 * H])
        o = jax.nn.sigmoid(gates[:, 2 * H:3 * H])
        g = jnp.tanh(gates[:, 3 * H:4 * H])
        c = f * c + i * g
        return o * jnp.tanh(c), c

    h = jnp.zeros((B, H_ENC), jnp.float32)
    c = jnp.zeros((B, H_ENC), jnp.float32)
    for t in range(T_SRC):
        h, c = cell(src_emb[t], h, c,
                    params["enc_wih"], params["enc_whh"], params["enc_b"])

    pmi_h = jax.nn.relu(pmi @ params["w_vf"] + params["b_vf"])
    hd = h @ params["w_c1h"] + pmi_h @ params["w_c1p"] + params["b_c1"]
    cd = c @ params["w_c2h"] + pmi_h @ params["w_c2p"] + params["b_c2"]

    logits = [jnp.zeros((B, V), jnp.float32)]
    for t in range(1, T_TGT):
        hd, cd = cell(tgt_emb[t - 1], hd, cd,
                      params["dec_wih"], params["dec_whh"], params["dec_b"])
        lam = jax.nn.sigmoid(
            jnp.sum(hd * params["w_lam"], axis=-1, keepdims=True) + params["b_lam"])
        pred = hd @ params["w_gen"] + params["b_gen"]
        logits.append((1.0 - lam) * pred + lam * pmi)
    return jnp.stack(logits, axis=0)


# ============================ main ============================
if __name__ == "__main__":
    key = jax.random.PRNGKey(0)
    kp, k_src, k_tgt, k_pmi = jax.random.split(key, 4)
    params = init_params(kp)
    prep = prepare_params(params)

    src = jax.random.randint(k_src, (T_SRC, B), 0, SRC_V, dtype=jnp.int32)
    tgt = jax.random.randint(k_tgt, (T_TGT, B), 0, V, dtype=jnp.int32)
    pmi = 0.1 * jax.random.normal(k_pmi, (B, V), dtype=jnp.float32)

    logits = jax.block_until_ready(forward(prep, src, tgt, pmi))
    ref = reference_forward(params, src, tgt, pmi)

    assert logits.shape == (T_TGT, B, V)
    err = float(jnp.max(jnp.abs(logits - ref)))
    # bf16 MXU operands + sigmoid-as-tanh add a small numeric envelope; the
    # 0.1-scale weights keep it well inside 1e-2 vs. the pure-f32 reference.
    assert err < 1e-2, f"max abs err {err}"
    print("KERNEL_OK")
</pallas_src>

<mosaic_0001>
module attributes {stable_mosaic.version = 11 : i64} {
  func.func @seq2seq_kernel(%arg0: memref<96x1xi32, #tpu.memory_space<vmem>>, %arg1: memref<56x1xi32, #tpu.memory_space<vmem>>, %arg2: memref<8x128xf32, #tpu.memory_space<vmem>>, %arg3: memref<128x128xf32, #tpu.memory_space<vmem>>, %arg4: memref<128x128xf32, #tpu.memory_space<vmem>>, %arg5: memref<32x128xbf16, #tpu.memory_space<vmem>>, %arg6: memref<32x128xbf16, #tpu.memory_space<vmem>>, %arg7: memref<128x32xf32, #tpu.memory_space<vmem>>, %arg8: memref<1x32xf32, #tpu.memory_space<vmem>>, %arg9: memref<32x32xf32, #tpu.memory_space<vmem>>, %arg10: memref<32x32xf32, #tpu.memory_space<vmem>>, %arg11: memref<1x32xf32, #tpu.memory_space<vmem>>, %arg12: memref<32x32xf32, #tpu.memory_space<vmem>>, %arg13: memref<32x32xf32, #tpu.memory_space<vmem>>, %arg14: memref<1x32xf32, #tpu.memory_space<vmem>>, %arg15: memref<1x32xf32, #tpu.memory_space<vmem>>, %arg16: memref<1x1xf32, #tpu.memory_space<vmem>>, %arg17: memref<32x128xbf16, #tpu.memory_space<vmem>>, %arg18: memref<1x128xf32, #tpu.memory_space<vmem>>, %arg19: memref<8x8x128xf32, #tpu.memory_space<vmem>>) attributes {dimension_semantics = [], scalar_prefetch = 0 : i64, scratch_operands = 0 : i64, tpu.core_type = #tpu.core_type<tc>} {
    %c0 = arith.constant 0 : index
    %c0_0 = arith.constant 0 : index
    %0 = vector.load %arg0[%c0, %c0_0] : memref<96x1xi32, #tpu.memory_space<vmem>>, vector<96x1xi32>
    %c0_1 = arith.constant 0 : index
    %c0_2 = arith.constant 0 : index
    %1 = vector.load %arg1[%c0_1, %c0_2] : memref<56x1xi32, #tpu.memory_space<vmem>>, vector<56x1xi32>
    %2 = tpu.iota {dimensions = array<i32: 1>} : vector<96x128xi32>
    %3 = vector.broadcast %0 : vector<96x1xi32> to vector<96x128xi32>
    %4 = arith.cmpi eq, %3, %2 : vector<96x128xi32>
    %5 = arith.extui %4 : vector<96x128xi1> to vector<96x128xi32>
    %6 = arith.sitofp %5 : vector<96x128xi32> to vector<96x128xf32>
    %7 = tpu.iota {dimensions = array<i32: 1>} : vector<56x128xi32>
    %8 = vector.broadcast %1 : vector<56x1xi32> to vector<56x128xi32>
    %9 = arith.cmpi eq, %8, %7 : vector<56x128xi32>
    %10 = arith.extui %9 : vector<56x128xi1> to vector<56x128xi32>
    %11 = arith.sitofp %10 : vector<56x128xi32> to vector<56x128xf32>
    %c0_3 = arith.constant 0 : index
    %c0_4 = arith.constant 0 : index
    %12 = vector.load %arg3[%c0_3, %c0_4] : memref<128x128xf32, #tpu.memory_space<vmem>>, vector<128x128xf32>
    %cst = arith.constant dense<0.000000e+00> : vector<96x128xf32>
    %13 = tpu.matmul %6, %12, %cst {dimension_numbers = #tpu.dot_dimension_numbers<[1], [0], [0], [1], [0, 0, 1, 1], [], []>} : vector<96x128xf32>, vector<128x128xf32>, vector<96x128xf32> -> vector<96x128xf32>
    %c0_5 = arith.constant 0 : index
    %c0_6 = arith.constant 0 : index
    %14 = vector.load %arg4[%c0_5, %c0_6] : memref<128x128xf32, #tpu.memory_space<vmem>>, vector<128x128xf32>
    %cst_7 = arith.constant dense<0.000000e+00> : vector<56x128xf32>
    %15 = tpu.matmul %11, %14, %cst_7 {dimension_numbers = #tpu.dot_dimension_numbers<[1], [0], [0], [1], [0, 0, 1, 1], [], []>} : vector<56x128xf32>, vector<128x128xf32>, vector<56x128xf32> -> vector<56x128xf32>
    %c0_8 = arith.constant 0 : index
    %c0_9 = arith.constant 0 : index
    %16 = vector.load %arg2[%c0_8, %c0_9] : memref<8x128xf32, #tpu.memory_space<vmem>>, vector<8x128xf32>
    %c0_10 = arith.constant 0 : index
    %c0_11 = arith.constant 0 : index
    %17 = vector.load %arg7[%c0_10, %c0_11] : memref<128x32xf32, #tpu.memory_space<vmem>>, vector<128x32xf32>
    %cst_12 = arith.constant dense<0.000000e+00> : vector<8x32xf32>
    %18 = tpu.matmul %16, %17, %cst_12 {dimension_numbers = #tpu.dot_dimension_numbers<[1], [0], [0], [1], [0, 0, 1, 1], [], []>} : vector<8x128xf32>, vector<128x32xf32>, vector<8x32xf32> -> vector<8x32xf32>
    %c0_13 = arith.constant 0 : index
    %c0_14 = arith.constant 0 : index
    %19 = vector.load %arg8[%c0_13, %c0_14] : memref<1x32xf32, #tpu.memory_space<vmem>>, vector<1x32xf32>
    %20 = vector.broadcast %19 : vector<1x32xf32> to vector<8x32xf32>
    %21 = arith.addf %18, %20 : vector<8x32xf32>
    %cst_15 = arith.constant 0.000000e+00 : f32
    %22 = vector.broadcast %cst_15 : f32 to vector<8x32xf32>
    %23 = arith.maximumf %21, %22 : vector<8x32xf32>
    %c0_16 = arith.constant 0 : index
    %c0_17 = arith.constant 0 : index
    %24 = vector.load %arg10[%c0_16, %c0_17] : memref<32x32xf32, #tpu.memory_space<vmem>>, vector<32x32xf32>
    %cst_18 = arith.constant dense<0.000000e+00> : vector<8x32xf32>
    %25 = tpu.matmul %23, %24, %cst_18 {dimension_numbers = #tpu.dot_dimension_numbers<[1], [0], [0], [1], [0, 0, 1, 1], [], []>} : vector<8x32xf32>, vector<32x32xf32>, vector<8x32xf32> -> vector<8x32xf32>
    %c0_19 = arith.constant 0 : index
    %c0_20 = arith.constant 0 : index
    %26 = vector.load %arg11[%c0_19, %c0_20] : memref<1x32xf32, #tpu.memory_space<vmem>>, vector<1x32xf32>
    %27 = vector.broadcast %26 : vector<1x32xf32> to vector<8x32xf32>
    %28 = arith.addf %25, %27 : vector<8x32xf32>
    %c0_21 = arith.constant 0 : index
    %c0_22 = arith.constant 0 : index
    %29 = vector.load %arg13[%c0_21, %c0_22] : memref<32x32xf32, #tpu.memory_space<vmem>>, vector<32x32xf32>
    %cst_23 = arith.constant dense<0.000000e+00> : vector<8x32xf32>
    %30 = tpu.matmul %23, %29, %cst_23 {dimension_numbers = #tpu.dot_dimension_numbers<[1], [0], [0], [1], [0, 0, 1, 1], [], []>} : vector<8x32xf32>, vector<32x32xf32>, vector<8x32xf32> -> vector<8x32xf32>
    %c0_24 = arith.constant 0 : index
    %c0_25 = arith.constant 0 : index
    %31 = vector.load %arg14[%c0_24, %c0_25] : memref<1x32xf32, #tpu.memory_space<vmem>>, vector<1x32xf32>
    %32 = vector.broadcast %31 : vector<1x32xf32> to vector<8x32xf32>
    %33 = arith.addf %30, %32 : vector<8x32xf32>
    %c0_26 = arith.constant 0 : index
    %c0_27 = arith.constant 0 : index
    %34 = vector.load %arg5[%c0_26, %c0_27] : memref<32x128xbf16, #tpu.memory_space<vmem>>, vector<32x128xbf16>
    %cst_28 = arith.constant 0.000000e+00 : f32
    %35 = vector.broadcast %cst_28 : f32 to vector<8x32xf32>
    %cst_29 = arith.constant 0.000000e+00 : f32
    %36 = vector.broadcast %cst_29 : f32 to vector<8x32xf32>
    %37 = vector.extract_strided_slice %13 {offsets = [0, 0], sizes = [8, 128], strides = [1, 1]} : vector<96x128xf32> to vector<8x128xf32>
    %38 = arith.truncf %35 : vector<8x32xf32> to vector<8x32xbf16>
    %cst_30 = arith.constant dense<0.000000e+00> : vector<8x128xf32>
    %39 = tpu.matmul %38, %34, %cst_30 {dimension_numbers = #tpu.dot_dimension_numbers<[1], [0], [0], [1], [0, 0, 1, 1], [], []>} : vector<8x32xbf16>, vector<32x128xbf16>, vector<8x128xf32> -> vector<8x128xf32>
    %40 = arith.addf %37, %39 : vector<8x128xf32>
    %41 = math.tanh %40 : vector<8x128xf32>
    %42 = vector.extract_strided_slice %41 {offsets = [0, 0], sizes = [8, 96], strides = [1, 1]} : vector<8x128xf32> to vector<8x96xf32>
    %cst_31 = arith.constant 5.000000e-01 : f32
    %43 = vector.broadcast %cst_31 : f32 to vector<8x96xf32>
    %44 = arith.mulf %43, %42 : vector<8x96xf32>
    %cst_32 = arith.constant 5.000000e-01 : f32
    %45 = vector.broadcast %cst_32 : f32 to vector<8x96xf32>
    %46 = arith.addf %44, %45 : vector<8x96xf32>
    %47 = vector.extract_strided_slice %46 {offsets = [0, 0], sizes = [8, 32], strides = [1, 1]} : vector<8x96xf32> to vector<8x32xf32>
    %48 = vector.extract_strided_slice %46 {offsets = [0, 32], sizes = [8, 32], strides = [1, 1]} : vector<8x96xf32> to vector<8x32xf32>
    %49 = vector.extract_strided_slice %46 {offsets = [0, 64], sizes = [8, 32], strides = [1, 1]} : vector<8x96xf32> to vector<8x32xf32>
    %50 = vector.extract_strided_slice %41 {offsets = [0, 96], sizes = [8, 32], strides = [1, 1]} : vector<8x128xf32> to vector<8x32xf32>
    %51 = arith.mulf %48, %36 : vector<8x32xf32>
    %52 = arith.mulf %47, %50 : vector<8x32xf32>
    %53 = arith.addf %51, %52 : vector<8x32xf32>
    %54 = math.tanh %53 : vector<8x32xf32>
    %55 = arith.mulf %49, %54 : vector<8x32xf32>
    %56 = vector.extract_strided_slice %13 {offsets = [8, 0], sizes = [8, 128], strides = [1, 1]} : vector<96x128xf32> to vector<8x128xf32>
    %57 = arith.truncf %55 : vector<8x32xf32> to vector<8x32xbf16>
    %cst_33 = arith.constant dense<0.000000e+00> : vector<8x128xf32>
    %58 = tpu.matmul %57, %34, %cst_33 {dimension_numbers = #tpu.dot_dimension_numbers<[1], [0], [0], [1], [0, 0, 1, 1], [], []>} : vector<8x32xbf16>, vector<32x128xbf16>, vector<8x128xf32> -> vector<8x128xf32>
    %59 = arith.addf %56, %58 : vector<8x128xf32>
    %60 = math.tanh %59 : vector<8x128xf32>
    %61 = vector.extract_strided_slice %60 {offsets = [0, 0], sizes = [8, 96], strides = [1, 1]} : vector<8x128xf32> to vector<8x96xf32>
    %cst_34 = arith.constant 5.000000e-01 : f32
    %62 = vector.broadcast %cst_34 : f32 to vector<8x96xf32>
    %63 = arith.mulf %62, %61 : vector<8x96xf32>
    %cst_35 = arith.constant 5.000000e-01 : f32
    %64 = vector.broadcast %cst_35 : f32 to vector<8x96xf32>
    %65 = arith.addf %63, %64 : vector<8x96xf32>
    %66 = vector.extract_strided_slice %65 {offsets = [0, 0], sizes = [8, 32], strides = [1, 1]} : vector<8x96xf32> to vector<8x32xf32>
    %67 = vector.extract_strided_slice %65 {offsets = [0, 32], sizes = [8, 32], strides = [1, 1]} : vector<8x96xf32> to vector<8x32xf32>
    %68 = vector.extract_strided_slice %65 {offsets = [0, 64], sizes = [8, 32], strides = [1, 1]} : vector<8x96xf32> to vector<8x32xf32>
    %69 = vector.extract_strided_slice %60 {offsets = [0, 96], sizes = [8, 32], strides = [1, 1]} : vector<8x128xf32> to vector<8x32xf32>
    %70 = arith.mulf %67, %53 : vector<8x32xf32>
    %71 = arith.mulf %66, %69 : vector<8x32xf32>
    %72 = arith.addf %70, %71 : vector<8x32xf32>
    %73 = math.tanh %72 : vector<8x32xf32>
    %74 = arith.mulf %68, %73 : vector<8x32xf32>
    %75 = vector.extract_strided_slice %13 {offsets = [16, 0], sizes = [8, 128], strides = [1, 1]} : vector<96x128xf32> to vector<8x128xf32>
    %76 = arith.truncf %74 : vector<8x32xf32> to vector<8x32xbf16>
    %cst_36 = arith.constant dense<0.000000e+00> : vector<8x128xf32>
    %77 = tpu.matmul %76, %34, %cst_36 {dimension_numbers = #tpu.dot_dimension_numbers<[1], [0], [0], [1], [0, 0, 1, 1], [], []>} : vector<8x32xbf16>, vector<32x128xbf16>, vector<8x128xf32> -> vector<8x128xf32>
    %78 = arith.addf %75, %77 : vector<8x128xf32>
    %79 = math.tanh %78 : vector<8x128xf32>
    %80 = vector.extract_strided_slice %79 {offsets = [0, 0], sizes = [8, 96], strides = [1, 1]} : vector<8x128xf32> to vector<8x96xf32>
    %cst_37 = arith.constant 5.000000e-01 : f32
    %81 = vector.broadcast %cst_37 : f32 to vector<8x96xf32>
    %82 = arith.mulf %81, %80 : vector<8x96xf32>
    %cst_38 = arith.constant 5.000000e-01 : f32
    %83 = vector.broadcast %cst_38 : f32 to vector<8x96xf32>
    %84 = arith.addf %82, %83 : vector<8x96xf32>
    %85 = vector.extract_strided_slice %84 {offsets = [0, 0], sizes = [8, 32], strides = [1, 1]} : vector<8x96xf32> to vector<8x32xf32>
    %86 = vector.extract_strided_slice %84 {offsets = [0, 32], sizes = [8, 32], strides = [1, 1]} : vector<8x96xf32> to vector<8x32xf32>
    %87 = vector.extract_strided_slice %84 {offsets = [0, 64], sizes = [8, 32], strides = [1, 1]} : vector<8x96xf32> to vector<8x32xf32>
    %88 = vector.extract_strided_slice %79 {offsets = [0, 96], sizes = [8, 32], strides = [1, 1]} : vector<8x128xf32> to vector<8x32xf32>
    %89 = arith.mulf %86, %72 : vector<8x32xf32>
    %90 = arith.mulf %85, %88 : vector<8x32xf32>
    %91 = arith.addf %89, %90 : vector<8x32xf32>
    %92 = math.tanh %91 : vector<8x32xf32>
    %93 = arith.mulf %87, %92 : vector<8x32xf32>
    %94 = vector.extract_strided_slice %13 {offsets = [24, 0], sizes = [8, 128], strides = [1, 1]} : vector<96x128xf32> to vector<8x128xf32>
    %95 = arith.truncf %93 : vector<8x32xf32> to vector<8x32xbf16>
    %cst_39 = arith.constant dense<0.000000e+00> : vector<8x128xf32>
    %96 = tpu.matmul %95, %34, %cst_39 {dimension_numbers = #tpu.dot_dimension_numbers<[1], [0], [0], [1], [0, 0, 1, 1], [], []>} : vector<8x32xbf16>, vector<32x128xbf16>, vector<8x128xf32> -> vector<8x128xf32>
    %97 = arith.addf %94, %96 : vector<8x128xf32>
    %98 = math.tanh %97 : vector<8x128xf32>
    %99 = vector.extract_strided_slice %98 {offsets = [0, 0], sizes = [8, 96], strides = [1, 1]} : vector<8x128xf32> to vector<8x96xf32>
    %cst_40 = arith.constant 5.000000e-01 : f32
    %100 = vector.broadcast %cst_40 : f32 to vector<8x96xf32>
    %101 = arith.mulf %100, %99 : vector<8x96xf32>
    %cst_41 = arith.constant 5.000000e-01 : f32
    %102 = vector.broadcast %cst_41 : f32 to vector<8x96xf32>
    %103 = arith.addf %101, %102 : vector<8x96xf32>
    %104 = vector.extract_strided_slice %103 {offsets = [0, 0], sizes = [8, 32], strides = [1, 1]} : vector<8x96xf32> to vector<8x32xf32>
    %105 = vector.extract_strided_slice %103 {offsets = [0, 32], sizes = [8, 32], strides = [1, 1]} : vector<8x96xf32> to vector<8x32xf32>
    %106 = vector.extract_strided_slice %103 {offsets = [0, 64], sizes = [8, 32], strides = [1, 1]} : vector<8x96xf32> to vector<8x32xf32>
    %107 = vector.extract_strided_slice %98 {offsets = [0, 96], sizes = [8, 32], strides = [1, 1]} : vector<8x128xf32> to vector<8x32xf32>
    %108 = arith.mulf %105, %91 : vector<8x32xf32>
    %109 = arith.mulf %104, %107 : vector<8x32xf32>
    %110 = arith.addf %108, %109 : vector<8x32xf32>
    %111 = math.tanh %110 : vector<8x32xf32>
    %112 = arith.mulf %106, %111 : vector<8x32xf32>
    %113 = vector.extract_strided_slice %13 {offsets = [32, 0], sizes = [8, 128], strides = [1, 1]} : vector<96x128xf32> to vector<8x128xf32>
    %114 = arith.truncf %112 : vector<8x32xf32> to vector<8x32xbf16>
    %cst_42 = arith.constant dense<0.000000e+00> : vector<8x128xf32>
    %115 = tpu.matmul %114, %34, %cst_42 {dimension_numbers = #tpu.dot_dimension_numbers<[1], [0], [0], [1], [0, 0, 1, 1], [], []>} : vector<8x32xbf16>, vector<32x128xbf16>, vector<8x128xf32> -> vector<8x128xf32>
    %116 = arith.addf %113, %115 : vector<8x128xf32>
    %117 = math.tanh %116 : vector<8x128xf32>
    %118 = vector.extract_strided_slice %117 {offsets = [0, 0], sizes = [8, 96], strides = [1, 1]} : vector<8x128xf32> to vector<8x96xf32>
    %cst_43 = arith.constant 5.000000e-01 : f32
    %119 = vector.broadcast %cst_43 : f32 to vector<8x96xf32>
    %120 = arith.mulf %119, %118 : vector<8x96xf32>
    %cst_44 = arith.constant 5.000000e-01 : f32
    %121 = vector.broadcast %cst_44 : f32 to vector<8x96xf32>
    %122 = arith.addf %120, %121 : vector<8x96xf32>
    %123 = vector.extract_strided_slice %122 {offsets = [0, 0], sizes = [8, 32], strides = [1, 1]} : vector<8x96xf32> to vector<8x32xf32>
    %124 = vector.extract_strided_slice %122 {offsets = [0, 32], sizes = [8, 32], strides = [1, 1]} : vector<8x96xf32> to vector<8x32xf32>
    %125 = vector.extract_strided_slice %122 {offsets = [0, 64], sizes = [8, 32], strides = [1, 1]} : vector<8x96xf32> to vector<8x32xf32>
    %126 = vector.extract_strided_slice %117 {offsets = [0, 96], sizes = [8, 32], strides = [1, 1]} : vector<8x128xf32> to vector<8x32xf32>
    %127 = arith.mulf %124, %110 : vector<8x32xf32>
    %128 = arith.mulf %123, %126 : vector<8x32xf32>
    %129 = arith.addf %127, %128 : vector<8x32xf32>
    %130 = math.tanh %129 : vector<8x32xf32>
    %131 = arith.mulf %125, %130 : vector<8x32xf32>
    %132 = vector.extract_strided_slice %13 {offsets = [40, 0], sizes = [8, 128], strides = [1, 1]} : vector<96x128xf32> to vector<8x128xf32>
    %133 = arith.truncf %131 : vector<8x32xf32> to vector<8x32xbf16>
    %cst_45 = arith.constant dense<0.000000e+00> : vector<8x128xf32>
    %134 = tpu.matmul %133, %34, %cst_45 {dimension_numbers = #tpu.dot_dimension_numbers<[1], [0], [0], [1], [0, 0, 1, 1], [], []>} : vector<8x32xbf16>, vector<32x128xbf16>, vector<8x128xf32> -> vector<8x128xf32>
    %135 = arith.addf %132, %134 : vector<8x128xf32>
    %136 = math.tanh %135 : vector<8x128xf32>
    %137 = vector.extract_strided_slice %136 {offsets = [0, 0], sizes = [8, 96], strides = [1, 1]} : vector<8x128xf32> to vector<8x96xf32>
    %cst_46 = arith.constant 5.000000e-01 : f32
    %138 = vector.broadcast %cst_46 : f32 to vector<8x96xf32>
    %139 = arith.mulf %138, %137 : vector<8x96xf32>
    %cst_47 = arith.constant 5.000000e-01 : f32
    %140 = vector.broadcast %cst_47 : f32 to vector<8x96xf32>
    %141 = arith.addf %139, %140 : vector<8x96xf32>
    %142 = vector.extract_strided_slice %141 {offsets = [0, 0], sizes = [8, 32], strides = [1, 1]} : vector<8x96xf32> to vector<8x32xf32>
    %143 = vector.extract_strided_slice %141 {offsets = [0, 32], sizes = [8, 32], strides = [1, 1]} : vector<8x96xf32> to vector<8x32xf32>
    %144 = vector.extract_strided_slice %141 {offsets = [0, 64], sizes = [8, 32], strides = [1, 1]} : vector<8x96xf32> to vector<8x32xf32>
    %145 = vector.extract_strided_slice %136 {offsets = [0, 96], sizes = [8, 32], strides = [1, 1]} : vector<8x128xf32> to vector<8x32xf32>
    %146 = arith.mulf %143, %129 : vector<8x32xf32>
    %147 = arith.mulf %142, %145 : vector<8x32xf32>
    %148 = arith.addf %146, %147 : vector<8x32xf32>
    %149 = math.tanh %148 : vector<8x32xf32>
    %150 = arith.mulf %144, %149 : vector<8x32xf32>
    %151 = vector.extract_strided_slice %13 {offsets = [48, 0], sizes = [8, 128], strides = [1, 1]} : vector<96x128xf32> to vector<8x128xf32>
    %152 = arith.truncf %150 : vector<8x32xf32> to vector<8x32xbf16>
    %cst_48 = arith.constant dense<0.000000e+00> : vector<8x128xf32>
    %153 = tpu.matmul %152, %34, %cst_48 {dimension_numbers = #tpu.dot_dimension_numbers<[1], [0], [0], [1], [0, 0, 1, 1], [], []>} : vector<8x32xbf16>, vector<32x128xbf16>, vector<8x128xf32> -> vector<8x128xf32>
    %154 = arith.addf %151, %153 : vector<8x128xf32>
    %155 = math.tanh %154 : vector<8x128xf32>
    %156 = vector.extract_strided_slice %155 {offsets = [0, 0], sizes = [8, 96], strides = [1, 1]} : vector<8x128xf32> to vector<8x96xf32>
    %cst_49 = arith.constant 5.000000e-01 : f32
    %157 = vector.broadcast %cst_49 : f32 to vector<8x96xf32>
    %158 = arith.mulf %157, %156 : vector<8x96xf32>
    %cst_50 = arith.constant 5.000000e-01 : f32
    %159 = vector.broadcast %cst_50 : f32 to vector<8x96xf32>
    %160 = arith.addf %158, %159 : vector<8x96xf32>
    %161 = vector.extract_strided_slice %160 {offsets = [0, 0], sizes = [8, 32], strides = [1, 1]} : vector<8x96xf32> to vector<8x32xf32>
    %162 = vector.extract_strided_slice %160 {offsets = [0, 32], sizes = [8, 32], strides = [1, 1]} : vector<8x96xf32> to vector<8x32xf32>
    %163 = vector.extract_strided_slice %160 {offsets = [0, 64], sizes = [8, 32], strides = [1, 1]} : vector<8x96xf32> to vector<8x32xf32>
    %164 = vector.extract_strided_slice %155 {offsets = [0, 96], sizes = [8, 32], strides = [1, 1]} : vector<8x128xf32> to vector<8x32xf32>
    %165 = arith.mulf %162, %148 : vector<8x32xf32>
    %166 = arith.mulf %161, %164 : vector<8x32xf32>
    %167 = arith.addf %165, %166 : vector<8x32xf32>
    %168 = math.tanh %167 : vector<8x32xf32>
    %169 = arith.mulf %163, %168 : vector<8x32xf32>
    %170 = vector.extract_strided_slice %13 {offsets = [56, 0], sizes = [8, 128], strides = [1, 1]} : vector<96x128xf32> to vector<8x128xf32>
    %171 = arith.truncf %169 : vector<8x32xf32> to vector<8x32xbf16>
    %cst_51 = arith.constant dense<0.000000e+00> : vector<8x128xf32>
    %172 = tpu.matmul %171, %34, %cst_51 {dimension_numbers = #tpu.dot_dimension_numbers<[1], [0], [0], [1], [0, 0, 1, 1], [], []>} : vector<8x32xbf16>, vector<32x128xbf16>, vector<8x128xf32> -> vector<8x128xf32>
    %173 = arith.addf %170, %172 : vector<8x128xf32>
    %174 = math.tanh %173 : vector<8x128xf32>
    %175 = vector.extract_strided_slice %174 {offsets = [0, 0], sizes = [8, 96], strides = [1, 1]} : vector<8x128xf32> to vector<8x96xf32>
    %cst_52 = arith.constant 5.000000e-01 : f32
    %176 = vector.broadcast %cst_52 : f32 to vector<8x96xf32>
    %177 = arith.mulf %176, %175 : vector<8x96xf32>
    %cst_53 = arith.constant 5.000000e-01 : f32
    %178 = vector.broadcast %cst_53 : f32 to vector<8x96xf32>
    %179 = arith.addf %177, %178 : vector<8x96xf32>
    %180 = vector.extract_strided_slice %179 {offsets = [0, 0], sizes = [8, 32], strides = [1, 1]} : vector<8x96xf32> to vector<8x32xf32>
    %181 = vector.extract_strided_slice %179 {offsets = [0, 32], sizes = [8, 32], strides = [1, 1]} : vector<8x96xf32> to vector<8x32xf32>
    %182 = vector.extract_strided_slice %179 {offsets = [0, 64], sizes = [8, 32], strides = [1, 1]} : vector<8x96xf32> to vector<8x32xf32>
    %183 = vector.extract_strided_slice %174 {offsets = [0, 96], sizes = [8, 32], strides = [1, 1]} : vector<8x128xf32> to vector<8x32xf32>
    %184 = arith.mulf %181, %167 : vector<8x32xf32>
    %185 = arith.mulf %180, %183 : vector<8x32xf32>
    %186 = arith.addf %184, %185 : vector<8x32xf32>
    %187 = math.tanh %186 : vector<8x32xf32>
    %188 = arith.mulf %182, %187 : vector<8x32xf32>
    %189 = vector.extract_strided_slice %13 {offsets = [64, 0], sizes = [8, 128], strides = [1, 1]} : vector<96x128xf32> to vector<8x128xf32>
    %190 = arith.truncf %188 : vector<8x32xf32> to vector<8x32xbf16>
    %cst_54 = arith.constant dense<0.000000e+00> : vector<8x128xf32>
    %191 = tpu.matmul %190, %34, %cst_54 {dimension_numbers = #tpu.dot_dimension_numbers<[1], [0], [0], [1], [0, 0, 1, 1], [], []>} : vector<8x32xbf16>, vector<32x128xbf16>, vector<8x128xf32> -> vector<8x128xf32>
    %192 = arith.addf %189, %191 : vector<8x128xf32>
    %193 = math.tanh %192 : vector<8x128xf32>
    %194 = vector.extract_strided_slice %193 {offsets = [0, 0], sizes = [8, 96], strides = [1, 1]} : vector<8x128xf32> to vector<8x96xf32>
    %cst_55 = arith.constant 5.000000e-01 : f32
    %195 = vector.broadcast %cst_55 : f32 to vector<8x96xf32>
    %196 = arith.mulf %195, %194 : vector<8x96xf32>
    %cst_56 = arith.constant 5.000000e-01 : f32
    %197 = vector.broadcast %cst_56 : f32 to vector<8x96xf32>
    %198 = arith.addf %196, %197 : vector<8x96xf32>
    %199 = vector.extract_strided_slice %198 {offsets = [0, 0], sizes = [8, 32], strides = [1, 1]} : vector<8x96xf32> to vector<8x32xf32>
    %200 = vector.extract_strided_slice %198 {offsets = [0, 32], sizes = [8, 32], strides = [1, 1]} : vector<8x96xf32> to vector<8x32xf32>
    %201 = vector.extract_strided_slice %198 {offsets = [0, 64], sizes = [8, 32], strides = [1, 1]} : vector<8x96xf32> to vector<8x32xf32>
    %202 = vector.extract_strided_slice %193 {offsets = [0, 96], sizes = [8, 32], strides = [1, 1]} : vector<8x128xf32> to vector<8x32xf32>
    %203 = arith.mulf %200, %186 : vector<8x32xf32>
    %204 = arith.mulf %199, %202 : vector<8x32xf32>
    %205 = arith.addf %203, %204 : vector<8x32xf32>
    %206 = math.tanh %205 : vector<8x32xf32>
    %207 = arith.mulf %201, %206 : vector<8x32xf32>
    %208 = vector.extract_strided_slice %13 {offsets = [72, 0], sizes = [8, 128], strides = [1, 1]} : vector<96x128xf32> to vector<8x128xf32>
    %209 = arith.truncf %207 : vector<8x32xf32> to vector<8x32xbf16>
    %cst_57 = arith.constant dense<0.000000e+00> : vector<8x128xf32>
    %210 = tpu.matmul %209, %34, %cst_57 {dimension_numbers = #tpu.dot_dimension_numbers<[1], [0], [0], [1], [0, 0, 1, 1], [], []>} : vector<8x32xbf16>, vector<32x128xbf16>, vector<8x128xf32> -> vector<8x128xf32>
    %211 = arith.addf %208, %210 : vector<8x128xf32>
    %212 = math.tanh %211 : vector<8x128xf32>
    %213 = vector.extract_strided_slice %212 {offsets = [0, 0], sizes = [8, 96], strides = [1, 1]} : vector<8x128xf32> to vector<8x96xf32>
    %cst_58 = arith.constant 5.000000e-01 : f32
    %214 = vector.broadcast %cst_58 : f32 to vector<8x96xf32>
    %215 = arith.mulf %214, %213 : vector<8x96xf32>
    %cst_59 = arith.constant 5.000000e-01 : f32
    %216 = vector.broadcast %cst_59 : f32 to vector<8x96xf32>
    %217 = arith.addf %215, %216 : vector<8x96xf32>
    %218 = vector.extract_strided_slice %217 {offsets = [0, 0], sizes = [8, 32], strides = [1, 1]} : vector<8x96xf32> to vector<8x32xf32>
    %219 = vector.extract_strided_slice %217 {offsets = [0, 32], sizes = [8, 32], strides = [1, 1]} : vector<8x96xf32> to vector<8x32xf32>
    %220 = vector.extract_strided_slice %217 {offsets = [0, 64], sizes = [8, 32], strides = [1, 1]} : vector<8x96xf32> to vector<8x32xf32>
    %221 = vector.extract_strided_slice %212 {offsets = [0, 96], sizes = [8, 32], strides = [1, 1]} : vector<8x128xf32> to vector<8x32xf32>
    %222 = arith.mulf %219, %205 : vector<8x32xf32>
    %223 = arith.mulf %218, %221 : vector<8x32xf32>
    %224 = arith.addf %222, %223 : vector<8x32xf32>
    %225 = math.tanh %224 : vector<8x32xf32>
    %226 = arith.mulf %220, %225 : vector<8x32xf32>
    %227 = vector.extract_strided_slice %13 {offsets = [80, 0], sizes = [8, 128], strides = [1, 1]} : vector<96x128xf32> to vector<8x128xf32>
    %228 = arith.truncf %226 : vector<8x32xf32> to vector<8x32xbf16>
    %cst_60 = arith.constant dense<0.000000e+00> : vector<8x128xf32>
    %229 = tpu.matmul %228, %34, %cst_60 {dimension_numbers = #tpu.dot_dimension_numbers<[1], [0], [0], [1], [0, 0, 1, 1], [], []>} : vector<8x32xbf16>, vector<32x128xbf16>, vector<8x128xf32> -> vector<8x128xf32>
    %230 = arith.addf %227, %229 : vector<8x128xf32>
    %231 = math.tanh %230 : vector<8x128xf32>
    %232 = vector.extract_strided_slice %231 {offsets = [0, 0], sizes = [8, 96], strides = [1, 1]} : vector<8x128xf32> to vector<8x96xf32>
    %cst_61 = arith.constant 5.000000e-01 : f32
    %233 = vector.broadcast %cst_61 : f32 to vector<8x96xf32>
    %234 = arith.mulf %233, %232 : vector<8x96xf32>
    %cst_62 = arith.constant 5.000000e-01 : f32
    %235 = vector.broadcast %cst_62 : f32 to vector<8x96xf32>
    %236 = arith.addf %234, %235 : vector<8x96xf32>
    %237 = vector.extract_strided_slice %236 {offsets = [0, 0], sizes = [8, 32], strides = [1, 1]} : vector<8x96xf32> to vector<8x32xf32>
    %238 = vector.extract_strided_slice %236 {offsets = [0, 32], sizes = [8, 32], strides = [1, 1]} : vector<8x96xf32> to vector<8x32xf32>
    %239 = vector.extract_strided_slice %236 {offsets = [0, 64], sizes = [8, 32], strides = [1, 1]} : vector<8x96xf32> to vector<8x32xf32>
    %240 = vector.extract_strided_slice %231 {offsets = [0, 96], sizes = [8, 32], strides = [1, 1]} : vector<8x128xf32> to vector<8x32xf32>
    %241 = arith.mulf %238, %224 : vector<8x32xf32>
    %242 = arith.mulf %237, %240 : vector<8x32xf32>
    %243 = arith.addf %241, %242 : vector<8x32xf32>
    %244 = math.tanh %243 : vector<8x32xf32>
    %245 = arith.mulf %239, %244 : vector<8x32xf32>
    %246 = vector.extract_strided_slice %13 {offsets = [88, 0], sizes = [8, 128], strides = [1, 1]} : vector<96x128xf32> to vector<8x128xf32>
    %247 = arith.truncf %245 : vector<8x32xf32> to vector<8x32xbf16>
    %cst_63 = arith.constant dense<0.000000e+00> : vector<8x128xf32>
    %248 = tpu.matmul %247, %34, %cst_63 {dimension_numbers = #tpu.dot_dimension_numbers<[1], [0], [0], [1], [0, 0, 1, 1], [], []>} : vector<8x32xbf16>, vector<32x128xbf16>, vector<8x128xf32> -> vector<8x128xf32>
    %249 = arith.addf %246, %248 : vector<8x128xf32>
    %250 = math.tanh %249 : vector<8x128xf32>
    %251 = vector.extract_strided_slice %250 {offsets = [0, 0], sizes = [8, 96], strides = [1, 1]} : vector<8x128xf32> to vector<8x96xf32>
    %cst_64 = arith.constant 5.000000e-01 : f32
    %252 = vector.broadcast %cst_64 : f32 to vector<8x96xf32>
    %253 = arith.mulf %252, %251 : vector<8x96xf32>
    %cst_65 = arith.constant 5.000000e-01 : f32
    %254 = vector.broadcast %cst_65 : f32 to vector<8x96xf32>
    %255 = arith.addf %253, %254 : vector<8x96xf32>
    %256 = vector.extract_strided_slice %255 {offsets = [0, 0], sizes = [8, 32], strides = [1, 1]} : vector<8x96xf32> to vector<8x32xf32>
    %257 = vector.extract_strided_slice %255 {offsets = [0, 32], sizes = [8, 32], strides = [1, 1]} : vector<8x96xf32> to vector<8x32xf32>
    %258 = vector.extract_strided_slice %255 {offsets = [0, 64], sizes = [8, 32], strides = [1, 1]} : vector<8x96xf32> to vector<8x32xf32>
    %259 = vector.extract_strided_slice %250 {offsets = [0, 96], sizes = [8, 32], strides = [1, 1]} : vector<8x128xf32> to vector<8x32xf32>
    %260 = arith.mulf %257, %243 : vector<8x32xf32>
    %261 = arith.mulf %256, %259 : vector<8x32xf32>
    %262 = arith.addf %260, %261 : vector<8x32xf32>
    %263 = math.tanh %262 : vector<8x32xf32>
    %264 = arith.mulf %258, %263 : vector<8x32xf32>
    %c0_66 = arith.constant 0 : index
    %c0_67 = arith.constant 0 : index
    %265 = vector.load %arg9[%c0_66, %c0_67] : memref<32x32xf32, #tpu.memory_space<vmem>>, vector<32x32xf32>
    %cst_68 = arith.constant dense<0.000000e+00> : vector<8x32xf32>
    %266 = tpu.matmul %264, %265, %cst_68 {dimension_numbers = #tpu.dot_dimension_numbers<[1], [0], [0], [1], [0, 0, 1, 1], [], []>} : vector<8x32xf32>, vector<32x32xf32>, vector<8x32xf32> -> vector<8x32xf32>
    %267 = arith.addf %266, %28 : vector<8x32xf32>
    %c0_69 = arith.constant 0 : index
    %c0_70 = arith.constant 0 : index
    %268 = vector.load %arg12[%c0_69, %c0_70] : memref<32x32xf32, #tpu.memory_space<vmem>>, vector<32x32xf32>
    %cst_71 = arith.constant dense<0.000000e+00> : vector<8x32xf32>
    %269 = tpu.matmul %262, %268, %cst_71 {dimension_numbers = #tpu.dot_dimension_numbers<[1], [0], [0], [1], [0, 0, 1, 1], [], []>} : vector<8x32xf32>, vector<32x32xf32>, vector<8x32xf32> -> vector<8x32xf32>
    %270 = arith.addf %269, %33 : vector<8x32xf32>
    %c0_72 = arith.constant 0 : index
    %c0_73 = arith.constant 0 : index
    %271 = vector.load %arg6[%c0_72, %c0_73] : memref<32x128xbf16, #tpu.memory_space<vmem>>, vector<32x128xbf16>
    %c0_74 = arith.constant 0 : index
    %c0_75 = arith.constant 0 : index
    %272 = vector.load %arg17[%c0_74, %c0_75] : memref<32x128xbf16, #tpu.memory_space<vmem>>, vector<32x128xbf16>
    %c0_76 = arith.constant 0 : index
    %c0_77 = arith.constant 0 : index
    %273 = vector.load %arg18[%c0_76, %c0_77] : memref<1x128xf32, #tpu.memory_space<vmem>>, vector<1x128xf32>
    %274 = vector.shape_cast %273 : vector<1x128xf32> to vector<1x128xf32>
    %275 = vector.broadcast %274 : vector<1x128xf32> to vector<8x128xf32>
    %c0_78 = arith.constant 0 : index
    %c0_79 = arith.constant 0 : index
    %276 = vector.load %arg15[%c0_78, %c0_79] : memref<1x32xf32, #tpu.memory_space<vmem>>, vector<1x32xf32>
    %277 = vector.shape_cast %276 : vector<1x32xf32> to vector<1x32xf32>
    %278 = vector.broadcast %277 : vector<1x32xf32> to vector<8x32xf32>
    %c0_80 = arith.constant 0 : index
    %c0_81 = arith.constant 0 : index
    %279 = vector.load %arg16[%c0_80, %c0_81] : memref<1x1xf32, #tpu.memory_space<vmem>>, vector<1x1xf32>
    %280 = vector.shape_cast %279 : vector<1x1xf32> to vector<1x1xf32>
    %281 = vector.broadcast %280 : vector<1x1xf32> to vector<8x1xf32>
    %cst_82 = arith.constant 0.000000e+00 : f32
    %282 = vector.broadcast %cst_82 : f32 to vector<8x128xf32>
    %c0_83 = arith.constant 0 : index
    %c0_84 = arith.constant 0 : index
    %c0_85 = arith.constant 0 : index
    %283 = vector.load %arg19[%c0_83, %c0_84, %c0_85] : memref<8x8x128xf32, #tpu.memory_space<vmem>>, vector<1x8x128xf32>
    %284 = vector.shape_cast %283 : vector<1x8x128xf32> to vector<8x128xf32>
    %285 = vector.shape_cast %282 : vector<8x128xf32> to vector<1x8x128xf32>
    tpu.vector_store %arg19[%c0_83, %c0_84, %c0_85], %285 {strides = array<i32>} : memref<8x8x128xf32, #tpu.memory_space<vmem>>, vector<1x8x128xf32>,
    %286 = vector.extract_strided_slice %15 {offsets = [0, 0], sizes = [8, 128], strides = [1, 1]} : vector<56x128xf32> to vector<8x128xf32>
    %287 = arith.truncf %267 : vector<8x32xf32> to vector<8x32xbf16>
    %cst_86 = arith.constant dense<0.000000e+00> : vector<8x128xf32>
    %288 = tpu.matmul %287, %271, %cst_86 {dimension_numbers = #tpu.dot_dimension_numbers<[1], [0], [0], [1], [0, 0, 1, 1], [], []>} : vector<8x32xbf16>, vector<32x128xbf16>, vector<8x128xf32> -> vector<8x128xf32>
    %289 = arith.addf %286, %288 : vector<8x128xf32>
    %290 = math.tanh %289 : vector<8x128xf32>
    %291 = vector.extract_strided_slice %290 {offsets = [0, 0], sizes = [8, 96], strides = [1, 1]} : vector<8x128xf32> to vector<8x96xf32>
    %cst_87 = arith.constant 5.000000e-01 : f32
    %292 = vector.broadcast %cst_87 : f32 to vector<8x96xf32>
    %293 = arith.mulf %292, %291 : vector<8x96xf32>
    %cst_88 = arith.constant 5.000000e-01 : f32
    %294 = vector.broadcast %cst_88 : f32 to vector<8x96xf32>
    %295 = arith.addf %293, %294 : vector<8x96xf32>
    %296 = vector.extract_strided_slice %295 {offsets = [0, 0], sizes = [8, 32], strides = [1, 1]} : vector<8x96xf32> to vector<8x32xf32>
    %297 = vector.extract_strided_slice %295 {offsets = [0, 32], sizes = [8, 32], strides = [1, 1]} : vector<8x96xf32> to vector<8x32xf32>
    %298 = vector.extract_strided_slice %295 {offsets = [0, 64], sizes = [8, 32], strides = [1, 1]} : vector<8x96xf32> to vector<8x32xf32>
    %299 = vector.extract_strided_slice %290 {offsets = [0, 96], sizes = [8, 32], strides = [1, 1]} : vector<8x128xf32> to vector<8x32xf32>
    %300 = arith.mulf %297, %270 : vector<8x32xf32>
    %301 = arith.mulf %296, %299 : vector<8x32xf32>
    %302 = arith.addf %300, %301 : vector<8x32xf32>
    %303 = math.tanh %302 : vector<8x32xf32>
    %304 = arith.mulf %298, %303 : vector<8x32xf32>
    %305 = arith.mulf %304, %278 : vector<8x32xf32>
    %cst_89 = arith.constant dense<0.000000e+00> : vector<8xf32>
    %306 = vector.multi_reduction <add>, %305, %cst_89 [1] : vector<8x32xf32> to vector<8xf32>
    %307 = vector.shape_cast %306 : vector<8xf32> to vector<8x1xf32>
    %308 = arith.addf %307, %281 : vector<8x1xf32>
    %309 = arith.negf %308 : vector<8x1xf32>
    %310 = math.exp %309 : vector<8x1xf32>
    %cst_90 = arith.constant 1.000000e+00 : f32
    %311 = vector.broadcast %cst_90 : f32 to vector<8x1xf32>
    %312 = arith.addf %311, %310 : vector<8x1xf32>
    %313 = arith.divf %311, %312 : vector<8x1xf32>
    %314 = arith.truncf %304 : vector<8x32xf32> to vector<8x32xbf16>
    %cst_91 = arith.constant dense<0.000000e+00> : vector<8x128xf32>
    %315 = tpu.matmul %314, %272, %cst_91 {dimension_numbers = #tpu.dot_dimension_numbers<[1], [0], [0], [1], [0, 0, 1, 1], [], []>} : vector<8x32xbf16>, vector<32x128xbf16>, vector<8x128xf32> -> vector<8x128xf32>
    %316 = arith.addf %315, %275 : vector<8x128xf32>
    %cst_92 = arith.constant 1.000000e+00 : f32
    %317 = vector.broadcast %cst_92 : f32 to vector<8x1xf32>
    %318 = arith.subf %317, %313 : vector<8x1xf32>
    %319 = vector.broadcast %318 : vector<8x1xf32> to vector<8x128xf32>
    %320 = arith.mulf %319, %316 : vector<8x128xf32>
    %321 = vector.broadcast %313 : vector<8x1xf32> to vector<8x128xf32>
    %322 = arith.mulf %321, %16 : vector<8x128xf32>
    %323 = arith.addf %320, %322 : vector<8x128xf32>
    %c1 = arith.constant 1 : index
    %c0_93 = arith.constant 0 : index
    %c0_94 = arith.constant 0 : index
    %324 = vector.load %arg19[%c1, %c0_93, %c0_94] : memref<8x8x128xf32, #tpu.memory_space<vmem>>, vector<1x8x128xf32>
    %325 = vector.shape_cast %324 : vector<1x8x128xf32> to vector<8x128xf32>
    %326 = vector.shape_cast %323 : vector<8x128xf32> to vector<1x8x128xf32>
    tpu.vector_store %arg19[%c1, %c0_93, %c0_94], %326 {strides = array<i32>} : memref<8x8x128xf32, #tpu.memory_space<vmem>>, vector<1x8x128xf32>,
    %327 = vector.extract_strided_slice %15 {offsets = [8, 0], sizes = [8, 128], strides = [1, 1]} : vector<56x128xf32> to vector<8x128xf32>
    %328 = arith.truncf %304 : vector<8x32xf32> to vector<8x32xbf16>
    %cst_95 = arith.constant dense<0.000000e+00> : vector<8x128xf32>
    %329 = tpu.matmul %328, %271, %cst_95 {dimension_numbers = #tpu.dot_dimension_numbers<[1], [0], [0], [1], [0, 0, 1, 1], [], []>} : vector<8x32xbf16>, vector<32x128xbf16>, vector<8x128xf32> -> vector<8x128xf32>
    %330 = arith.addf %327, %329 : vector<8x128xf32>
    %331 = math.tanh %330 : vector<8x128xf32>
    %332 = vector.extract_strided_slice %331 {offsets = [0, 0], sizes = [8, 96], strides = [1, 1]} : vector<8x128xf32> to vector<8x96xf32>
    %cst_96 = arith.constant 5.000000e-01 : f32
    %333 = vector.broadcast %cst_96 : f32 to vector<8x96xf32>
    %334 = arith.mulf %333, %332 : vector<8x96xf32>
    %cst_97 = arith.constant 5.000000e-01 : f32
    %335 = vector.broadcast %cst_97 : f32 to vector<8x96xf32>
    %336 = arith.addf %334, %335 : vector<8x96xf32>
    %337 = vector.extract_strided_slice %336 {offsets = [0, 0], sizes = [8, 32], strides = [1, 1]} : vector<8x96xf32> to vector<8x32xf32>
    %338 = vector.extract_strided_slice %336 {offsets = [0, 32], sizes = [8, 32], strides = [1, 1]} : vector<8x96xf32> to vector<8x32xf32>
    %339 = vector.extract_strided_slice %336 {offsets = [0, 64], sizes = [8, 32], strides = [1, 1]} : vector<8x96xf32> to vector<8x32xf32>
    %340 = vector.extract_strided_slice %331 {offsets = [0, 96], sizes = [8, 32], strides = [1, 1]} : vector<8x128xf32> to vector<8x32xf32>
    %341 = arith.mulf %338, %302 : vector<8x32xf32>
    %342 = arith.mulf %337, %340 : vector<8x32xf32>
    %343 = arith.addf %341, %342 : vector<8x32xf32>
    %344 = math.tanh %343 : vector<8x32xf32>
    %345 = arith.mulf %339, %344 : vector<8x32xf32>
    %346 = arith.mulf %345, %278 : vector<8x32xf32>
    %cst_98 = arith.constant dense<0.000000e+00> : vector<8xf32>
    %347 = vector.multi_reduction <add>, %346, %cst_98 [1] : vector<8x32xf32> to vector<8xf32>
    %348 = vector.shape_cast %347 : vector<8xf32> to vector<8x1xf32>
    %349 = arith.addf %348, %281 : vector<8x1xf32>
    %350 = arith.negf %349 : vector<8x1xf32>
    %351 = math.exp %350 : vector<8x1xf32>
    %cst_99 = arith.constant 1.000000e+00 : f32
    %352 = vector.broadcast %cst_99 : f32 to vector<8x1xf32>
    %353 = arith.addf %352, %351 : vector<8x1xf32>
    %354 = arith.divf %352, %353 : vector<8x1xf32>
    %355 = arith.truncf %345 : vector<8x32xf32> to vector<8x32xbf16>
    %cst_100 = arith.constant dense<0.000000e+00> : vector<8x128xf32>
    %356 = tpu.matmul %355, %272, %cst_100 {dimension_numbers = #tpu.dot_dimension_numbers<[1], [0], [0], [1], [0, 0, 1, 1], [], []>} : vector<8x32xbf16>, vector<32x128xbf16>, vector<8x128xf32> -> vector<8x128xf32>
    %357 = arith.addf %356, %275 : vector<8x128xf32>
    %cst_101 = arith.constant 1.000000e+00 : f32
    %358 = vector.broadcast %cst_101 : f32 to vector<8x1xf32>
    %359 = arith.subf %358, %354 : vector<8x1xf32>
    %360 = vector.broadcast %359 : vector<8x1xf32> to vector<8x128xf32>
    %361 = arith.mulf %360, %357 : vector<8x128xf32>
    %362 = vector.broadcast %354 : vector<8x1xf32> to vector<8x128xf32>
    %363 = arith.mulf %362, %16 : vector<8x128xf32>
    %364 = arith.addf %361, %363 : vector<8x128xf32>
    %c2 = arith.constant 2 : index
    %c0_102 = arith.constant 0 : index
    %c0_103 = arith.constant 0 : index
    %365 = vector.load %arg19[%c2, %c0_102, %c0_103] : memref<8x8x128xf32, #tpu.memory_space<vmem>>, vector<1x8x128xf32>
    %366 = vector.shape_cast %365 : vector<1x8x128xf32> to vector<8x128xf32>
    %367 = vector.shape_cast %364 : vector<8x128xf32> to vector<1x8x128xf32>
    tpu.vector_store %arg19[%c2, %c0_102, %c0_103], %367 {strides = array<i32>} : memref<8x8x128xf32, #tpu.memory_space<vmem>>, vector<1x8x128xf32>,
    %368 = vector.extract_strided_slice %15 {offsets = [16, 0], sizes = [8, 128], strides = [1, 1]} : vector<56x128xf32> to vector<8x128xf32>
    %369 = arith.truncf %345 : vector<8x32xf32> to vector<8x32xbf16>
    %cst_104 = arith.constant dense<0.000000e+00> : vector<8x128xf32>
    %370 = tpu.matmul %369, %271, %cst_104 {dimension_numbers = #tpu.dot_dimension_numbers<[1], [0], [0], [1], [0, 0, 1, 1], [], []>} : vector<8x32xbf16>, vector<32x128xbf16>, vector<8x128xf32> -> vector<8x128xf32>
    %371 = arith.addf %368, %370 : vector<8x128xf32>
    %372 = math.tanh %371 : vector<8x128xf32>
    %373 = vector.extract_strided_slice %372 {offsets = [0, 0], sizes = [8, 96], strides = [1, 1]} : vector<8x128xf32> to vector<8x96xf32>
    %cst_105 = arith.constant 5.000000e-01 : f32
    %374 = vector.broadcast %cst_105 : f32 to vector<8x96xf32>
    %375 = arith.mulf %374, %373 : vector<8x96xf32>
    %cst_106 = arith.constant 5.000000e-01 : f32
    %376 = vector.broadcast %cst_106 : f32 to vector<8x96xf32>
    %377 = arith.addf %375, %376 : vector<8x96xf32>
    %378 = vector.extract_strided_slice %377 {offsets = [0, 0], sizes = [8, 32], strides = [1, 1]} : vector<8x96xf32> to vector<8x32xf32>
    %379 = vector.extract_strided_slice %377 {offsets = [0, 32], sizes = [8, 32], strides = [1, 1]} : vector<8x96xf32> to vector<8x32xf32>
    %380 = vector.extract_strided_slice %377 {offsets = [0, 64], sizes = [8, 32], strides = [1, 1]} : vector<8x96xf32> to vector<8x32xf32>
    %381 = vector.extract_strided_slice %372 {offsets = [0, 96], sizes = [8, 32], strides = [1, 1]} : vector<8x128xf32> to vector<8x32xf32>
    %382 = arith.mulf %379, %343 : vector<8x32xf32>
    %383 = arith.mulf %378, %381 : vector<8x32xf32>
    %384 = arith.addf %382, %383 : vector<8x32xf32>
    %385 = math.tanh %384 : vector<8x32xf32>
    %386 = arith.mulf %380, %385 : vector<8x32xf32>
    %387 = arith.mulf %386, %278 : vector<8x32xf32>
    %cst_107 = arith.constant dense<0.000000e+00> : vector<8xf32>
    %388 = vector.multi_reduction <add>, %387, %cst_107 [1] : vector<8x32xf32> to vector<8xf32>
    %389 = vector.shape_cast %388 : vector<8xf32> to vector<8x1xf32>
    %390 = arith.addf %389, %281 : vector<8x1xf32>
    %391 = arith.negf %390 : vector<8x1xf32>
    %392 = math.exp %391 : vector<8x1xf32>
    %cst_108 = arith.constant 1.000000e+00 : f32
    %393 = vector.broadcast %cst_108 : f32 to vector<8x1xf32>
    %394 = arith.addf %393, %392 : vector<8x1xf32>
    %395 = arith.divf %393, %394 : vector<8x1xf32>
    %396 = arith.truncf %386 : vector<8x32xf32> to vector<8x32xbf16>
    %cst_109 = arith.constant dense<0.000000e+00> : vector<8x128xf32>
    %397 = tpu.matmul %396, %272, %cst_109 {dimension_numbers = #tpu.dot_dimension_numbers<[1], [0], [0], [1], [0, 0, 1, 1], [], []>} : vector<8x32xbf16>, vector<32x128xbf16>, vector<8x128xf32> -> vector<8x128xf32>
    %398 = arith.addf %397, %275 : vector<8x128xf32>
    %cst_110 = arith.constant 1.000000e+00 : f32
    %399 = vector.broadcast %cst_110 : f32 to vector<8x1xf32>
    %400 = arith.subf %399, %395 : vector<8x1xf32>
    %401 = vector.broadcast %400 : vector<8x1xf32> to vector<8x128xf32>
    %402 = arith.mulf %401, %398 : vector<8x128xf32>
    %403 = vector.broadcast %395 : vector<8x1xf32> to vector<8x128xf32>
    %404 = arith.mulf %403, %16 : vector<8x128xf32>
    %405 = arith.addf %402, %404 : vector<8x128xf32>
    %c3 = arith.constant 3 : index
    %c0_111 = arith.constant 0 : index
    %c0_112 = arith.constant 0 : index
    %406 = vector.load %arg19[%c3, %c0_111, %c0_112] : memref<8x8x128xf32, #tpu.memory_space<vmem>>, vector<1x8x128xf32>
    %407 = vector.shape_cast %406 : vector<1x8x128xf32> to vector<8x128xf32>
    %408 = vector.shape_cast %405 : vector<8x128xf32> to vector<1x8x128xf32>
    tpu.vector_store %arg19[%c3, %c0_111, %c0_112], %408 {strides = array<i32>} : memref<8x8x128xf32, #tpu.memory_space<vmem>>, vector<1x8x128xf32>,
    %409 = vector.extract_strided_slice %15 {offsets = [24, 0], sizes = [8, 128], strides = [1, 1]} : vector<56x128xf32> to vector<8x128xf32>
    %410 = arith.truncf %386 : vector<8x32xf32> to vector<8x32xbf16>
    %cst_113 = arith.constant dense<0.000000e+00> : vector<8x128xf32>
    %411 = tpu.matmul %410, %271, %cst_113 {dimension_numbers = #tpu.dot_dimension_numbers<[1], [0], [0], [1], [0, 0, 1, 1], [], []>} : vector<8x32xbf16>, vector<32x128xbf16>, vector<8x128xf32> -> vector<8x128xf32>
    %412 = arith.addf %409, %411 : vector<8x128xf32>
    %413 = math.tanh %412 : vector<8x128xf32>
    %414 = vector.extract_strided_slice %413 {offsets = [0, 0], sizes = [8, 96], strides = [1, 1]} : vector<8x128xf32> to vector<8x96xf32>
    %cst_114 = arith.constant 5.000000e-01 : f32
    %415 = vector.broadcast %cst_114 : f32 to vector<8x96xf32>
    %416 = arith.mulf %415, %414 : vector<8x96xf32>
    %cst_115 = arith.constant 5.000000e-01 : f32
    %417 = vector.broadcast %cst_115 : f32 to vector<8x96xf32>
    %418 = arith.addf %416, %417 : vector<8x96xf32>
    %419 = vector.extract_strided_slice %418 {offsets = [0, 0], sizes = [8, 32], strides = [1, 1]} : vector<8x96xf32> to vector<8x32xf32>
    %420 = vector.extract_strided_slice %418 {offsets = [0, 32], sizes = [8, 32], strides = [1, 1]} : vector<8x96xf32> to vector<8x32xf32>
    %421 = vector.extract_strided_slice %418 {offsets = [0, 64], sizes = [8, 32], strides = [1, 1]} : vector<8x96xf32> to vector<8x32xf32>
    %422 = vector.extract_strided_slice %413 {offsets = [0, 96], sizes = [8, 32], strides = [1, 1]} : vector<8x128xf32> to vector<8x32xf32>
    %423 = arith.mulf %420, %384 : vector<8x32xf32>
    %424 = arith.mulf %419, %422 : vector<8x32xf32>
    %425 = arith.addf %423, %424 : vector<8x32xf32>
    %426 = math.tanh %425 : vector<8x32xf32>
    %427 = arith.mulf %421, %426 : vector<8x32xf32>
    %428 = arith.mulf %427, %278 : vector<8x32xf32>
    %cst_116 = arith.constant dense<0.000000e+00> : vector<8xf32>
    %429 = vector.multi_reduction <add>, %428, %cst_116 [1] : vector<8x32xf32> to vector<8xf32>
    %430 = vector.shape_cast %429 : vector<8xf32> to vector<8x1xf32>
    %431 = arith.addf %430, %281 : vector<8x1xf32>
    %432 = arith.negf %431 : vector<8x1xf32>
    %433 = math.exp %432 : vector<8x1xf32>
    %cst_117 = arith.constant 1.000000e+00 : f32
    %434 = vector.broadcast %cst_117 : f32 to vector<8x1xf32>
    %435 = arith.addf %434, %433 : vector<8x1xf32>
    %436 = arith.divf %434, %435 : vector<8x1xf32>
    %437 = arith.truncf %427 : vector<8x32xf32> to vector<8x32xbf16>
    %cst_118 = arith.constant dense<0.000000e+00> : vector<8x128xf32>
    %438 = tpu.matmul %437, %272, %cst_118 {dimension_numbers = #tpu.dot_dimension_numbers<[1], [0], [0], [1], [0, 0, 1, 1], [], []>} : vector<8x32xbf16>, vector<32x128xbf16>, vector<8x128xf32> -> vector<8x128xf32>
    %439 = arith.addf %438, %275 : vector<8x128xf32>
    %cst_119 = arith.constant 1.000000e+00 : f32
    %440 = vector.broadcast %cst_119 : f32 to vector<8x1xf32>
    %441 = arith.subf %440, %436 : vector<8x1xf32>
    %442 = vector.broadcast %441 : vector<8x1xf32> to vector<8x128xf32>
    %443 = arith.mulf %442, %439 : vector<8x128xf32>
    %444 = vector.broadcast %436 : vector<8x1xf32> to vector<8x128xf32>
    %445 = arith.mulf %444, %16 : vector<8x128xf32>
    %446 = arith.addf %443, %445 : vector<8x128xf32>
    %c4 = arith.constant 4 : index
    %c0_120 = arith.constant 0 : index
    %c0_121 = arith.constant 0 : index
    %447 = vector.load %arg19[%c4, %c0_120, %c0_121] : memref<8x8x128xf32, #tpu.memory_space<vmem>>, vector<1x8x128xf32>
    %448 = vector.shape_cast %447 : vector<1x8x128xf32> to vector<8x128xf32>
    %449 = vector.shape_cast %446 : vector<8x128xf32> to vector<1x8x128xf32>
    tpu.vector_store %arg19[%c4, %c0_120, %c0_121], %449 {strides = array<i32>} : memref<8x8x128xf32, #tpu.memory_space<vmem>>, vector<1x8x128xf32>,
    %450 = vector.extract_strided_slice %15 {offsets = [32, 0], sizes = [8, 128], strides = [1, 1]} : vector<56x128xf32> to vector<8x128xf32>
    %451 = arith.truncf %427 : vector<8x32xf32> to vector<8x32xbf16>
    %cst_122 = arith.constant dense<0.000000e+00> : vector<8x128xf32>
    %452 = tpu.matmul %451, %271, %cst_122 {dimension_numbers = #tpu.dot_dimension_numbers<[1], [0], [0], [1], [0, 0, 1, 1], [], []>} : vector<8x32xbf16>, vector<32x128xbf16>, vector<8x128xf32> -> vector<8x128xf32>
    %453 = arith.addf %450, %452 : vector<8x128xf32>
    %454 = math.tanh %453 : vector<8x128xf32>
    %455 = vector.extract_strided_slice %454 {offsets = [0, 0], sizes = [8, 96], strides = [1, 1]} : vector<8x128xf32> to vector<8x96xf32>
    %cst_123 = arith.constant 5.000000e-01 : f32
    %456 = vector.broadcast %cst_123 : f32 to vector<8x96xf32>
    %457 = arith.mulf %456, %455 : vector<8x96xf32>
    %cst_124 = arith.constant 5.000000e-01 : f32
    %458 = vector.broadcast %cst_124 : f32 to vector<8x96xf32>
    %459 = arith.addf %457, %458 : vector<8x96xf32>
    %460 = vector.extract_strided_slice %459 {offsets = [0, 0], sizes = [8, 32], strides = [1, 1]} : vector<8x96xf32> to vector<8x32xf32>
    %461 = vector.extract_strided_slice %459 {offsets = [0, 32], sizes = [8, 32], strides = [1, 1]} : vector<8x96xf32> to vector<8x32xf32>
    %462 = vector.extract_strided_slice %459 {offsets = [0, 64], sizes = [8, 32], strides = [1, 1]} : vector<8x96xf32> to vector<8x32xf32>
    %463 = vector.extract_strided_slice %454 {offsets = [0, 96], sizes = [8, 32], strides = [1, 1]} : vector<8x128xf32> to vector<8x32xf32>
    %464 = arith.mulf %461, %425 : vector<8x32xf32>
    %465 = arith.mulf %460, %463 : vector<8x32xf32>
    %466 = arith.addf %464, %465 : vector<8x32xf32>
    %467 = math.tanh %466 : vector<8x32xf32>
    %468 = arith.mulf %462, %467 : vector<8x32xf32>
    %469 = arith.mulf %468, %278 : vector<8x32xf32>
    %cst_125 = arith.constant dense<0.000000e+00> : vector<8xf32>
    %470 = vector.multi_reduction <add>, %469, %cst_125 [1] : vector<8x32xf32> to vector<8xf32>
    %471 = vector.shape_cast %470 : vector<8xf32> to vector<8x1xf32>
    %472 = arith.addf %471, %281 : vector<8x1xf32>
    %473 = arith.negf %472 : vector<8x1xf32>
    %474 = math.exp %473 : vector<8x1xf32>
    %cst_126 = arith.constant 1.000000e+00 : f32
    %475 = vector.broadcast %cst_126 : f32 to vector<8x1xf32>
    %476 = arith.addf %475, %474 : vector<8x1xf32>
    %477 = arith.divf %475, %476 : vector<8x1xf32>
    %478 = arith.truncf %468 : vector<8x32xf32> to vector<8x32xbf16>
    %cst_127 = arith.constant dense<0.000000e+00> : vector<8x128xf32>
    %479 = tpu.matmul %478, %272, %cst_127 {dimension_numbers = #tpu.dot_dimension_numbers<[1], [0], [0], [1], [0, 0, 1, 1], [], []>} : vector<8x32xbf16>, vector<32x128xbf16>, vector<8x128xf32> -> vector<8x128xf32>
    %480 = arith.addf %479, %275 : vector<8x128xf32>
    %cst_128 = arith.constant 1.000000e+00 : f32
    %481 = vector.broadcast %cst_128 : f32 to vector<8x1xf32>
    %482 = arith.subf %481, %477 : vector<8x1xf32>
    %483 = vector.broadcast %482 : vector<8x1xf32> to vector<8x128xf32>
    %484 = arith.mulf %483, %480 : vector<8x128xf32>
    %485 = vector.broadcast %477 : vector<8x1xf32> to vector<8x128xf32>
    %486 = arith.mulf %485, %16 : vector<8x128xf32>
    %487 = arith.addf %484, %486 : vector<8x128xf32>
    %c5 = arith.constant 5 : index
    %c0_129 = arith.constant 0 : index
    %c0_130 = arith.constant 0 : index
    %488 = vector.load %arg19[%c5, %c0_129, %c0_130] : memref<8x8x128xf32, #tpu.memory_space<vmem>>, vector<1x8x128xf32>
    %489 = vector.shape_cast %488 : vector<1x8x128xf32> to vector<8x128xf32>
    %490 = vector.shape_cast %487 : vector<8x128xf32> to vector<1x8x128xf32>
    tpu.vector_store %arg19[%c5, %c0_129, %c0_130], %490 {strides = array<i32>} : memref<8x8x128xf32, #tpu.memory_space<vmem>>, vector<1x8x128xf32>,
    %491 = vector.extract_strided_slice %15 {offsets = [40, 0], sizes = [8, 128], strides = [1, 1]} : vector<56x128xf32> to vector<8x128xf32>
    %492 = arith.truncf %468 : vector<8x32xf32> to vector<8x32xbf16>
    %cst_131 = arith.constant dense<0.000000e+00> : vector<8x128xf32>
    %493 = tpu.matmul %492, %271, %cst_131 {dimension_numbers = #tpu.dot_dimension_numbers<[1], [0], [0], [1], [0, 0, 1, 1], [], []>} : vector<8x32xbf16>, vector<32x128xbf16>, vector<8x128xf32> -> vector<8x128xf32>
    %494 = arith.addf %491, %493 : vector<8x128xf32>
    %495 = math.tanh %494 : vector<8x128xf32>
    %496 = vector.extract_strided_slice %495 {offsets = [0, 0], sizes = [8, 96], strides = [1, 1]} : vector<8x128xf32> to vector<8x96xf32>
    %cst_132 = arith.constant 5.000000e-01 : f32
    %497 = vector.broadcast %cst_132 : f32 to vector<8x96xf32>
    %498 = arith.mulf %497, %496 : vector<8x96xf32>
    %cst_133 = arith.constant 5.000000e-01 : f32
    %499 = vector.broadcast %cst_133 : f32 to vector<8x96xf32>
    %500 = arith.addf %498, %499 : vector<8x96xf32>
    %501 = vector.extract_strided_slice %500 {offsets = [0, 0], sizes = [8, 32], strides = [1, 1]} : vector<8x96xf32> to vector<8x32xf32>
    %502 = vector.extract_strided_slice %500 {offsets = [0, 32], sizes = [8, 32], strides = [1, 1]} : vector<8x96xf32> to vector<8x32xf32>
    %503 = vector.extract_strided_slice %500 {offsets = [0, 64], sizes = [8, 32], strides = [1, 1]} : vector<8x96xf32> to vector<8x32xf32>
    %504 = vector.extract_strided_slice %495 {offsets = [0, 96], sizes = [8, 32], strides = [1, 1]} : vector<8x128xf32> to vector<8x32xf32>
    %505 = arith.mulf %502, %466 : vector<8x32xf32>
    %506 = arith.mulf %501, %504 : vector<8x32xf32>
    %507 = arith.addf %505, %506 : vector<8x32xf32>
    %508 = math.tanh %507 : vector<8x32xf32>
    %509 = arith.mulf %503, %508 : vector<8x32xf32>
    %510 = arith.mulf %509, %278 : vector<8x32xf32>
    %cst_134 = arith.constant dense<0.000000e+00> : vector<8xf32>
    %511 = vector.multi_reduction <add>, %510, %cst_134 [1] : vector<8x32xf32> to vector<8xf32>
    %512 = vector.shape_cast %511 : vector<8xf32> to vector<8x1xf32>
    %513 = arith.addf %512, %281 : vector<8x1xf32>
    %514 = arith.negf %513 : vector<8x1xf32>
    %515 = math.exp %514 : vector<8x1xf32>
    %cst_135 = arith.constant 1.000000e+00 : f32
    %516 = vector.broadcast %cst_135 : f32 to vector<8x1xf32>
    %517 = arith.addf %516, %515 : vector<8x1xf32>
    %518 = arith.divf %516, %517 : vector<8x1xf32>
    %519 = arith.truncf %509 : vector<8x32xf32> to vector<8x32xbf16>
    %cst_136 = arith.constant dense<0.000000e+00> : vector<8x128xf32>
    %520 = tpu.matmul %519, %272, %cst_136 {dimension_numbers = #tpu.dot_dimension_numbers<[1], [0], [0], [1], [0, 0, 1, 1], [], []>} : vector<8x32xbf16>, vector<32x128xbf16>, vector<8x128xf32> -> vector<8x128xf32>
    %521 = arith.addf %520, %275 : vector<8x128xf32>
    %cst_137 = arith.constant 1.000000e+00 : f32
    %522 = vector.broadcast %cst_137 : f32 to vector<8x1xf32>
    %523 = arith.subf %522, %518 : vector<8x1xf32>
    %524 = vector.broadcast %523 : vector<8x1xf32> to vector<8x128xf32>
    %525 = arith.mulf %524, %521 : vector<8x128xf32>
    %526 = vector.broadcast %518 : vector<8x1xf32> to vector<8x128xf32>
    %527 = arith.mulf %526, %16 : vector<8x128xf32>
    %528 = arith.addf %525, %527 : vector<8x128xf32>
    %c6 = arith.constant 6 : index
    %c0_138 = arith.constant 0 : index
    %c0_139 = arith.constant 0 : index
    %529 = vector.load %arg19[%c6, %c0_138, %c0_139] : memref<8x8x128xf32, #tpu.memory_space<vmem>>, vector<1x8x128xf32>
    %530 = vector.shape_cast %529 : vector<1x8x128xf32> to vector<8x128xf32>
    %531 = vector.shape_cast %528 : vector<8x128xf32> to vector<1x8x128xf32>
    tpu.vector_store %arg19[%c6, %c0_138, %c0_139], %531 {strides = array<i32>} : memref<8x8x128xf32, #tpu.memory_space<vmem>>, vector<1x8x128xf32>,
    %532 = vector.extract_strided_slice %15 {offsets = [48, 0], sizes = [8, 128], strides = [1, 1]} : vector<56x128xf32> to vector<8x128xf32>
    %533 = arith.truncf %509 : vector<8x32xf32> to vector<8x32xbf16>
    %cst_140 = arith.constant dense<0.000000e+00> : vector<8x128xf32>
    %534 = tpu.matmul %533, %271, %cst_140 {dimension_numbers = #tpu.dot_dimension_numbers<[1], [0], [0], [1], [0, 0, 1, 1], [], []>} : vector<8x32xbf16>, vector<32x128xbf16>, vector<8x128xf32> -> vector<8x128xf32>
    %535 = arith.addf %532, %534 : vector<8x128xf32>
    %536 = math.tanh %535 : vector<8x128xf32>
    %537 = vector.extract_strided_slice %536 {offsets = [0, 0], sizes = [8, 96], strides = [1, 1]} : vector<8x128xf32> to vector<8x96xf32>
    %cst_141 = arith.constant 5.000000e-01 : f32
    %538 = vector.broadcast %cst_141 : f32 to vector<8x96xf32>
    %539 = arith.mulf %538, %537 : vector<8x96xf32>
    %cst_142 = arith.constant 5.000000e-01 : f32
    %540 = vector.broadcast %cst_142 : f32 to vector<8x96xf32>
    %541 = arith.addf %539, %540 : vector<8x96xf32>
    %542 = vector.extract_strided_slice %541 {offsets = [0, 0], sizes = [8, 32], strides = [1, 1]} : vector<8x96xf32> to vector<8x32xf32>
    %543 = vector.extract_strided_slice %541 {offsets = [0, 32], sizes = [8, 32], strides = [1, 1]} : vector<8x96xf32> to vector<8x32xf32>
    %544 = vector.extract_strided_slice %541 {offsets = [0, 64], sizes = [8, 32], strides = [1, 1]} : vector<8x96xf32> to vector<8x32xf32>
    %545 = vector.extract_strided_slice %536 {offsets = [0, 96], sizes = [8, 32], strides = [1, 1]} : vector<8x128xf32> to vector<8x32xf32>
    %546 = arith.mulf %543, %507 : vector<8x32xf32>
    %547 = arith.mulf %542, %545 : vector<8x32xf32>
    %548 = arith.addf %546, %547 : vector<8x32xf32>
    %549 = math.tanh %548 : vector<8x32xf32>
    %550 = arith.mulf %544, %549 : vector<8x32xf32>
    %551 = arith.mulf %550, %278 : vector<8x32xf32>
    %cst_143 = arith.constant dense<0.000000e+00> : vector<8xf32>
    %552 = vector.multi_reduction <add>, %551, %cst_143 [1] : vector<8x32xf32> to vector<8xf32>
    %553 = vector.shape_cast %552 : vector<8xf32> to vector<8x1xf32>
    %554 = arith.addf %553, %281 : vector<8x1xf32>
    %555 = arith.negf %554 : vector<8x1xf32>
    %556 = math.exp %555 : vector<8x1xf32>
    %cst_144 = arith.constant 1.000000e+00 : f32
    %557 = vector.broadcast %cst_144 : f32 to vector<8x1xf32>
    %558 = arith.addf %557, %556 : vector<8x1xf32>
    %559 = arith.divf %557, %558 : vector<8x1xf32>
    %560 = arith.truncf %550 : vector<8x32xf32> to vector<8x32xbf16>
    %cst_145 = arith.constant dense<0.000000e+00> : vector<8x128xf32>
    %561 = tpu.matmul %560, %272, %cst_145 {dimension_numbers = #tpu.dot_dimension_numbers<[1], [0], [0], [1], [0, 0, 1, 1], [], []>} : vector<8x32xbf16>, vector<32x128xbf16>, vector<8x128xf32> -> vector<8x128xf32>
    %562 = arith.addf %561, %275 : vector<8x128xf32>
    %cst_146 = arith.constant 1.000000e+00 : f32
    %563 = vector.broadcast %cst_146 : f32 to vector<8x1xf32>
    %564 = arith.subf %563, %559 : vector<8x1xf32>
    %565 = vector.broadcast %564 : vector<8x1xf32> to vector<8x128xf32>
    %566 = arith.mulf %565, %562 : vector<8x128xf32>
    %567 = vector.broadcast %559 : vector<8x1xf32> to vector<8x128xf32>
    %568 = arith.mulf %567, %16 : vector<8x128xf32>
    %569 = arith.addf %566, %568 : vector<8x128xf32>
    %c7 = arith.constant 7 : index
    %c0_147 = arith.constant 0 : index
    %c0_148 = arith.constant 0 : index
    %570 = vector.load %arg19[%c7, %c0_147, %c0_148] : memref<8x8x128xf32, #tpu.memory_space<vmem>>, vector<1x8x128xf32>
    %571 = vector.shape_cast %570 : vector<1x8x128xf32> to vector<8x128xf32>
    %572 = vector.shape_cast %569 : vector<8x128xf32> to vector<1x8x128xf32>
    tpu.vector_store %arg19[%c7, %c0_147, %c0_148], %572 {strides = array<i32>} : memref<8x8x128xf32, #tpu.memory_space<vmem>>, vector<1x8x128xf32>,
    return
  }
}

</mosaic_0001>

<llo_original>
// kernel: forward.1
$region0: #{forward.1}
  #allocation0 [shape = 'u32[]', space=smem, size = 0x4, offset = 0x4, fixed_abs, tag = 'smem constant byte address 0x4 - core index']
  #allocation1 [shape = 'u32[144,128]{1,0:T(1,128)}', space=vmem, size = 0x12000, scoped, tag = 'internal scratch']
  #allocation2 [shape = 'f32[1,1]{1,0:T(1,128)S(1)}', space=vmem, size = 0x200, scoped, tag = 'scoped memory for forward.1']
  %s0 = inlined_call_operand.vmem [shape: s32[96,1], index: 0, kind: input, shape index: {}]
  %s1 = inlined_call_operand.vmem [shape: s32[56,1], index: 1, kind: input, shape index: {}]
  %s2 = inlined_call_operand.vmem [shape: f32[8,128], index: 2, kind: input, shape index: {}]
  %s3 = inlined_call_operand.vmem [shape: f32[128,128], index: 3, kind: input, shape index: {}]
  %s4 = inlined_call_operand.vmem [shape: f32[128,128], index: 4, kind: input, shape index: {}]
  %s5 = inlined_call_operand.vmem [shape: bf16[32,128], index: 5, kind: input, shape index: {}]
  %s6 = inlined_call_operand.hbm [shape: bf16[32,128], index: 6, kind: input, shape index: {}]
  %s7 = inlined_call_operand.vmem [shape: f32[128,32], index: 7, kind: input, shape index: {}]
  %s8 = inlined_call_operand.hbm [shape: f32[1,32], index: 8, kind: input, shape index: {}]
  %s9 = inlined_call_operand.vmem [shape: f32[32,32], index: 9, kind: input, shape index: {}]
  %s10 = inlined_call_operand.vmem [shape: f32[32,32], index: 10, kind: input, shape index: {}]
  %s11 = inlined_call_operand.hbm [shape: f32[1,32], index: 11, kind: input, shape index: {}]
  %s12 = inlined_call_operand.hbm [shape: f32[32,32], index: 12, kind: input, shape index: {}]
  %s13 = inlined_call_operand.hbm [shape: f32[32,32], index: 13, kind: input, shape index: {}]
  %s14 = inlined_call_operand.hbm [shape: f32[1,32], index: 14, kind: input, shape index: {}]
  %s15 = inlined_call_operand.vmem [shape: f32[1,32], index: 15, kind: input, shape index: {}]
  %s16 = inlined_call_operand.<no memory space> [shape: f32[1,1], index: 16, kind: input, shape index: {}]
  %s17 = inlined_call_operand.hbm [shape: bf16[32,128], index: 17, kind: input, shape index: {}]
  %s18 = inlined_call_operand.hbm [shape: f32[1,128], index: 18, kind: input, shape index: {}]
  %s19 = inlined_call_operand.hbm [shape: f32[8,8,128], index: 19, kind: output, shape index: {}]
  %s20 = sld [smem:[#allocation0]]
  $region118: #{forward.1} parent=0
    _
  %s22 = ssub.s32 1, %s20
  %s23 = scalar_select 0, %s22, %s20
  %v24 = vstv %s16
  %25 = vst [vmem:[#allocation2] sm:$0x1] %v24
  $region1: #{forward.1} parent=0
    #allocation3 [shape = 'u8[8192]{0}', space=vmem, size = 0x2000, scoped, tag = 'input window, operand 6, single buffered']
    #allocation4 [shape = 's32[1]{0}', space=sflag, size = 0x4, scoped, tag = 'scoped memory for forward.1']
    #allocation5 [shape = 's32[1]{0}', space=sflag, size = 0x4, scoped, tag = 'scoped memory for forward.1']
    #allocation6 [shape = 'u8[512]{0}', space=vmem, size = 0x400, scoped, tag = 'input window, operand 8, single buffered']
    #allocation7 [shape = 's32[1]{0}', space=sflag, size = 0x4, scoped, tag = 'scoped memory for forward.1']
    #allocation8 [shape = 'u8[512]{0}', space=vmem, size = 0x400, scoped, tag = 'input window, operand 11, single buffered']
    #allocation9 [shape = 'u8[16384]{0}', space=vmem, size = 0x4000, scoped, tag = 'input window, operand 12, single buffered']
    #allocation10 [shape = 's32[1]{0}', space=sflag, size = 0x4, scoped, tag = 'scoped memory for forward.1']
    #allocation11 [shape = 'u8[16384]{0}', space=vmem, size = 0x4000, scoped, tag = 'input window, operand 13, single buffered']
    #allocation12 [shape = 'u8[512]{0}', space=vmem, size = 0x400, scoped, tag = 'input window, operand 14, single buffered']
    #allocation13 [shape = 's32[1]{0}', space=sflag, size = 0x4, scoped, tag = 'scoped memory for forward.1']
    #allocation14 [shape = 'u8[8192]{0}', space=vmem, size = 0x2000, scoped, tag = 'input window, operand 17, single buffered']
    #allocation15 [shape = 'u8[512]{0}', space=vmem, size = 0x400, scoped, tag = 'input window, operand 18, single buffered']
    #allocation16 [shape = 's32[1]{0}', space=sflag, size = 0x4, scoped, tag = 'scoped memory for forward.1']
    #allocation17 [shape = 'u8[32768]{0}', space=vmem, size = 0x8000, scoped, tag = 'output window, operand 0, single buffered']
    %26 = vsyncpa [#allocation4], 0
    %27 = vsyncpa [#allocation7], 0
    %28 = vsyncpa [#allocation10], 0
    %29 = vsyncpa [#allocation13], 0
    %30 = vsyncpa [#allocation16], 0
    %31 = vsyncpa [#allocation5], 0
    // Predicated region
    $region2: #{forward.1} parent=1 // pred_check
      _
    $region3: #{forward.1} parent=1 // pred_check_branch
      %33 = sbr.rel (0) target = $region5
    $region4: #{forward.1} parent=1 // pred_region
      _
    $region5: #{forward.1} parent=1 // pred_fallthru
      _
    // Predicated region
    $region6: #{forward.1} parent=1 // pred_check
      _
    $region7: #{forward.1} parent=1 // pred_check_branch
      %35 = sbr.rel (0) target = $region9
    $region8: #{forward.1} parent=1 // pred_region
      _
    $region9: #{forward.1} parent=1 // pred_fallthru
      _
    // Predicated region
    $region10: #{forward.1} parent=1 // pred_check
      _
    $region11: #{forward.1} parent=1 // pred_check_branch
      %37 = sbr.rel (0) target = $region13
    $region12: #{forward.1} parent=1 // pred_region
      _
    $region13: #{forward.1} parent=1 // pred_fallthru
      _
    // Predicated region
    $region14: #{forward.1} parent=1 // pred_check
      _
    $region15: #{forward.1} parent=1 // pred_check_branch
      %39 = sbr.rel (0) target = $region17
    $region16: #{forward.1} parent=1 // pred_region
      _
    $region17: #{forward.1} parent=1 // pred_fallthru
      _
    // Predicated region
    $region18: #{forward.1} parent=1 // pred_check
      _
    $region19: #{forward.1} parent=1 // pred_check_branch
      %41 = sbr.rel (0) target = $region21
    $region20: #{forward.1} parent=1 // pred_region
      _
    $region21: #{forward.1} parent=1 // pred_fallthru
      _
    // Predicated region
    $region22: #{forward.1} parent=1 // pred_check
      _
    $region23: #{forward.1} parent=1 // pred_check_branch
      %43 = sbr.rel (0) target = $region25
    $region24: #{forward.1} parent=1 // pred_region
      _
    $region25: #{forward.1} parent=1 // pred_fallthru
      _
    // Predicated region
    $region26: #{forward.1} parent=1 // pred_check
      _
    $region27: #{forward.1} parent=1 // pred_check_branch
      %45 = sbr.rel (0) target = $region29
    $region28: #{forward.1} parent=1 // pred_region
      %s47 = ssub.s32 256, 256
      %48 = vsyncadd [#allocation4], %s47
      %s49 = sshll.u32 [#allocation3], 4
      %s50 = int_to_ptr.vmem [resolvable:$true] %s49
      %55 = dma.hbm_to_vmem [thread:$0]  %s6, 256, %s50, [#allocation4], 64, 64, 4
    $region29: #{forward.1} parent=1 // pred_fallthru
      _
    // Predicated region
    $region30: #{forward.1} parent=1 // pred_check
      _
    $region31: #{forward.1} parent=1 // pred_check_branch
      %57 = sbr.rel (0) target = $region33
    $region32: #{forward.1} parent=1 // pred_region
      _
    $region33: #{forward.1} parent=1 // pred_fallthru
      _
    // Predicated region
    $region34: #{forward.1} parent=1 // pred_check
      _
    $region35: #{forward.1} parent=1 // pred_check_branch
      %59 = sbr.rel (0) target = $region37
    $region36: #{forward.1} parent=1 // pred_region
      %s61 = ssub.s32 16, 16
      %62 = vsyncadd [#allocation7], %s61
      %s64 = sshll.u32 [#allocation6], 4
      %s65 = int_to_ptr.vmem [resolvable:$true] %s64
      %67 = dma.hbm_to_vmem [thread:$0]  %s8, 16, %s65, [#allocation7]
    $region37: #{forward.1} parent=1 // pred_fallthru
      _
    // Predicated region
    $region38: #{forward.1} parent=1 // pred_check
      _
    $region39: #{forward.1} parent=1 // pred_check_branch
      %69 = sbr.rel (0) target = $region41
    $region40: #{forward.1} parent=1 // pred_region
      _
    $region41: #{forward.1} parent=1 // pred_fallthru
      _
    // Predicated region
    $region42: #{forward.1} parent=1 // pred_check
      _
    $region43: #{forward.1} parent=1 // pred_check_branch
      %71 = sbr.rel (0) target = $region45
    $region44: #{forward.1} parent=1 // pred_region
      _
    $region45: #{forward.1} parent=1 // pred_fallthru
      _
    // Predicated region
    $region46: #{forward.1} parent=1 // pred_check
      _
    $region47: #{forward.1} parent=1 // pred_check_branch
      %73 = sbr.rel (0) target = $region49
    $region48: #{forward.1} parent=1 // pred_region
      %s75 = ssub.s32 16, 16
      %76 = vsyncadd [#allocation7], %s75
      %s78 = sshll.u32 [#allocation8], 4
      %s79 = int_to_ptr.vmem [resolvable:$true] %s78
      %81 = dma.hbm_to_vmem [thread:$0]  %s11, 16, %s79, [#allocation7]
    $region49: #{forward.1} parent=1 // pred_fallthru
      _
    // Predicated region
    $region50: #{forward.1} parent=1 // pred_check
      _
    $region51: #{forward.1} parent=1 // pred_check_branch
      %83 = sbr.rel (0) target = $region53
    $region52: #{forward.1} parent=1 // pred_region
      %s85 = ssub.s32 512, 512
      %86 = vsyncadd [#allocation10], %s85
      %s87 = sshll.u32 [#allocation9], 4
      %s88 = int_to_ptr.vmem [resolvable:$true] %s87
      %93 = dma.hbm_to_vmem [thread:$0]  %s12, 512, %s88, [#allocation10], 128, 128, 8
    $region53: #{forward.1} parent=1 // pred_fallthru
      _
    // Predicated region
    $region54: #{forward.1} parent=1 // pred_check
      _
    $region55: #{forward.1} parent=1 // pred_check_branch
      %95 = sbr.rel (0) target = $region57
    $region56: #{forward.1} parent=1 // pred_region
      %s97 = ssub.s32 512, 512
      %98 = vsyncadd [#allocation10], %s97
      %s99 = sshll.u32 [#allocation11], 4
      %s100 = int_to_ptr.vmem [resolvable:$true] %s99
      %105 = dma.hbm_to_vmem [thread:$0]  %s13, 512, %s100, [#allocation10], 128, 128, 8
    $region57: #{forward.1} parent=1 // pred_fallthru
      _
    // Predicated region
    $region58: #{forward.1} parent=1 // pred_check
      _
    $region59: #{forward.1} parent=1 // pred_check_branch
      %107 = sbr.rel (0) target = $region61
    $region60: #{forward.1} parent=1 // pred_region
      %s109 = ssub.s32 16, 16
      %110 = vsyncadd [#allocation13], %s109
      %s112 = sshll.u32 [#allocation12], 4
      %s113 = int_to_ptr.vmem [resolvable:$true] %s112
      %115 = dma.hbm_to_vmem [thread:$0]  %s14, 16, %s113, [#allocation13]
    $region61: #{forward.1} parent=1 // pred_fallthru
      _
    // Predicated region
    $region62: #{forward.1} parent=1 // pred_check
      _
    $region63: #{forward.1} parent=1 // pred_check_branch
      %117 = sbr.rel (0) target = $region65
    $region64: #{forward.1} parent=1 // pred_region
      _
    $region65: #{forward.1} parent=1 // pred_fallthru
      _
    // Predicated region
    $region66: #{forward.1} parent=1 // pred_check
      _
    $region67: #{forward.1} parent=1 // pred_check_branch
      %119 = sbr.rel (0) target = $region69
    $region68: #{forward.1} parent=1 // pred_region
      _
    $region69: #{forward.1} parent=1 // pred_fallthru
      _
    // Predicated region
    $region70: #{forward.1} parent=1 // pred_check
      _
    $region71: #{forward.1} parent=1 // pred_check_branch
      %121 = sbr.rel (0) target = $region73
    $region72: #{forward.1} parent=1 // pred_region
      %s123 = ssub.s32 256, 256
      %124 = vsyncadd [#allocation13], %s123
      %s125 = sshll.u32 [#allocation14], 4
      %s126 = int_to_ptr.vmem [resolvable:$true] %s125
      %131 = dma.hbm_to_vmem [thread:$0]  %s17, 256, %s126, [#allocation13], 64, 64, 4
    $region73: #{forward.1} parent=1 // pred_fallthru
      _
    // Predicated region
    $region74: #{forward.1} parent=1 // pred_check
      _
    $region75: #{forward.1} parent=1 // pred_check_branch
      %133 = sbr.rel (0) target = $region77
    $region76: #{forward.1} parent=1 // pred_region
      %s135 = ssub.s32 16, 16
      %136 = vsyncadd [#allocation16], %s135
      %s138 = sshll.u32 [#allocation15], 4
      %s139 = int_to_ptr.vmem [resolvable:$true] %s138
      %141 = dma.hbm_to_vmem [thread:$0]  %s18, 16, %s139, [#allocation16]
    $region77: #{forward.1} parent=1 // pred_fallthru
      _
    // Predicated region
    $region78: #{forward.1} parent=1 // pred_check
      _
    $region79: #{forward.1} parent=1 // pred_check_branch
      %143 = sbr.rel (0) target = $region81
    $region80: #{forward.1} parent=1 // pred_region
      %144 = dma.done [#allocation4], 256
    $region81: #{forward.1} parent=1 // pred_fallthru
      _
    // Predicated region
    $region82: #{forward.1} parent=1 // pred_check
      _
    $region83: #{forward.1} parent=1 // pred_check_branch
      %146 = sbr.rel (0) target = $region85
    $region84: #{forward.1} parent=1 // pred_region
      %147 = dma.done [#allocation7], 16
    $region85: #{forward.1} parent=1 // pred_fallthru
      _
    // Predicated region
    $region86: #{forward.1} parent=1 // pred_check
      _
    $region87: #{forward.1} parent=1 // pred_check_branch
      %149 = sbr.rel (0) target = $region89
    $region88: #{forward.1} parent=1 // pred_region
      %150 = dma.done [#allocation7], 16
    $region89: #{forward.1} parent=1 // pred_fallthru
      _
    // Predicated region
    $region90: #{forward.1} parent=1 // pred_check
      _
    $region91: #{forward.1} parent=1 // pred_check_branch
      %152 = sbr.rel (0) target = $region93
    $region92: #{forward.1} parent=1 // pred_region
      %153 = dma.done [#allocation10], 512
    $region93: #{forward.1} parent=1 // pred_fallthru
      _
    // Predicated region
    $region94: #{forward.1} parent=1 // pred_check
      _
    $region95: #{forward.1} parent=1 // pred_check_branch
      %155 = sbr.rel (0) target = $region97
    $region96: #{forward.1} parent=1 // pred_region
      %156 = dma.done [#allocation10], 512
    $region97: #{forward.1} parent=1 // pred_fallthru
      _
    // Predicated region
    $region98: #{forward.1} parent=1 // pred_check
      _
    $region99: #{forward.1} parent=1 // pred_check_branch
      %158 = sbr.rel (0) target = $region101
    $region100: #{forward.1} parent=1 // pred_region
      %159 = dma.done [#allocation13], 16
    $region101: #{forward.1} parent=1 // pred_fallthru
      _
    // Predicated region
    $region102: #{forward.1} parent=1 // pred_check
      _
    $region103: #{forward.1} parent=1 // pred_check_branch
      %161 = sbr.rel (0) target = $region105
    $region104: #{forward.1} parent=1 // pred_region
      %162 = dma.done [#allocation13], 256
    $region105: #{forward.1} parent=1 // pred_fallthru
      _
    // Predicated region
    $region106: #{forward.1} parent=1 // pred_check
      _
    $region107: #{forward.1} parent=1 // pred_check_branch
      %164 = sbr.rel (0) target = $region109
    $region108: #{forward.1} parent=1 // pred_region
      %165 = dma.done [#allocation16], 16
    $region109: #{forward.1} parent=1 // pred_fallthru
      _
    %v167 = vld [vmem:[%s0] sm:$0xff]
    %v168 = vld [vmem:[%s0 + $0x8] sm:$0xff]
    %v169 = vld [vmem:[%s0 + $0x10] sm:$0xff]
    %v170 = vld [vmem:[%s0 + $0x18] sm:$0xff]
    %v171 = vld [vmem:[%s0 + $0x20] sm:$0xff]
    %v172 = vld [vmem:[%s0 + $0x28] sm:$0xff]
    %v173 = vld [vmem:[%s0 + $0x30] sm:$0xff]
    %v174 = vld [vmem:[%s0 + $0x38] sm:$0xff]
    %v175 = vld [vmem:[%s0 + $0x40] sm:$0xff]
    %v176 = vld [vmem:[%s0 + $0x48] sm:$0xff]
    %v177 = vld [vmem:[%s0 + $0x50] sm:$0xff]
    %v178 = vld [vmem:[%s0 + $0x58] sm:$0xff]
    %v179 = vld [vmem:[%s1] sm:$0xff]
    %v180 = vld [vmem:[%s1 + $0x8] sm:$0xff]
    %v181 = vld [vmem:[%s1 + $0x10] sm:$0xff]
    %v182 = vld [vmem:[%s1 + $0x18] sm:$0xff]
    %v183 = vld [vmem:[%s1 + $0x20] sm:$0xff]
    %v184 = vld [vmem:[%s1 + $0x28] sm:$0xff]
    %v185 = vld [vmem:[%s1 + $0x30] sm:$0xff]
    %v186 = vlaneseq
    %v187 = vand.u32 %v186, 127
    %188 = vset.pattern.permute.xlu0 0
    %189 = vperm.xlu0 %188, %v167
    %v190 = vpop.permute.xlu0 %189
    %191 = vset.pattern.permute.xlu0 0
    %192 = vperm.xlu0 %191, %v168
    %v193 = vpop.permute.xlu0 %192
    %194 = vset.pattern.permute.xlu0 0
    %195 = vperm.xlu0 %194, %v169
    %v196 = vpop.permute.xlu0 %195
    %197 = vset.pattern.permute.xlu0 0
    %198 = vperm.xlu0 %197, %v170
    %v199 = vpop.permute.xlu0 %198
    %200 = vset.pattern.permute.xlu0 0
    %201 = vperm.xlu0 %200, %v171
    %v202 = vpop.permute.xlu0 %201
    %203 = vset.pattern.permute.xlu0 0
    %204 = vperm.xlu0 %203, %v172
    %v205 = vpop.permute.xlu0 %204
    %206 = vset.pattern.permute.xlu0 0
    %207 = vperm.xlu0 %206, %v173
    %v208 = vpop.permute.xlu0 %207
    %209 = vset.pattern.permute.xlu0 0
    %210 = vperm.xlu0 %209, %v174
    %v211 = vpop.permute.xlu0 %210
    %212 = vset.pattern.permute.xlu0 0
    %213 = vperm.xlu0 %212, %v175
    %v214 = vpop.permute.xlu0 %213
    %215 = vset.pattern.permute.xlu0 0
    %216 = vperm.xlu0 %215, %v176
    %v217 = vpop.permute.xlu0 %216
    %218 = vset.pattern.permute.xlu0 0
    %219 = vperm.xlu0 %218, %v177
    %v220 = vpop.permute.xlu0 %219
    %221 = vset.pattern.permute.xlu0 0
    %222 = vperm.xlu0 %221, %v178
    %v223 = vpop.permute.xlu0 %222
    %vm224 = vcmp.eq.s32.totalorder %v190, %v187
    %vm225 = vcmp.eq.s32.totalorder %v193, %v187
    %vm226 = vcmp.eq.s32.totalorder %v196, %v187
    %vm227 = vcmp.eq.s32.totalorder %v199, %v187
    %vm228 = vcmp.eq.s32.totalorder %v202, %v187
    %vm229 = vcmp.eq.s32.totalorder %v205, %v187
    %vm230 = vcmp.eq.s32.totalorder %v208, %v187
    %vm231 = vcmp.eq.s32.totalorder %v211, %v187
    %vm232 = vcmp.eq.s32.totalorder %v214, %v187
    %vm233 = vcmp.eq.s32.totalorder %v217, %v187
    %vm234 = vcmp.eq.s32.totalorder %v220, %v187
    %vm235 = vcmp.eq.s32.totalorder %v223, %v187
    %v236 = vsel %vm224, 1, 0
    %v237 = vsel %vm225, 1, 0
    %v238 = vsel %vm226, 1, 0
    %v239 = vsel %vm227, 1, 0
    %v240 = vsel %vm228, 1, 0
    %v241 = vsel %vm229, 1, 0
    %v242 = vsel %vm230, 1, 0
    %v243 = vsel %vm231, 1, 0
    %v244 = vsel %vm232, 1, 0
    %v245 = vsel %vm233, 1, 0
    %v246 = vsel %vm234, 1, 0
    %v247 = vsel %vm235, 1, 0
    %v248 = vcvt.s32.f32 %v236
    %v249 = vcvt.s32.f32 %v237
    %v250 = vcvt.s32.f32 %v238
    %v251 = vcvt.s32.f32 %v239
    %v252 = vcvt.s32.f32 %v240
    %v253 = vcvt.s32.f32 %v241
    %v254 = vcvt.s32.f32 %v242
    %v255 = vcvt.s32.f32 %v243
    %v256 = vcvt.s32.f32 %v244
    %v257 = vcvt.s32.f32 %v245
    %v258 = vcvt.s32.f32 %v246
    %v259 = vcvt.s32.f32 %v247
    %260 = vset.pattern.permute.xlu0 0
    %261 = vperm.xlu0 %260, %v179
    %v262 = vpop.permute.xlu0 %261
    %263 = vset.pattern.permute.xlu0 0
    %264 = vperm.xlu0 %263, %v180
    %v265 = vpop.permute.xlu0 %264
    %266 = vset.pattern.permute.xlu0 0
    %267 = vperm.xlu0 %266, %v181
    %v268 = vpop.permute.xlu0 %267
    %269 = vset.pattern.permute.xlu0 0
    %270 = vperm.xlu0 %269, %v182
    %v271 = vpop.permute.xlu0 %270
    %272 = vset.pattern.permute.xlu0 0
    %273 = vperm.xlu0 %272, %v183
    %v274 = vpop.permute.xlu0 %273
    %275 = vset.pattern.permute.xlu0 0
    %276 = vperm.xlu0 %275, %v184
    %v277 = vpop.permute.xlu0 %276
    %278 = vset.pattern.permute.xlu0 0
    %279 = vperm.xlu0 %278, %v185
    %v280 = vpop.permute.xlu0 %279
    %vm281 = vcmp.eq.s32.totalorder %v262, %v187
    %vm282 = vcmp.eq.s32.totalorder %v265, %v187
    %vm283 = vcmp.eq.s32.totalorder %v268, %v187
    %vm284 = vcmp.eq.s32.totalorder %v271, %v187
    %vm285 = vcmp.eq.s32.totalorder %v274, %v187
    %vm286 = vcmp.eq.s32.totalorder %v277, %v187
    %vm287 = vcmp.eq.s32.totalorder %v280, %v187
    %v288 = vsel %vm281, 1, 0
    %v289 = vsel %vm282, 1, 0
    %v290 = vsel %vm283, 1, 0
    %v291 = vsel %vm284, 1, 0
    %v292 = vsel %vm285, 1, 0
    %v293 = vsel %vm286, 1, 0
    %v294 = vsel %vm287, 1, 0
    %v295 = vcvt.s32.f32 %v288
    %v296 = vcvt.s32.f32 %v289
    %v297 = vcvt.s32.f32 %v290
    %v298 = vcvt.s32.f32 %v291
    %v299 = vcvt.s32.f32 %v292
    %v300 = vcvt.s32.f32 %v293
    %v301 = vcvt.s32.f32 %v294
    %v302 = vld [vmem:[%s3] sm:$0xff]
    %v303 = vld [vmem:[%s3 + $0x8] sm:$0xff]
    %v304 = vld [vmem:[%s3 + $0x10] sm:$0xff]
    %v305 = vld [vmem:[%s3 + $0x18] sm:$0xff]
    %v306 = vld [vmem:[%s3 + $0x20] sm:$0xff]
    %v307 = vld [vmem:[%s3 + $0x28] sm:$0xff]
    %v308 = vld [vmem:[%s3 + $0x30] sm:$0xff]
    %v309 = vld [vmem:[%s3 + $0x38] sm:$0xff]
    %v310 = vld [vmem:[%s3 + $0x40] sm:$0xff]
    %v311 = vld [vmem:[%s3 + $0x48] sm:$0xff]
    %v312 = vld [vmem:[%s3 + $0x50] sm:$0xff]
    %v313 = vld [vmem:[%s3 + $0x58] sm:$0xff]
    %v314 = vld [vmem:[%s3 + $0x60] sm:$0xff]
    %v315 = vld [vmem:[%s3 + $0x68] sm:$0xff]
    %v316 = vld [vmem:[%s3 + $0x70] sm:$0xff]
    %v317 = vld [vmem:[%s3 + $0x78] sm:$0xff]
    %318 = vmatprep.subr.mxu0 0.0
    %319 = vmatpush1.msra.mxu0 %v317
    %320 = vmatprep.subr.mxu0 0.0
    %321 = vmatpush1.msra.mxu0 %v316
    %322 = vmatprep.subr.mxu0 0.0
    %323 = vmatpush1.msra.mxu0 %v315
    %324 = vmatprep.subr.mxu0 0.0
    %325 = vmatpush1.msra.mxu0 %v314
    %326 = vmatprep.subr.mxu0 0.0
    %327 = vmatpush1.msra.mxu0 %v313
    %328 = vmatprep.subr.mxu0 0.0
    %329 = vmatpush1.msra.mxu0 %v312
    %330 = vmatprep.subr.mxu0 0.0
    %331 = vmatpush1.msra.mxu0 %v311
    %332 = vmatprep.subr.mxu0 0.0
    %333 = vmatpush1.msra.mxu0 %v310
    %334 = vmatprep.subr.mxu0 0.0
    %335 = vmatpush1.msra.mxu0 %v309
    %336 = vmatprep.subr.mxu0 0.0
    %337 = vmatpush1.msra.mxu0 %v308
    %338 = vmatprep.subr.mxu0 0.0
    %339 = vmatpush1.msra.mxu0 %v307
    %340 = vmatprep.subr.mxu0 0.0
    %341 = vmatpush1.msra.mxu0 %v306
    %342 = vmatprep.subr.mxu0 0.0
    %343 = vmatpush1.msra.mxu0 %v305
    %344 = vmatprep.subr.mxu0 0.0
    %345 = vmatpush1.msra.mxu0 %v304
    %346 = vmatprep.subr.mxu0 0.0
    %347 = vmatpush1.msra.mxu0 %v303
    %348 = vmatprep.subr.mxu0 0.0
    %349 = vmatpush1.msra.mxu0 %v302
    %350 = vmatprep.subr.mxu0 0.0
    %351 = vmatpush2.msra.mxu0 0.0
    %352 = vmatprep.subr.mxu0 0.0
    %353 = vmatpush2.msra.mxu0 0.0
    %354 = vmatprep.subr.mxu0 0.0
    %355 = vmatpush2.msra.mxu0 0.0
    %356 = vmatprep.subr.mxu0 0.0
    %357 = vmatpush2.msra.mxu0 0.0
    %358 = vmatprep.subr.mxu0 0.0
    %359 = vmatpush2.msra.mxu0 0.0
    %360 = vmatprep.subr.mxu0 0.0
    %361 = vmatpush2.msra.mxu0 0.0
    %362 = vmatprep.subr.mxu0 0.0
    %363 = vmatpush2.msra.mxu0 0.0
    %364 = vmatprep.subr.mxu0 0.0
    %365 = vmatpush2.msra.mxu0 0.0
    %366 = vmatprep.subr.mxu0 0.0
    %367 = vmatpush2.msra.mxu0 0.0
    %368 = vmatprep.subr.mxu0 0.0
    %369 = vmatpush2.msra.mxu0 0.0
    %370 = vmatprep.subr.mxu0 0.0
    %371 = vmatpush2.msra.mxu0 0.0
    %372 = vmatprep.subr.mxu0 0.0
    %373 = vmatpush2.msra.mxu0 0.0
    %374 = vmatprep.subr.mxu0 0.0
    %375 = vmatpush2.msra.mxu0 0.0
    %376 = vmatprep.subr.mxu0 0.0
    %377 = vmatpush2.msra.mxu0 0.0
    %378 = vmatprep.subr.mxu0 0.0
    %379 = vmatpush2.msra.mxu0 0.0
    %380 = vmatprep.subr.mxu0 0.0
    %381 = vmatpush2.msra.mxu0 0.0
    %382 = vmatprep.mubr.f32.mxu0 0.0
    %383 = vmatmul.mubr.f32.gmra.mxu0 %v248
    %v384 = vpop.f32.mrf.mxu0
    %v385 = vadd.f32 0.0, %v384
    %v386 = vpop.f32.mrf.mxu0
    %387 = vmatprep.mubr.f32.mxu0 0.0
    %388 = vmatmul.mubr.f32.gmra.mxu0 %v249
    %v389 = vpop.f32.mrf.mxu0
    %v390 = vadd.f32 0.0, %v389
    %v391 = vpop.f32.mrf.mxu0
    %392 = vmatprep.mubr.f32.mxu0 0.0
    %393 = vmatmul.mubr.f32.gmra.mxu0 %v250
    %v394 = vpop.f32.mrf.mxu0
    %v395 = vadd.f32 0.0, %v394
    %v396 = vpop.f32.mrf.mxu0
    %397 = vmatprep.mubr.f32.mxu0 0.0
    %398 = vmatmul.mubr.f32.gmra.mxu0 %v251
    %v399 = vpop.f32.mrf.mxu0
    %v400 = vadd.f32 0.0, %v399
    %v401 = vpop.f32.mrf.mxu0
    %402 = vmatprep.mubr.f32.mxu0 0.0
    %403 = vmatmul.mubr.f32.gmra.mxu0 %v252
    %v404 = vpop.f32.mrf.mxu0
    %v405 = vadd.f32 0.0, %v404
    %v406 = vpop.f32.mrf.mxu0
    %407 = vmatprep.mubr.f32.mxu0 0.0
    %408 = vmatmul.mubr.f32.gmra.mxu0 %v253
    %v409 = vpop.f32.mrf.mxu0
    %v410 = vadd.f32 0.0, %v409
    %v411 = vpop.f32.mrf.mxu0
    %412 = vmatprep.mubr.f32.mxu0 0.0
    %413 = vmatmul.mubr.f32.gmra.mxu0 %v254
    %v414 = vpop.f32.mrf.mxu0
    %v415 = vadd.f32 0.0, %v414
    %v416 = vpop.f32.mrf.mxu0
    %417 = vmatprep.mubr.f32.mxu0 0.0
    %418 = vmatmul.mubr.f32.gmra.mxu0 %v255
    %v419 = vpop.f32.mrf.mxu0
    %v420 = vadd.f32 0.0, %v419
    %v421 = vpop.f32.mrf.mxu0
    %422 = vmatprep.mubr.f32.mxu0 0.0
    %423 = vmatmul.mubr.f32.gmra.mxu0 %v256
    %v424 = vpop.f32.mrf.mxu0
    %v425 = vadd.f32 0.0, %v424
    %v426 = vpop.f32.mrf.mxu0
    %427 = vmatprep.mubr.f32.mxu0 0.0
    %428 = vmatmul.mubr.f32.gmra.mxu0 %v257
    %v429 = vpop.f32.mrf.mxu0
    %v430 = vadd.f32 0.0, %v429
    %v431 = vpop.f32.mrf.mxu0
    %432 = vmatprep.mubr.f32.mxu0 0.0
    %433 = vmatmul.mubr.f32.gmra.mxu0 %v258
    %v434 = vpop.f32.mrf.mxu0
    %v435 = vadd.f32 0.0, %v434
    %v436 = vpop.f32.mrf.mxu0
    %437 = vmatprep.mubr.f32.mxu0 0.0
    %438 = vmatmul.mubr.f32.gmra.mxu0 %v259
    %v439 = vpop.f32.mrf.mxu0
    %v440 = vadd.f32 0.0, %v439
    %v441 = vpop.f32.mrf.mxu0
    %442 = vdwg.mxu0
    %v443 = vld [vmem:[%s4] sm:$0xff]
    %v444 = vld [vmem:[%s4 + $0x8] sm:$0xff]
    %v445 = vld [vmem:[%s4 + $0x10] sm:$0xff]
    %v446 = vld [vmem:[%s4 + $0x18] sm:$0xff]
    %v447 = vld [vmem:[%s4 + $0x20] sm:$0xff]
    %v448 = vld [vmem:[%s4 + $0x28] sm:$0xff]
    %v449 = vld [vmem:[%s4 + $0x30] sm:$0xff]
    %v450 = vld [vmem:[%s4 + $0x38] sm:$0xff]
    %v451 = vld [vmem:[%s4 + $0x40] sm:$0xff]
    %v452 = vld [vmem:[%s4 + $0x48] sm:$0xff]
    %v453 = vld [vmem:[%s4 + $0x50] sm:$0xff]
    %v454 = vld [vmem:[%s4 + $0x58] sm:$0xff]
    %v455 = vld [vmem:[%s4 + $0x60] sm:$0xff]
    %v456 = vld [vmem:[%s4 + $0x68] sm:$0xff]
    %v457 = vld [vmem:[%s4 + $0x70] sm:$0xff]
    %v458 = vld [vmem:[%s4 + $0x78] sm:$0xff]
    %459 = vmatprep.subr.mxu0 0.0
    %460 = vmatpush1.msra.mxu0 %v458
    %461 = vmatprep.subr.mxu0 0.0
    %462 = vmatpush1.msra.mxu0 %v457
    %463 = vmatprep.subr.mxu0 0.0
    %464 = vmatpush1.msra.mxu0 %v456
    %465 = vmatprep.subr.mxu0 0.0
    %466 = vmatpush1.msra.mxu0 %v455
    %467 = vmatprep.subr.mxu0 0.0
    %468 = vmatpush1.msra.mxu0 %v454
    %469 = vmatprep.subr.mxu0 0.0
    %470 = vmatpush1.msra.mxu0 %v453
    %471 = vmatprep.subr.mxu0 0.0
    %472 = vmatpush1.msra.mxu0 %v452
    %473 = vmatprep.subr.mxu0 0.0
    %474 = vmatpush1.msra.mxu0 %v451
    %475 = vmatprep.subr.mxu0 0.0
    %476 = vmatpush1.msra.mxu0 %v450
    %477 = vmatprep.subr.mxu0 0.0
    %478 = vmatpush1.msra.mxu0 %v449
    %479 = vmatprep.subr.mxu0 0.0
    %480 = vmatpush1.msra.mxu0 %v448
    %481 = vmatprep.subr.mxu0 0.0
    %482 = vmatpush1.msra.mxu0 %v447
    %483 = vmatprep.subr.mxu0 0.0
    %484 = vmatpush1.msra.mxu0 %v446
    %485 = vmatprep.subr.mxu0 0.0
    %486 = vmatpush1.msra.mxu0 %v445
    %487 = vmatprep.subr.mxu0 0.0
    %488 = vmatpush1.msra.mxu0 %v444
    %489 = vmatprep.subr.mxu0 0.0
    %490 = vmatpush1.msra.mxu0 %v443
    %491 = vmatprep.subr.mxu0 0.0
    %492 = vmatpush2.msra.mxu0 0.0
    %493 = vmatprep.subr.mxu0 0.0
    %494 = vmatpush2.msra.mxu0 0.0
    %495 = vmatprep.subr.mxu0 0.0
    %496 = vmatpush2.msra.mxu0 0.0
    %497 = vmatprep.subr.mxu0 0.0
    %498 = vmatpush2.msra.mxu0 0.0
    %499 = vmatprep.subr.mxu0 0.0
    %500 = vmatpush2.msra.mxu0 0.0
    %501 = vmatprep.subr.mxu0 0.0
    %502 = vmatpush2.msra.mxu0 0.0
    %503 = vmatprep.subr.mxu0 0.0
    %504 = vmatpush2.msra.mxu0 0.0
    %505 = vmatprep.subr.mxu0 0.0
    %506 = vmatpush2.msra.mxu0 0.0
    %507 = vmatprep.subr.mxu0 0.0
    %508 = vmatpush2.msra.mxu0 0.0
    %509 = vmatprep.subr.mxu0 0.0
    %510 = vmatpush2.msra.mxu0 0.0
    %511 = vmatprep.subr.mxu0 0.0
    %512 = vmatpush2.msra.mxu0 0.0
    %513 = vmatprep.subr.mxu0 0.0
    %514 = vmatpush2.msra.mxu0 0.0
    %515 = vmatprep.subr.mxu0 0.0
    %516 = vmatpush2.msra.mxu0 0.0
    %517 = vmatprep.subr.mxu0 0.0
    %518 = vmatpush2.msra.mxu0 0.0
    %519 = vmatprep.subr.mxu0 0.0
    %520 = vmatpush2.msra.mxu0 0.0
    %521 = vmatprep.subr.mxu0 0.0
    %522 = vmatpush2.msra.mxu0 0.0
    %523 = vmatprep.mubr.f32.mxu0 0.0
    %524 = vmatmul.mubr.f32.gmra.mxu0 %v295
    %v525 = vpop.f32.mrf.mxu0
    %v526 = vadd.f32 0.0, %v525
    %v527 = vpop.f32.mrf.mxu0
    %528 = vmatprep.mubr.f32.mxu0 0.0
    %529 = vmatmul.mubr.f32.gmra.mxu0 %v296
    %v530 = vpop.f32.mrf.mxu0
    %v531 = vadd.f32 0.0, %v530
    %v532 = vpop.f32.mrf.mxu0
    %533 = vmatprep.mubr.f32.mxu0 0.0
    %534 = vmatmul.mubr.f32.gmra.mxu0 %v297
    %v535 = vpop.f32.mrf.mxu0
    %v536 = vadd.f32 0.0, %v535
    %v537 = vpop.f32.mrf.mxu0
    %538 = vmatprep.mubr.f32.mxu0 0.0
    %539 = vmatmul.mubr.f32.gmra.mxu0 %v298
    %v540 = vpop.f32.mrf.mxu0
    %v541 = vadd.f32 0.0, %v540
    %v542 = vpop.f32.mrf.mxu0
    %543 = vmatprep.mubr.f32.mxu0 0.0
    %544 = vmatmul.mubr.f32.gmra.mxu0 %v299
    %v545 = vpop.f32.mrf.mxu0
    %v546 = vadd.f32 0.0, %v545
    %v547 = vpop.f32.mrf.mxu0
    %548 = vmatprep.mubr.f32.mxu0 0.0
    %549 = vmatmul.mubr.f32.gmra.mxu0 %v300
    %v550 = vpop.f32.mrf.mxu0
    %v551 = vadd.f32 0.0, %v550
    %v552 = vpop.f32.mrf.mxu0
    %553 = vmatprep.mubr.f32.mxu0 0.0
    %554 = vmatmul.mubr.f32.gmra.mxu0 %v301
    %v555 = vpop.f32.mrf.mxu0
    %v556 = vadd.f32 0.0, %v555
    %v557 = vpop.f32.mrf.mxu0
    %558 = vdwg.mxu0
    %v559 = vld [vmem:[%s2] sm:$0xff]
    %v560 = vld [vmem:[%s7] sm:$0xff]
    %v561 = vld [vmem:[%s7 + $0x8] sm:$0xff]
    %v562 = vld [vmem:[%s7 + $0x10] sm:$0xff]
    %v563 = vld [vmem:[%s7 + $0x18] sm:$0xff]
    %v564 = vld [vmem:[%s7 + $0x20] sm:$0xff]
    %v565 = vld [vmem:[%s7 + $0x28] sm:$0xff]
    %v566 = vld [vmem:[%s7 + $0x30] sm:$0xff]
    %v567 = vld [vmem:[%s7 + $0x38] sm:$0xff]
    %v568 = vld [vmem:[%s7 + $0x40] sm:$0xff]
    %v569 = vld [vmem:[%s7 + $0x48] sm:$0xff]
    %v570 = vld [vmem:[%s7 + $0x50] sm:$0xff]
    %v571 = vld [vmem:[%s7 + $0x58] sm:$0xff]
    %v572 = vld [vmem:[%s7 + $0x60] sm:$0xff]
    %v573 = vld [vmem:[%s7 + $0x68] sm:$0xff]
    %v574 = vld [vmem:[%s7 + $0x70] sm:$0xff]
    %v575 = vld [vmem:[%s7 + $0x78] sm:$0xff]
    %v576 = vld [vmem:[#allocation6] sm:$0x1]
    %v578 = vlaneseq
    %v579 = vshrl.u32 %v578, 7
    %v580 = vsub.s32 0, %v579
    %v581 = vrot.slane %v576, %v580
    %583 = vmatprep.subr.mxu0 0.0
    %584 = vmatpush1.msra.mxu0 %v575
    %585 = vmatprep.subr.mxu0 0.0
    %586 = vmatpush1.msra.mxu0 %v574
    %587 = vmatprep.subr.mxu0 0.0
    %588 = vmatpush1.msra.mxu0 %v573
    %589 = vmatprep.subr.mxu0 0.0
    %590 = vmatpush1.msra.mxu0 %v572
    %591 = vmatprep.subr.mxu0 0.0
    %592 = vmatpush1.msra.mxu0 %v571
    %593 = vmatprep.subr.mxu0 0.0
    %594 = vmatpush1.msra.mxu0 %v570
    %595 = vmatprep.subr.mxu0 0.0
    %596 = vmatpush1.msra.mxu0 %v569
    %597 = vmatprep.subr.mxu0 0.0
    %598 = vmatpush1.msra.mxu0 %v568
    %599 = vmatprep.subr.mxu0 0.0
    %600 = vmatpush1.msra.mxu0 %v567
    %601 = vmatprep.subr.mxu0 0.0
    %602 = vmatpush1.msra.mxu0 %v566
    %603 = vmatprep.subr.mxu0 0.0
    %604 = vmatpush1.msra.mxu0 %v565
    %605 = vmatprep.subr.mxu0 0.0
    %606 = vmatpush1.msra.mxu0 %v564
    %607 = vmatprep.subr.mxu0 0.0
    %608 = vmatpush1.msra.mxu0 %v563
    %609 = vmatprep.subr.mxu0 0.0
    %610 = vmatpush1.msra.mxu0 %v562
    %611 = vmatprep.subr.mxu0 0.0
    %612 = vmatpush1.msra.mxu0 %v561
    %613 = vmatprep.subr.mxu0 0.0
    %614 = vmatpush1.msra.mxu0 %v560
    %615 = vmatprep.subr.mxu0 0.0
    %616 = vmatpush2.msra.mxu0 0.0
    %617 = vmatprep.subr.mxu0 0.0
    %618 = vmatpush2.msra.mxu0 0.0
    %619 = vmatprep.subr.mxu0 0.0
    %620 = vmatpush2.msra.mxu0 0.0
    %621 = vmatprep.subr.mxu0 0.0
    %622 = vmatpush2.msra.mxu0 0.0
    %623 = vmatprep.subr.mxu0 0.0
    %624 = vmatpush2.msra.mxu0 0.0
    %625 = vmatprep.subr.mxu0 0.0
    %626 = vmatpush2.msra.mxu0 0.0
    %627 = vmatprep.subr.mxu0 0.0
    %628 = vmatpush2.msra.mxu0 0.0
    %629 = vmatprep.subr.mxu0 0.0
    %630 = vmatpush2.msra.mxu0 0.0
    %631 = vmatprep.subr.mxu0 0.0
    %632 = vmatpush2.msra.mxu0 0.0
    %633 = vmatprep.subr.mxu0 0.0
    %634 = vmatpush2.msra.mxu0 0.0
    %635 = vmatprep.subr.mxu0 0.0
    %636 = vmatpush2.msra.mxu0 0.0
    %637 = vmatprep.subr.mxu0 0.0
    %638 = vmatpush2.msra.mxu0 0.0
    %639 = vmatprep.subr.mxu0 0.0
    %640 = vmatpush2.msra.mxu0 0.0
    %641 = vmatprep.subr.mxu0 0.0
    %642 = vmatpush2.msra.mxu0 0.0
    %643 = vmatprep.subr.mxu0 0.0
    %644 = vmatpush2.msra.mxu0 0.0
    %645 = vmatprep.subr.mxu0 0.0
    %646 = vmatpush2.msra.mxu0 0.0
    %647 = vmatprep.mubr.f32.mxu0 0.0
    %648 = vmatmul.mubr.f32.gmra.mxu0 %v559
    %v649 = vpop.f32.mrf.mxu0
    %v650 = vadd.f32 %v581, %v649
    %v651 = vpop.f32.mrf.mxu0
    %652 = vdwg.mxu0
    %v653 = vmax.f32 %v650, 0.0
    %v654 = vld [vmem:[%s10] sm:$0xff]
    %v655 = vld [vmem:[%s10 + $0x8] sm:$0xff]
    %v656 = vld [vmem:[%s10 + $0x10] sm:$0xff]
    %v657 = vld [vmem:[%s10 + $0x18] sm:$0xff]
    %v658 = vld [vmem:[#allocation8] sm:$0x1]
    %v660 = vlaneseq
    %v661 = vshrl.u32 %v660, 7
    %v662 = vsub.s32 0, %v661
    %v663 = vrot.slane %v658, %v662
    %vm665 = vcmask 261120
    %v667 = vsel %vm665, %v653, 0
    %669 = vmatprep.subr.mxu0 0.0
    %670 = vmatpush1.msra.mxu0 0.0
    %671 = vmatprep.subr.mxu0 0.0
    %672 = vmatpush1.msra.mxu0 0.0
    %673 = vmatprep.subr.mxu0 0.0
    %674 = vmatpush1.msra.mxu0 0.0
    %675 = vmatprep.subr.mxu0 0.0
    %676 = vmatpush1.msra.mxu0 0.0
    %677 = vmatprep.subr.mxu0 0.0
    %678 = vmatpush1.msra.mxu0 0.0
    %679 = vmatprep.subr.mxu0 0.0
    %680 = vmatpush1.msra.mxu0 0.0
    %681 = vmatprep.subr.mxu0 0.0
    %682 = vmatpush1.msra.mxu0 0.0
    %683 = vmatprep.subr.mxu0 0.0
    %684 = vmatpush1.msra.mxu0 0.0
    %685 = vmatprep.subr.mxu0 0.0
    %686 = vmatpush1.msra.mxu0 0.0
    %687 = vmatprep.subr.mxu0 0.0
    %688 = vmatpush1.msra.mxu0 0.0
    %689 = vmatprep.subr.mxu0 0.0
    %690 = vmatpush1.msra.mxu0 0.0
    %691 = vmatprep.subr.mxu0 0.0
    %692 = vmatpush1.msra.mxu0 0.0
    %693 = vmatprep.subr.mxu0 0.0
    %694 = vmatpush1.msra.mxu0 %v657
    %695 = vmatprep.subr.mxu0 0.0
    %696 = vmatpush1.msra.mxu0 %v656
    %697 = vmatprep.subr.mxu0 0.0
    %698 = vmatpush1.msra.mxu0 %v655
    %699 = vmatprep.subr.mxu0 0.0
    %700 = vmatpush1.msra.mxu0 %v654
    %701 = vmatprep.subr.mxu0 0.0
    %702 = vmatpush2.msra.mxu0 0.0
    %703 = vmatprep.subr.mxu0 0.0
    %704 = vmatpush2.msra.mxu0 0.0
    %705 = vmatprep.subr.mxu0 0.0
    %706 = vmatpush2.msra.mxu0 0.0
    %707 = vmatprep.subr.mxu0 0.0
    %708 = vmatpush2.msra.mxu0 0.0
    %709 = vmatprep.subr.mxu0 0.0
    %710 = vmatpush2.msra.mxu0 0.0
    %711 = vmatprep.subr.mxu0 0.0
    %712 = vmatpush2.msra.mxu0 0.0
    %713 = vmatprep.subr.mxu0 0.0
    %714 = vmatpush2.msra.mxu0 0.0
    %715 = vmatprep.subr.mxu0 0.0
    %716 = vmatpush2.msra.mxu0 0.0
    %717 = vmatprep.subr.mxu0 0.0
    %718 = vmatpush2.msra.mxu0 0.0
    %719 = vmatprep.subr.mxu0 0.0
    %720 = vmatpush2.msra.mxu0 0.0
    %721 = vmatprep.subr.mxu0 0.0
    %722 = vmatpush2.msra.mxu0 0.0
    %723 = vmatprep.subr.mxu0 0.0
    %724 = vmatpush2.msra.mxu0 0.0
    %725 = vmatprep.subr.mxu0 0.0
    %726 = vmatpush2.msra.mxu0 0.0
    %727 = vmatprep.subr.mxu0 0.0
    %728 = vmatpush2.msra.mxu0 0.0
    %729 = vmatprep.subr.mxu0 0.0
    %730 = vmatpush2.msra.mxu0 0.0
    %731 = vmatprep.subr.mxu0 0.0
    %732 = vmatpush2.msra.mxu0 0.0
    %733 = vmatprep.mubr.f32.mxu0 0.0
    %734 = vmatmul.mubr.f32.gmra.mxu0 %v667
    %v735 = vpop.f32.mrf.mxu0
    %v736 = vadd.f32 %v663, %v735
    %v737 = vpop.f32.mrf.mxu0
    %738 = vdwg.mxu0
    %v739 = vld [vmem:[#allocation11] sm:$0xff]
    %v740 = vld [vmem:[#allocation11 + $0x8] sm:$0xff]
    %v741 = vld [vmem:[#allocation11 + $0x10] sm:$0xff]
    %v742 = vld [vmem:[#allocation11 + $0x18] sm:$0xff]
    %v743 = vld [vmem:[#allocation12] sm:$0x1]
    %v745 = vlaneseq
    %v746 = vshrl.u32 %v745, 7
    %v747 = vsub.s32 0, %v746
    %v748 = vrot.slane %v743, %v747
    %750 = vmatprep.subr.mxu0 0.0
    %751 = vmatpush1.msra.mxu0 0.0
    %752 = vmatprep.subr.mxu0 0.0
    %753 = vmatpush1.msra.mxu0 0.0
    %754 = vmatprep.subr.mxu0 0.0
    %755 = vmatpush1.msra.mxu0 0.0
    %756 = vmatprep.subr.mxu0 0.0
    %757 = vmatpush1.msra.mxu0 0.0
    %758 = vmatprep.subr.mxu0 0.0
    %759 = vmatpush1.msra.mxu0 0.0
    %760 = vmatprep.subr.mxu0 0.0
    %761 = vmatpush1.msra.mxu0 0.0
    %762 = vmatprep.subr.mxu0 0.0
    %763 = vmatpush1.msra.mxu0 0.0
    %764 = vmatprep.subr.mxu0 0.0
    %765 = vmatpush1.msra.mxu0 0.0
    %766 = vmatprep.subr.mxu0 0.0
    %767 = vmatpush1.msra.mxu0 0.0
    %768 = vmatprep.subr.mxu0 0.0
    %769 = vmatpush1.msra.mxu0 0.0
    %770 = vmatprep.subr.mxu0 0.0
    %771 = vmatpush1.msra.mxu0 0.0
    %772 = vmatprep.subr.mxu0 0.0
    %773 = vmatpush1.msra.mxu0 0.0
    %774 = vmatprep.subr.mxu0 0.0
    %775 = vmatpush1.msra.mxu0 %v742
    %776 = vmatprep.subr.mxu0 0.0
    %777 = vmatpush1.msra.mxu0 %v741
    %778 = vmatprep.subr.mxu0 0.0
    %779 = vmatpush1.msra.mxu0 %v740
    %780 = vmatprep.subr.mxu0 0.0
    %781 = vmatpush1.msra.mxu0 %v739
    %782 = vmatprep.subr.mxu0 0.0
    %783 = vmatpush2.msra.mxu0 0.0
    %784 = vmatprep.subr.mxu0 0.0
    %785 = vmatpush2.msra.mxu0 0.0
    %786 = vmatprep.subr.mxu0 0.0
    %787 = vmatpush2.msra.mxu0 0.0
    %788 = vmatprep.subr.mxu0 0.0
    %789 = vmatpush2.msra.mxu0 0.0
    %790 = vmatprep.subr.mxu0 0.0
    %791 = vmatpush2.msra.mxu0 0.0
    %792 = vmatprep.subr.mxu0 0.0
    %793 = vmatpush2.msra.mxu0 0.0
    %794 = vmatprep.subr.mxu0 0.0
    %795 = vmatpush2.msra.mxu0 0.0
    %796 = vmatprep.subr.mxu0 0.0
    %797 = vmatpush2.msra.mxu0 0.0
    %798 = vmatprep.subr.mxu0 0.0
    %799 = vmatpush2.msra.mxu0 0.0
    %800 = vmatprep.subr.mxu0 0.0
    %801 = vmatpush2.msra.mxu0 0.0
    %802 = vmatprep.subr.mxu0 0.0
    %803 = vmatpush2.msra.mxu0 0.0
    %804 = vmatprep.subr.mxu0 0.0
    %805 = vmatpush2.msra.mxu0 0.0
    %806 = vmatprep.subr.mxu0 0.0
    %807 = vmatpush2.msra.mxu0 0.0
    %808 = vmatprep.subr.mxu0 0.0
    %809 = vmatpush2.msra.mxu0 0.0
    %810 = vmatprep.subr.mxu0 0.0
    %811 = vmatpush2.msra.mxu0 0.0
    %812 = vmatprep.subr.mxu0 0.0
    %813 = vmatpush2.msra.mxu0 0.0
    %814 = vmatprep.mubr.f32.mxu0 0.0
    %815 = vmatmul.mubr.f32.gmra.mxu0 %v667
    %v816 = vpop.f32.mrf.mxu0
    %v817 = vadd.f32 %v748, %v816
    %v818 = vpop.f32.mrf.mxu0
    %819 = vdwg.mxu0
    %v820 = vld [vmem:[%s5] sm:$0xf]
    %v821 = vld [vmem:[%s5 + $0x4] sm:$0xf]
    %v822 = vld [vmem:[%s5 + $0x8] sm:$0xf]
    %v823 = vld [vmem:[%s5 + $0xc] sm:$0xf]
    %v828 = vunpack.c.l.b16 %v820
    %v829 = vunpack.c.l.b16 %v821
    %v830 = vunpack.c.l.b16 %v822
    %v831 = vunpack.c.l.b16 %v823
    %v832 = vpack.c.b16 %v829, %v828
    %v833 = vpack.c.b16 %v831, %v830
    %v837 = vsel %vm665, 0, 0
    %839 = vmatprep.subr.bf16.mxu0 0
    %840 = vmatpush1.bf16.msra.mxu0 0
    %841 = vmatprep.subr.bf16.mxu0 0
    %842 = vmatpush1.bf16.msra.mxu0 0
    %843 = vmatprep.subr.bf16.mxu0 0
    %844 = vmatpush1.bf16.msra.mxu0 0
    %845 = vmatprep.subr.bf16.mxu0 0
    %846 = vmatpush1.bf16.msra.mxu0 0
    %847 = vmatprep.subr.bf16.mxu0 0
    %848 = vmatpush1.bf16.msra.mxu0 0
    %849 = vmatprep.subr.bf16.mxu0 0
    %850 = vmatpush1.bf16.msra.mxu0 0
    %851 = vmatprep.subr.bf16.mxu0 0
    %852 = vmatpush1.bf16.msra.mxu0 %v833
    %853 = vmatprep.subr.bf16.mxu0 0
    %854 = vmatpush1.bf16.msra.mxu0 %v832
    %855 = vmatprep.subr.bf16.mxu0 0
    %856 = vmatpush2.bf16.msra.mxu0 0
    %857 = vmatprep.subr.bf16.mxu0 0
    %858 = vmatpush2.bf16.msra.mxu0 0
    %859 = vmatprep.subr.bf16.mxu0 0
    %860 = vmatpush2.bf16.msra.mxu0 0
    %861 = vmatprep.subr.bf16.mxu0 0
    %862 = vmatpush2.bf16.msra.mxu0 0
    %863 = vmatprep.subr.bf16.mxu0 0
    %864 = vmatpush2.bf16.msra.mxu0 0
    %865 = vmatprep.subr.bf16.mxu0 0
    %866 = vmatpush2.bf16.msra.mxu0 0
    %867 = vmatprep.subr.bf16.mxu0 0
    %868 = vmatpush2.bf16.msra.mxu0 0
    %869 = vmatprep.subr.bf16.mxu0 0
    %870 = vmatpush2.bf16.msra.mxu0 0
    %871 = vmatprep.mubr.bf16.mxu0 0
    %872 = vmatmul.mubr.bf16.gmra.mxu0 %v837
    %v873 = vpop.f32.mrf.mxu0
    %v874 = vadd.f32 0.0, %v873
    %v875 = vpop.f32.mrf.mxu0
    %v876 = vpop.f32.mrf.mxu0
    %v877 = vpop.f32.mrf.mxu0
    %878 = vdwg.mxu0
    %v879 = vadd.f32 %v385, %v874
    %v880 = vtanh.pop %v879
    %v881 = vmul.f32 %v880, 0.5
    %v882 = vadd.f32 %v881, 0.5
    %v883 = vmul.f32 %v882, 0.0
    %885 = vrot.lane.b32.xlu0 %v880, 32
    %v886 = vpop.permute.xlu0 %885
    %v888 = vmul.f32 %v882, %v886
    %890 = vrot.lane.b32.xlu0 %v888, 32
    %v891 = vpop.permute.xlu0 %890
    %v893 = vadd.f32 %v883, %v891
    %v894 = vtanh.pop %v893
    %896 = vrot.lane.b32.xlu0 %v894, 32
    %v897 = vpop.permute.xlu0 %896
    %v899 = vmul.f32 %v882, %v897
    %v900 = vpack.c.bf16 %v899, %v899
    %902 = vrot.lane.b32.xlu0 %v900, 64
    %v903 = vpop.permute.xlu0 %902
    %v905 = vsel %vm665, %v903, 0
    %907 = vmatprep.subr.bf16.mxu0 0
    %908 = vmatpush1.bf16.msra.mxu0 0
    %909 = vmatprep.subr.bf16.mxu0 0
    %910 = vmatpush1.bf16.msra.mxu0 0
    %911 = vmatprep.subr.bf16.mxu0 0
    %912 = vmatpush1.bf16.msra.mxu0 0
    %913 = vmatprep.subr.bf16.mxu0 0
    %914 = vmatpush1.bf16.msra.mxu0 0
    %915 = vmatprep.subr.bf16.mxu0 0
    %916 = vmatpush1.bf16.msra.mxu0 0
    %917 = vmatprep.subr.bf16.mxu0 0
    %918 = vmatpush1.bf16.msra.mxu0 0
    %919 = vmatprep.subr.bf16.mxu0 0
    %920 = vmatpush1.bf16.msra.mxu0 %v833
    %921 = vmatprep.subr.bf16.mxu0 0
    %922 = vmatpush1.bf16.msra.mxu0 %v832
    %923 = vmatprep.subr.bf16.mxu0 0
    %924 = vmatpush2.bf16.msra.mxu0 0
    %925 = vmatprep.subr.bf16.mxu0 0
    %926 = vmatpush2.bf16.msra.mxu0 0
    %927 = vmatprep.subr.bf16.mxu0 0
    %928 = vmatpush2.bf16.msra.mxu0 0
    %929 = vmatprep.subr.bf16.mxu0 0
    %930 = vmatpush2.bf16.msra.mxu0 0
    %931 = vmatprep.subr.bf16.mxu0 0
    %932 = vmatpush2.bf16.msra.mxu0 0
    %933 = vmatprep.subr.bf16.mxu0 0
    %934 = vmatpush2.bf16.msra.mxu0 0
    %935 = vmatprep.subr.bf16.mxu0 0
    %936 = vmatpush2.bf16.msra.mxu0 0
    %937 = vmatprep.subr.bf16.mxu0 0
    %938 = vmatpush2.bf16.msra.mxu0 0
    %939 = vmatprep.mubr.bf16.mxu0 0
    %940 = vmatmul.mubr.bf16.gmra.mxu0 %v905
    %v941 = vpop.f32.mrf.mxu0
    %v942 = vadd.f32 0.0, %v941
    %v943 = vpop.f32.mrf.mxu0
    %v944 = vpop.f32.mrf.mxu0
    %v945 = vpop.f32.mrf.mxu0
    %946 = vdwg.mxu0
    %v947 = vadd.f32 %v390, %v942
    %v948 = vtanh.pop %v947
    %v949 = vmul.f32 %v948, 0.5
    %v950 = vadd.f32 %v949, 0.5
    %v951 = vmul.f32 %v950, %v893
    %953 = vrot.lane.b32.xlu0 %v948, 32
    %v954 = vpop.permute.xlu0 %953
    %v956 = vmul.f32 %v950, %v954
    %958 = vrot.lane.b32.xlu0 %v956, 32
    %v959 = vpop.permute.xlu0 %958
    %v961 = vadd.f32 %v951, %v959
    %v962 = vtanh.pop %v961
    %964 = vrot.lane.b32.xlu0 %v962, 32
    %v965 = vpop.permute.xlu0 %964
    %v967 = vmul.f32 %v950, %v965
    %v968 = vpack.c.bf16 %v967, %v967
    %970 = vrot.lane.b32.xlu0 %v968, 64
    %v971 = vpop.permute.xlu0 %970
    %v973 = vsel %vm665, %v971, 0
    %975 = vmatprep.subr.bf16.mxu0 0
    %976 = vmatpush1.bf16.msra.mxu0 0
    %977 = vmatprep.subr.bf16.mxu0 0
    %978 = vmatpush1.bf16.msra.mxu0 0
    %979 = vmatprep.subr.bf16.mxu0 0
    %980 = vmatpush1.bf16.msra.mxu0 0
    %981 = vmatprep.subr.bf16.mxu0 0
    %982 = vmatpush1.bf16.msra.mxu0 0
    %983 = vmatprep.subr.bf16.mxu0 0
    %984 = vmatpush1.bf16.msra.mxu0 0
    %985 = vmatprep.subr.bf16.mxu0 0
    %986 = vmatpush1.bf16.msra.mxu0 0
    %987 = vmatprep.subr.bf16.mxu0 0
    %988 = vmatpush1.bf16.msra.mxu0 %v833
    %989 = vmatprep.subr.bf16.mxu0 0
    %990 = vmatpush1.bf16.msra.mxu0 %v832
    %991 = vmatprep.subr.bf16.mxu0 0
    %992 = vmatpush2.bf16.msra.mxu0 0
    %993 = vmatprep.subr.bf16.mxu0 0
    %994 = vmatpush2.bf16.msra.mxu0 0
    %995 = vmatprep.subr.bf16.mxu0 0
    %996 = vmatpush2.bf16.msra.mxu0 0
    %997 = vmatprep.subr.bf16.mxu0 0
    %998 = vmatpush2.bf16.msra.mxu0 0
    %999 = vmatprep.subr.bf16.mxu0 0
    %1000 = vmatpush2.bf16.msra.mxu0 0
    %1001 = vmatprep.subr.bf16.mxu0 0
    %1002 = vmatpush2.bf16.msra.mxu0 0
    %1003 = vmatprep.subr.bf16.mxu0 0
    %1004 = vmatpush2.bf16.msra.mxu0 0
    %1005 = vmatprep.subr.bf16.mxu0 0
    %1006 = vmatpush2.bf16.msra.mxu0 0
    %1007 = vmatprep.mubr.bf16.mxu0 0
    %1008 = vmatmul.mubr.bf16.gmra.mxu0 %v973
    %v1009 = vpop.f32.mrf.mxu0
    %v1010 = vadd.f32 0.0, %v1009
    %v1011 = vpop.f32.mrf.mxu0
    %v1012 = vpop.f32.mrf.mxu0
    %v1013 = vpop.f32.mrf.mxu0
    %1014 = vdwg.mxu0
    %v1015 = vadd.f32 %v395, %v1010
    %v1016 = vtanh.pop %v1015
    %v1017 = vmul.f32 %v1016, 0.5
    %v1018 = vadd.f32 %v1017, 0.5
    %v1019 = vmul.f32 %v1018, %v961
    %1021 = vrot.lane.b32.xlu0 %v1016, 32
    %v1022 = vpop.permute.xlu0 %1021
    %v1024 = vmul.f32 %v1018, %v1022
    %1026 = vrot.lane.b32.xlu0 %v1024, 32
    %v1027 = vpop.permute.xlu0 %1026
    %v1029 = vadd.f32 %v1019, %v1027
    %v1030 = vtanh.pop %v1029
    %1032 = vrot.lane.b32.xlu0 %v1030, 32
    %v1033 = vpop.permute.xlu0 %1032
    %v1035 = vmul.f32 %v1018, %v1033
    %v1036 = vpack.c.bf16 %v1035, %v1035
    %1038 = vrot.lane.b32.xlu0 %v1036, 64
    %v1039 = vpop.permute.xlu0 %1038
    %v1041 = vsel %vm665, %v1039, 0
    %1043 = vmatprep.subr.bf16.mxu0 0
    %1044 = vmatpush1.bf16.msra.mxu0 0
    %1045 = vmatprep.subr.bf16.mxu0 0
    %1046 = vmatpush1.bf16.msra.mxu0 0
    %1047 = vmatprep.subr.bf16.mxu0 0
    %1048 = vmatpush1.bf16.msra.mxu0 0
    %1049 = vmatprep.subr.bf16.mxu0 0
    %1050 = vmatpush1.bf16.msra.mxu0 0
    %1051 = vmatprep.subr.bf16.mxu0 0
    %1052 = vmatpush1.bf16.msra.mxu0 0
    %1053 = vmatprep.subr.bf16.mxu0 0
    %1054 = vmatpush1.bf16.msra.mxu0 0
    %1055 = vmatprep.subr.bf16.mxu0 0
    %1056 = vmatpush1.bf16.msra.mxu0 %v833
    %1057 = vmatprep.subr.bf16.mxu0 0
    %1058 = vmatpush1.bf16.msra.mxu0 %v832
    %1059 = vmatprep.subr.bf16.mxu0 0
    %1060 = vmatpush2.bf16.msra.mxu0 0
    %1061 = vmatprep.subr.bf16.mxu0 0
    %1062 = vmatpush2.bf16.msra.mxu0 0
    %1063 = vmatprep.subr.bf16.mxu0 0
    %1064 = vmatpush2.bf16.msra.mxu0 0
    %1065 = vmatprep.subr.bf16.mxu0 0
    %1066 = vmatpush2.bf16.msra.mxu0 0
    %1067 = vmatprep.subr.bf16.mxu0 0
    %1068 = vmatpush2.bf16.msra.mxu0 0
    %1069 = vmatprep.subr.bf16.mxu0 0
    %1070 = vmatpush2.bf16.msra.mxu0 0
    %1071 = vmatprep.subr.bf16.mxu0 0
    %1072 = vmatpush2.bf16.msra.mxu0 0
    %1073 = vmatprep.subr.bf16.mxu0 0
    %1074 = vmatpush2.bf16.msra.mxu0 0
    %1075 = vmatprep.mubr.bf16.mxu0 0
    %1076 = vmatmul.mubr.bf16.gmra.mxu0 %v1041
    %v1077 = vpop.f32.mrf.mxu0
    %v1078 = vadd.f32 0.0, %v1077
    %v1079 = vpop.f32.mrf.mxu0
    %v1080 = vpop.f32.mrf.mxu0
    %v1081 = vpop.f32.mrf.mxu0
    %1082 = vdwg.mxu0
    %v1083 = vadd.f32 %v400, %v1078
    %v1084 = vtanh.pop %v1083
    %v1085 = vmul.f32 %v1084, 0.5
    %v1086 = vadd.f32 %v1085, 0.5
    %v1087 = vmul.f32 %v1086, %v1029
    %1089 = vrot.lane.b32.xlu0 %v1084, 32
    %v1090 = vpop.permute.xlu0 %1089
    %v1092 = vmul.f32 %v1086, %v1090
    %1094 = vrot.lane.b32.xlu0 %v1092, 32
    %v1095 = vpop.permute.xlu0 %1094
    %v1097 = vadd.f32 %v1087, %v1095
    %v1098 = vtanh.pop %v1097
    %1100 = vrot.lane.b32.xlu0 %v1098, 32
    %v1101 = vpop.permute.xlu0 %1100
    %v1103 = vmul.f32 %v1086, %v1101
    %v1104 = vpack.c.bf16 %v1103, %v1103
    %1106 = vrot.lane.b32.xlu0 %v1104, 64
    %v1107 = vpop.permute.xlu0 %1106
    %v1109 = vsel %vm665, %v1107, 0
    %1111 = vmatprep.subr.bf16.mxu0 0
    %1112 = vmatpush1.bf16.msra.mxu0 0
    %1113 = vmatprep.subr.bf16.mxu0 0
    %1114 = vmatpush1.bf16.msra.mxu0 0
    %1115 = vmatprep.subr.bf16.mxu0 0
    %1116 = vmatpush1.bf16.msra.mxu0 0
    %1117 = vmatprep.subr.bf16.mxu0 0
    %1118 = vmatpush1.bf16.msra.mxu0 0
    %1119 = vmatprep.subr.bf16.mxu0 0
    %1120 = vmatpush1.bf16.msra.mxu0 0
    %1121 = vmatprep.subr.bf16.mxu0 0
    %1122 = vmatpush1.bf16.msra.mxu0 0
    %1123 = vmatprep.subr.bf16.mxu0 0
    %1124 = vmatpush1.bf16.msra.mxu0 %v833
    %1125 = vmatprep.subr.bf16.mxu0 0
    %1126 = vmatpush1.bf16.msra.mxu0 %v832
    %1127 = vmatprep.subr.bf16.mxu0 0
    %1128 = vmatpush2.bf16.msra.mxu0 0
    %1129 = vmatprep.subr.bf16.mxu0 0
    %1130 = vmatpush2.bf16.msra.mxu0 0
    %1131 = vmatprep.subr.bf16.mxu0 0
    %1132 = vmatpush2.bf16.msra.mxu0 0
    %1133 = vmatprep.subr.bf16.mxu0 0
    %1134 = vmatpush2.bf16.msra.mxu0 0
    %1135 = vmatprep.subr.bf16.mxu0 0
    %1136 = vmatpush2.bf16.msra.mxu0 0
    %1137 = vmatprep.subr.bf16.mxu0 0
    %1138 = vmatpush2.bf16.msra.mxu0 0
    %1139 = vmatprep.subr.bf16.mxu0 0
    %1140 = vmatpush2.bf16.msra.mxu0 0
    %1141 = vmatprep.subr.bf16.mxu0 0
    %1142 = vmatpush2.bf16.msra.mxu0 0
    %1143 = vmatprep.mubr.bf16.mxu0 0
    %1144 = vmatmul.mubr.bf16.gmra.mxu0 %v1109
    %v1145 = vpop.f32.mrf.mxu0
    %v1146 = vadd.f32 0.0, %v1145
    %v1147 = vpop.f32.mrf.mxu0
    %v1148 = vpop.f32.mrf.mxu0
    %v1149 = vpop.f32.mrf.mxu0
    %1150 = vdwg.mxu0
    %v1151 = vadd.f32 %v405, %v1146
    %v1152 = vtanh.pop %v1151
    %v1153 = vmul.f32 %v1152, 0.5
    %v1154 = vadd.f32 %v1153, 0.5
    %v1155 = vmul.f32 %v1154, %v1097
    %1157 = vrot.lane.b32.xlu0 %v1152, 32
    %v1158 = vpop.permute.xlu0 %1157
    %v1160 = vmul.f32 %v1154, %v1158
    %1162 = vrot.lane.b32.xlu0 %v1160, 32
    %v1163 = vpop.permute.xlu0 %1162
    %v1165 = vadd.f32 %v1155, %v1163
    %v1166 = vtanh.pop %v1165
    %1168 = vrot.lane.b32.xlu0 %v1166, 32
    %v1169 = vpop.permute.xlu0 %1168
    %v1171 = vmul.f32 %v1154, %v1169
    %v1172 = vpack.c.bf16 %v1171, %v1171
    %1174 = vrot.lane.b32.xlu0 %v1172, 64
    %v1175 = vpop.permute.xlu0 %1174
    %v1177 = vsel %vm665, %v1175, 0
    %1179 = vmatprep.subr.bf16.mxu0 0
    %1180 = vmatpush1.bf16.msra.mxu0 0
    %1181 = vmatprep.subr.bf16.mxu0 0
    %1182 = vmatpush1.bf16.msra.mxu0 0
    %1183 = vmatprep.subr.bf16.mxu0 0
    %1184 = vmatpush1.bf16.msra.mxu0 0
    %1185 = vmatprep.subr.bf16.mxu0 0
    %1186 = vmatpush1.bf16.msra.mxu0 0
    %1187 = vmatprep.subr.bf16.mxu0 0
    %1188 = vmatpush1.bf16.msra.mxu0 0
    %1189 = vmatprep.subr.bf16.mxu0 0
    %1190 = vmatpush1.bf16.msra.mxu0 0
    %1191 = vmatprep.subr.bf16.mxu0 0
    %1192 = vmatpush1.bf16.msra.mxu0 %v833
    %1193 = vmatprep.subr.bf16.mxu0 0
    %1194 = vmatpush1.bf16.msra.mxu0 %v832
    %1195 = vmatprep.subr.bf16.mxu0 0
    %1196 = vmatpush2.bf16.msra.mxu0 0
    %1197 = vmatprep.subr.bf16.mxu0 0
    %1198 = vmatpush2.bf16.msra.mxu0 0
    %1199 = vmatprep.subr.bf16.mxu0 0
    %1200 = vmatpush2.bf16.msra.mxu0 0
    %1201 = vmatprep.subr.bf16.mxu0 0
    %1202 = vmatpush2.bf16.msra.mxu0 0
    %1203 = vmatprep.subr.bf16.mxu0 0
    %1204 = vmatpush2.bf16.msra.mxu0 0
    %1205 = vmatprep.subr.bf16.mxu0 0
    %1206 = vmatpush2.bf16.msra.mxu0 0
    %1207 = vmatprep.subr.bf16.mxu0 0
    %1208 = vmatpush2.bf16.msra.mxu0 0
    %1209 = vmatprep.subr.bf16.mxu0 0
    %1210 = vmatpush2.bf16.msra.mxu0 0
    %1211 = vmatprep.mubr.bf16.mxu0 0
    %1212 = vmatmul.mubr.bf16.gmra.mxu0 %v1177
    %v1213 = vpop.f32.mrf.mxu0
    %v1214 = vadd.f32 0.0, %v1213
    %v1215 = vpop.f32.mrf.mxu0
    %v1216 = vpop.f32.mrf.mxu0
    %v1217 = vpop.f32.mrf.mxu0
    %1218 = vdwg.mxu0
    %v1219 = vadd.f32 %v410, %v1214
    %v1220 = vtanh.pop %v1219
    %v1221 = vmul.f32 %v1220, 0.5
    %v1222 = vadd.f32 %v1221, 0.5
    %v1223 = vmul.f32 %v1222, %v1165
    %1225 = vrot.lane.b32.xlu0 %v1220, 32
    %v1226 = vpop.permute.xlu0 %1225
    %v1228 = vmul.f32 %v1222, %v1226
    %1230 = vrot.lane.b32.xlu0 %v1228, 32
    %v1231 = vpop.permute.xlu0 %1230
    %v1233 = vadd.f32 %v1223, %v1231
    %v1234 = vtanh.pop %v1233
    %1236 = vrot.lane.b32.xlu0 %v1234, 32
    %v1237 = vpop.permute.xlu0 %1236
    %v1239 = vmul.f32 %v1222, %v1237
    %v1240 = vpack.c.bf16 %v1239, %v1239
    %1242 = vrot.lane.b32.xlu0 %v1240, 64
    %v1243 = vpop.permute.xlu0 %1242
    %v1245 = vsel %vm665, %v1243, 0
    %1247 = vmatprep.subr.bf16.mxu0 0
    %1248 = vmatpush1.bf16.msra.mxu0 0
    %1249 = vmatprep.subr.bf16.mxu0 0
    %1250 = vmatpush1.bf16.msra.mxu0 0
    %1251 = vmatprep.subr.bf16.mxu0 0
    %1252 = vmatpush1.bf16.msra.mxu0 0
    %1253 = vmatprep.subr.bf16.mxu0 0
    %1254 = vmatpush1.bf16.msra.mxu0 0
    %1255 = vmatprep.subr.bf16.mxu0 0
    %1256 = vmatpush1.bf16.msra.mxu0 0
    %1257 = vmatprep.subr.bf16.mxu0 0
    %1258 = vmatpush1.bf16.msra.mxu0 0
    %1259 = vmatprep.subr.bf16.mxu0 0
    %1260 = vmatpush1.bf16.msra.mxu0 %v833
    %1261 = vmatprep.subr.bf16.mxu0 0
    %1262 = vmatpush1.bf16.msra.mxu0 %v832
    %1263 = vmatprep.subr.bf16.mxu0 0
    %1264 = vmatpush2.bf16.msra.mxu0 0
    %1265 = vmatprep.subr.bf16.mxu0 0
    %1266 = vmatpush2.bf16.msra.mxu0 0
    %1267 = vmatprep.subr.bf16.mxu0 0
    %1268 = vmatpush2.bf16.msra.mxu0 0
    %1269 = vmatprep.subr.bf16.mxu0 0
    %1270 = vmatpush2.bf16.msra.mxu0 0
    %1271 = vmatprep.subr.bf16.mxu0 0
    %1272 = vmatpush2.bf16.msra.mxu0 0
    %1273 = vmatprep.subr.bf16.mxu0 0
    %1274 = vmatpush2.bf16.msra.mxu0 0
    %1275 = vmatprep.subr.bf16.mxu0 0
    %1276 = vmatpush2.bf16.msra.mxu0 0
    %1277 = vmatprep.subr.bf16.mxu0 0
    %1278 = vmatpush2.bf16.msra.mxu0 0
    %1279 = vmatprep.mubr.bf16.mxu0 0
    %1280 = vmatmul.mubr.bf16.gmra.mxu0 %v1245
    %v1281 = vpop.f32.mrf.mxu0
    %v1282 = vadd.f32 0.0, %v1281
    %v1283 = vpop.f32.mrf.mxu0
    %v1284 = vpop.f32.mrf.mxu0
    %v1285 = vpop.f32.mrf.mxu0
    %1286 = vdwg.mxu0
    %v1287 = vadd.f32 %v415, %v1282
    %v1288 = vtanh.pop %v1287
    %v1289 = vmul.f32 %v1288, 0.5
    %v1290 = vadd.f32 %v1289, 0.5
    %v1291 = vmul.f32 %v1290, %v1233
    %1293 = vrot.lane.b32.xlu0 %v1288, 32
    %v1294 = vpop.permute.xlu0 %1293
    %v1296 = vmul.f32 %v1290, %v1294
    %1298 = vrot.lane.b32.xlu0 %v1296, 32
    %v1299 = vpop.permute.xlu0 %1298
    %v1301 = vadd.f32 %v1291, %v1299
    %v1302 = vtanh.pop %v1301
    %1304 = vrot.lane.b32.xlu0 %v1302, 32
    %v1305 = vpop.permute.xlu0 %1304
    %v1307 = vmul.f32 %v1290, %v1305
    %v1308 = vpack.c.bf16 %v1307, %v1307
    %1310 = vrot.lane.b32.xlu0 %v1308, 64
    %v1311 = vpop.permute.xlu0 %1310
    %v1313 = vsel %vm665, %v1311, 0
    %1315 = vmatprep.subr.bf16.mxu0 0
    %1316 = vmatpush1.bf16.msra.mxu0 0
    %1317 = vmatprep.subr.bf16.mxu0 0
    %1318 = vmatpush1.bf16.msra.mxu0 0
    %1319 = vmatprep.subr.bf16.mxu0 0
    %1320 = vmatpush1.bf16.msra.mxu0 0
    %1321 = vmatprep.subr.bf16.mxu0 0
    %1322 = vmatpush1.bf16.msra.mxu0 0
    %1323 = vmatprep.subr.bf16.mxu0 0
    %1324 = vmatpush1.bf16.msra.mxu0 0
    %1325 = vmatprep.subr.bf16.mxu0 0
    %1326 = vmatpush1.bf16.msra.mxu0 0
    %1327 = vmatprep.subr.bf16.mxu0 0
    %1328 = vmatpush1.bf16.msra.mxu0 %v833
    %1329 = vmatprep.subr.bf16.mxu0 0
    %1330 = vmatpush1.bf16.msra.mxu0 %v832
    %1331 = vmatprep.subr.bf16.mxu0 0
    %1332 = vmatpush2.bf16.msra.mxu0 0
    %1333 = vmatprep.subr.bf16.mxu0 0
    %1334 = vmatpush2.bf16.msra.mxu0 0
    %1335 = vmatprep.subr.bf16.mxu0 0
    %1336 = vmatpush2.bf16.msra.mxu0 0
    %1337 = vmatprep.subr.bf16.mxu0 0
    %1338 = vmatpush2.bf16.msra.mxu0 0
    %1339 = vmatprep.subr.bf16.mxu0 0
    %1340 = vmatpush2.bf16.msra.mxu0 0
    %1341 = vmatprep.subr.bf16.mxu0 0
    %1342 = vmatpush2.bf16.msra.mxu0 0
    %1343 = vmatprep.subr.bf16.mxu0 0
    %1344 = vmatpush2.bf16.msra.mxu0 0
    %1345 = vmatprep.subr.bf16.mxu0 0
    %1346 = vmatpush2.bf16.msra.mxu0 0
    %1347 = vmatprep.mubr.bf16.mxu0 0
    %1348 = vmatmul.mubr.bf16.gmra.mxu0 %v1313
    %v1349 = vpop.f32.mrf.mxu0
    %v1350 = vadd.f32 0.0, %v1349
    %v1351 = vpop.f32.mrf.mxu0
    %v1352 = vpop.f32.mrf.mxu0
    %v1353 = vpop.f32.mrf.mxu0
    %1354 = vdwg.mxu0
    %v1355 = vadd.f32 %v420, %v1350
    %v1356 = vtanh.pop %v1355
    %v1357 = vmul.f32 %v1356, 0.5
    %v1358 = vadd.f32 %v1357, 0.5
    %v1359 = vmul.f32 %v1358, %v1301
    %1361 = vrot.lane.b32.xlu0 %v1356, 32
    %v1362 = vpop.permute.xlu0 %1361
    %v1364 = vmul.f32 %v1358, %v1362
    %1366 = vrot.lane.b32.xlu0 %v1364, 32
    %v1367 = vpop.permute.xlu0 %1366
    %v1369 = vadd.f32 %v1359, %v1367
    %v1370 = vtanh.pop %v1369
    %1372 = vrot.lane.b32.xlu0 %v1370, 32
    %v1373 = vpop.permute.xlu0 %1372
    %v1375 = vmul.f32 %v1358, %v1373
    %v1376 = vpack.c.bf16 %v1375, %v1375
    %1378 = vrot.lane.b32.xlu0 %v1376, 64
    %v1379 = vpop.permute.xlu0 %1378
    %v1381 = vsel %vm665, %v1379, 0
    %1383 = vmatprep.subr.bf16.mxu0 0
    %1384 = vmatpush1.bf16.msra.mxu0 0
    %1385 = vmatprep.subr.bf16.mxu0 0
    %1386 = vmatpush1.bf16.msra.mxu0 0
    %1387 = vmatprep.subr.bf16.mxu0 0
    %1388 = vmatpush1.bf16.msra.mxu0 0
    %1389 = vmatprep.subr.bf16.mxu0 0
    %1390 = vmatpush1.bf16.msra.mxu0 0
    %1391 = vmatprep.subr.bf16.mxu0 0
    %1392 = vmatpush1.bf16.msra.mxu0 0
    %1393 = vmatprep.subr.bf16.mxu0 0
    %1394 = vmatpush1.bf16.msra.mxu0 0
    %1395 = vmatprep.subr.bf16.mxu0 0
    %1396 = vmatpush1.bf16.msra.mxu0 %v833
    %1397 = vmatprep.subr.bf16.mxu0 0
    %1398 = vmatpush1.bf16.msra.mxu0 %v832
    %1399 = vmatprep.subr.bf16.mxu0 0
    %1400 = vmatpush2.bf16.msra.mxu0 0
    %1401 = vmatprep.subr.bf16.mxu0 0
    %1402 = vmatpush2.bf16.msra.mxu0 0
    %1403 = vmatprep.subr.bf16.mxu0 0
    %1404 = vmatpush2.bf16.msra.mxu0 0
    %1405 = vmatprep.subr.bf16.mxu0 0
    %1406 = vmatpush2.bf16.msra.mxu0 0
    %1407 = vmatprep.subr.bf16.mxu0 0
    %1408 = vmatpush2.bf16.msra.mxu0 0
    %1409 = vmatprep.subr.bf16.mxu0 0
    %1410 = vmatpush2.bf16.msra.mxu0 0
    %1411 = vmatprep.subr.bf16.mxu0 0
    %1412 = vmatpush2.bf16.msra.mxu0 0
    %1413 = vmatprep.subr.bf16.mxu0 0
    %1414 = vmatpush2.bf16.msra.mxu0 0
    %1415 = vmatprep.mubr.bf16.mxu0 0
    %1416 = vmatmul.mubr.bf16.gmra.mxu0 %v1381
    %v1417 = vpop.f32.mrf.mxu0
    %v1418 = vadd.f32 0.0, %v1417
    %v1419 = vpop.f32.mrf.mxu0
    %v1420 = vpop.f32.mrf.mxu0
    %v1421 = vpop.f32.mrf.mxu0
    %1422 = vdwg.mxu0
    %v1423 = vadd.f32 %v425, %v1418
    %v1424 = vtanh.pop %v1423
    %v1425 = vmul.f32 %v1424, 0.5
    %v1426 = vadd.f32 %v1425, 0.5
    %v1427 = vmul.f32 %v1426, %v1369
    %1429 = vrot.lane.b32.xlu0 %v1424, 32
    %v1430 = vpop.permute.xlu0 %1429
    %v1432 = vmul.f32 %v1426, %v1430
    %1434 = vrot.lane.b32.xlu0 %v1432, 32
    %v1435 = vpop.permute.xlu0 %1434
    %v1437 = vadd.f32 %v1427, %v1435
    %v1438 = vtanh.pop %v1437
    %1440 = vrot.lane.b32.xlu0 %v1438, 32
    %v1441 = vpop.permute.xlu0 %1440
    %v1443 = vmul.f32 %v1426, %v1441
    %v1444 = vpack.c.bf16 %v1443, %v1443
    %1446 = vrot.lane.b32.xlu0 %v1444, 64
    %v1447 = vpop.permute.xlu0 %1446
    %v1449 = vsel %vm665, %v1447, 0
    %1451 = vmatprep.subr.bf16.mxu0 0
    %1452 = vmatpush1.bf16.msra.mxu0 0
    %1453 = vmatprep.subr.bf16.mxu0 0
    %1454 = vmatpush1.bf16.msra.mxu0 0
    %1455 = vmatprep.subr.bf16.mxu0 0
    %1456 = vmatpush1.bf16.msra.mxu0 0
    %1457 = vmatprep.subr.bf16.mxu0 0
    %1458 = vmatpush1.bf16.msra.mxu0 0
    %1459 = vmatprep.subr.bf16.mxu0 0
    %1460 = vmatpush1.bf16.msra.mxu0 0
    %1461 = vmatprep.subr.bf16.mxu0 0
    %1462 = vmatpush1.bf16.msra.mxu0 0
    %1463 = vmatprep.subr.bf16.mxu0 0
    %1464 = vmatpush1.bf16.msra.mxu0 %v833
    %1465 = vmatprep.subr.bf16.mxu0 0
    %1466 = vmatpush1.bf16.msra.mxu0 %v832
    %1467 = vmatprep.subr.bf16.mxu0 0
    %1468 = vmatpush2.bf16.msra.mxu0 0
    %1469 = vmatprep.subr.bf16.mxu0 0
    %1470 = vmatpush2.bf16.msra.mxu0 0
    %1471 = vmatprep.subr.bf16.mxu0 0
    %1472 = vmatpush2.bf16.msra.mxu0 0
    %1473 = vmatprep.subr.bf16.mxu0 0
    %1474 = vmatpush2.bf16.msra.mxu0 0
    %1475 = vmatprep.subr.bf16.mxu0 0
    %1476 = vmatpush2.bf16.msra.mxu0 0
    %1477 = vmatprep.subr.bf16.mxu0 0
    %1478 = vmatpush2.bf16.msra.mxu0 0
    %1479 = vmatprep.subr.bf16.mxu0 0
    %1480 = vmatpush2.bf16.msra.mxu0 0
    %1481 = vmatprep.subr.bf16.mxu0 0
    %1482 = vmatpush2.bf16.msra.mxu0 0
    %1483 = vmatprep.mubr.bf16.mxu0 0
    %1484 = vmatmul.mubr.bf16.gmra.mxu0 %v1449
    %v1485 = vpop.f32.mrf.mxu0
    %v1486 = vadd.f32 0.0, %v1485
    %v1487 = vpop.f32.mrf.mxu0
    %v1488 = vpop.f32.mrf.mxu0
    %v1489 = vpop.f32.mrf.mxu0
    %1490 = vdwg.mxu0
    %v1491 = vadd.f32 %v430, %v1486
    %v1492 = vtanh.pop %v1491
    %v1493 = vmul.f32 %v1492, 0.5
    %v1494 = vadd.f32 %v1493, 0.5
    %v1495 = vmul.f32 %v1494, %v1437
    %1497 = vrot.lane.b32.xlu0 %v1492, 32
    %v1498 = vpop.permute.xlu0 %1497
    %v1500 = vmul.f32 %v1494, %v1498
    %1502 = vrot.lane.b32.xlu0 %v1500, 32
    %v1503 = vpop.permute.xlu0 %1502
    %v1505 = vadd.f32 %v1495, %v1503
    %v1506 = vtanh.pop %v1505
    %1508 = vrot.lane.b32.xlu0 %v1506, 32
    %v1509 = vpop.permute.xlu0 %1508
    %v1511 = vmul.f32 %v1494, %v1509
    %v1512 = vpack.c.bf16 %v1511, %v1511
    %1514 = vrot.lane.b32.xlu0 %v1512, 64
    %v1515 = vpop.permute.xlu0 %1514
    %v1517 = vsel %vm665, %v1515, 0
    %1519 = vmatprep.subr.bf16.mxu0 0
    %1520 = vmatpush1.bf16.msra.mxu0 0
    %1521 = vmatprep.subr.bf16.mxu0 0
    %1522 = vmatpush1.bf16.msra.mxu0 0
    %1523 = vmatprep.subr.bf16.mxu0 0
    %1524 = vmatpush1.bf16.msra.mxu0 0
    %1525 = vmatprep.subr.bf16.mxu0 0
    %1526 = vmatpush1.bf16.msra.mxu0 0
    %1527 = vmatprep.subr.bf16.mxu0 0
    %1528 = vmatpush1.bf16.msra.mxu0 0
    %1529 = vmatprep.subr.bf16.mxu0 0
    %1530 = vmatpush1.bf16.msra.mxu0 0
    %1531 = vmatprep.subr.bf16.mxu0 0
    %1532 = vmatpush1.bf16.msra.mxu0 %v833
    %1533 = vmatprep.subr.bf16.mxu0 0
    %1534 = vmatpush1.bf16.msra.mxu0 %v832
    %1535 = vmatprep.subr.bf16.mxu0 0
    %1536 = vmatpush2.bf16.msra.mxu0 0
    %1537 = vmatprep.subr.bf16.mxu0 0
    %1538 = vmatpush2.bf16.msra.mxu0 0
    %1539 = vmatprep.subr.bf16.mxu0 0
    %1540 = vmatpush2.bf16.msra.mxu0 0
    %1541 = vmatprep.subr.bf16.mxu0 0
    %1542 = vmatpush2.bf16.msra.mxu0 0
    %1543 = vmatprep.subr.bf16.mxu0 0
    %1544 = vmatpush2.bf16.msra.mxu0 0
    %1545 = vmatprep.subr.bf16.mxu0 0
    %1546 = vmatpush2.bf16.msra.mxu0 0
    %1547 = vmatprep.subr.bf16.mxu0 0
    %1548 = vmatpush2.bf16.msra.mxu0 0
    %1549 = vmatprep.subr.bf16.mxu0 0
    %1550 = vmatpush2.bf16.msra.mxu0 0
    %1551 = vmatprep.mubr.bf16.mxu0 0
    %1552 = vmatmul.mubr.bf16.gmra.mxu0 %v1517
    %v1553 = vpop.f32.mrf.mxu0
    %v1554 = vadd.f32 0.0, %v1553
    %v1555 = vpop.f32.mrf.mxu0
    %v1556 = vpop.f32.mrf.mxu0
    %v1557 = vpop.f32.mrf.mxu0
    %1558 = vdwg.mxu0
    %v1559 = vadd.f32 %v435, %v1554
    %v1560 = vtanh.pop %v1559
    %v1561 = vmul.f32 %v1560, 0.5
    %v1562 = vadd.f32 %v1561, 0.5
    %v1563 = vmul.f32 %v1562, %v1505
    %1565 = vrot.lane.b32.xlu0 %v1560, 32
    %v1566 = vpop.permute.xlu0 %1565
    %v1568 = vmul.f32 %v1562, %v1566
    %1570 = vrot.lane.b32.xlu0 %v1568, 32
    %v1571 = vpop.permute.xlu0 %1570
    %v1573 = vadd.f32 %v1563, %v1571
    %v1574 = vtanh.pop %v1573
    %1576 = vrot.lane.b32.xlu0 %v1574, 32
    %v1577 = vpop.permute.xlu0 %1576
    %v1579 = vmul.f32 %v1562, %v1577
    %v1580 = vpack.c.bf16 %v1579, %v1579
    %1582 = vrot.lane.b32.xlu0 %v1580, 64
    %v1583 = vpop.permute.xlu0 %1582
    %v1585 = vsel %vm665, %v1583, 0
    %1587 = vmatprep.subr.bf16.mxu0 0
    %1588 = vmatpush1.bf16.msra.mxu0 0
    %1589 = vmatprep.subr.bf16.mxu0 0
    %1590 = vmatpush1.bf16.msra.mxu0 0
    %1591 = vmatprep.subr.bf16.mxu0 0
    %1592 = vmatpush1.bf16.msra.mxu0 0
    %1593 = vmatprep.subr.bf16.mxu0 0
    %1594 = vmatpush1.bf16.msra.mxu0 0
    %1595 = vmatprep.subr.bf16.mxu0 0
    %1596 = vmatpush1.bf16.msra.mxu0 0
    %1597 = vmatprep.subr.bf16.mxu0 0
    %1598 = vmatpush1.bf16.msra.mxu0 0
    %1599 = vmatprep.subr.bf16.mxu0 0
    %1600 = vmatpush1.bf16.msra.mxu0 %v833
    %1601 = vmatprep.subr.bf16.mxu0 0
    %1602 = vmatpush1.bf16.msra.mxu0 %v832
    %1603 = vmatprep.subr.bf16.mxu0 0
    %1604 = vmatpush2.bf16.msra.mxu0 0
    %1605 = vmatprep.subr.bf16.mxu0 0
    %1606 = vmatpush2.bf16.msra.mxu0 0
    %1607 = vmatprep.subr.bf16.mxu0 0
    %1608 = vmatpush2.bf16.msra.mxu0 0
    %1609 = vmatprep.subr.bf16.mxu0 0
    %1610 = vmatpush2.bf16.msra.mxu0 0
    %1611 = vmatprep.subr.bf16.mxu0 0
    %1612 = vmatpush2.bf16.msra.mxu0 0
    %1613 = vmatprep.subr.bf16.mxu0 0
    %1614 = vmatpush2.bf16.msra.mxu0 0
    %1615 = vmatprep.subr.bf16.mxu0 0
    %1616 = vmatpush2.bf16.msra.mxu0 0
    %1617 = vmatprep.subr.bf16.mxu0 0
    %1618 = vmatpush2.bf16.msra.mxu0 0
    %1619 = vmatprep.mubr.bf16.mxu0 0
    %1620 = vmatmul.mubr.bf16.gmra.mxu0 %v1585
    %v1621 = vpop.f32.mrf.mxu0
    %v1622 = vadd.f32 0.0, %v1621
    %v1623 = vpop.f32.mrf.mxu0
    %v1624 = vpop.f32.mrf.mxu0
    %v1625 = vpop.f32.mrf.mxu0
    %1626 = vdwg.mxu0
    %v1627 = vadd.f32 %v440, %v1622
    %v1628 = vtanh.pop %v1627
    %v1629 = vmul.f32 %v1628, 0.5
    %v1630 = vadd.f32 %v1629, 0.5
    %v1631 = vmul.f32 %v1630, %v1573
    %1633 = vrot.lane.b32.xlu0 %v1628, 32
    %v1634 = vpop.permute.xlu0 %1633
    %v1636 = vmul.f32 %v1630, %v1634
    %1638 = vrot.lane.b32.xlu0 %v1636, 32
    %v1639 = vpop.permute.xlu0 %1638
    %v1641 = vadd.f32 %v1631, %v1639
    %v1642 = vtanh.pop %v1641
    %1644 = vrot.lane.b32.xlu0 %v1642, 32
    %v1645 = vpop.permute.xlu0 %1644
    %v1647 = vmul.f32 %v1630, %v1645
    %v1648 = vld [vmem:[%s9] sm:$0xff]
    %v1649 = vld [vmem:[%s9 + $0x8] sm:$0xff]
    %v1650 = vld [vmem:[%s9 + $0x10] sm:$0xff]
    %v1651 = vld [vmem:[%s9 + $0x18] sm:$0xff]
    %1653 = vrot.lane.b32.xlu0 %v1647, 64
    %v1654 = vpop.permute.xlu0 %1653
    %v1655 = vsel %vm665, %v1654, 0
    %1657 = vmatprep.subr.mxu0 0.0
    %1658 = vmatpush1.msra.mxu0 0.0
    %1659 = vmatprep.subr.mxu0 0.0
    %1660 = vmatpush1.msra.mxu0 0.0
    %1661 = vmatprep.subr.mxu0 0.0
    %1662 = vmatpush1.msra.mxu0 0.0
    %1663 = vmatprep.subr.mxu0 0.0
    %1664 = vmatpush1.msra.mxu0 0.0
    %1665 = vmatprep.subr.mxu0 0.0
    %1666 = vmatpush1.msra.mxu0 0.0
    %1667 = vmatprep.subr.mxu0 0.0
    %1668 = vmatpush1.msra.mxu0 0.0
    %1669 = vmatprep.subr.mxu0 0.0
    %1670 = vmatpush1.msra.mxu0 0.0
    %1671 = vmatprep.subr.mxu0 0.0
    %1672 = vmatpush1.msra.mxu0 0.0
    %1673 = vmatprep.subr.mxu0 0.0
    %1674 = vmatpush1.msra.mxu0 0.0
    %1675 = vmatprep.subr.mxu0 0.0
    %1676 = vmatpush1.msra.mxu0 0.0
    %1677 = vmatprep.subr.mxu0 0.0
    %1678 = vmatpush1.msra.mxu0 0.0
    %1679 = vmatprep.subr.mxu0 0.0
    %1680 = vmatpush1.msra.mxu0 0.0
    %1681 = vmatprep.subr.mxu0 0.0
    %1682 = vmatpush1.msra.mxu0 %v1651
    %1683 = vmatprep.subr.mxu0 0.0
    %1684 = vmatpush1.msra.mxu0 %v1650
    %1685 = vmatprep.subr.mxu0 0.0
    %1686 = vmatpush1.msra.mxu0 %v1649
    %1687 = vmatprep.subr.mxu0 0.0
    %1688 = vmatpush1.msra.mxu0 %v1648
    %1689 = vmatprep.subr.mxu0 0.0
    %1690 = vmatpush2.msra.mxu0 0.0
    %1691 = vmatprep.subr.mxu0 0.0
    %1692 = vmatpush2.msra.mxu0 0.0
    %1693 = vmatprep.subr.mxu0 0.0
    %1694 = vmatpush2.msra.mxu0 0.0
    %1695 = vmatprep.subr.mxu0 0.0
    %1696 = vmatpush2.msra.mxu0 0.0
    %1697 = vmatprep.subr.mxu0 0.0
    %1698 = vmatpush2.msra.mxu0 0.0
    %1699 = vmatprep.subr.mxu0 0.0
    %1700 = vmatpush2.msra.mxu0 0.0
    %1701 = vmatprep.subr.mxu0 0.0
    %1702 = vmatpush2.msra.mxu0 0.0
    %1703 = vmatprep.subr.mxu0 0.0
    %1704 = vmatpush2.msra.mxu0 0.0
    %1705 = vmatprep.subr.mxu0 0.0
    %1706 = vmatpush2.msra.mxu0 0.0
    %1707 = vmatprep.subr.mxu0 0.0
    %1708 = vmatpush2.msra.mxu0 0.0
    %1709 = vmatprep.subr.mxu0 0.0
    %1710 = vmatpush2.msra.mxu0 0.0
    %1711 = vmatprep.subr.mxu0 0.0
    %1712 = vmatpush2.msra.mxu0 0.0
    %1713 = vmatprep.subr.mxu0 0.0
    %1714 = vmatpush2.msra.mxu0 0.0
    %1715 = vmatprep.subr.mxu0 0.0
    %1716 = vmatpush2.msra.mxu0 0.0
    %1717 = vmatprep.subr.mxu0 0.0
    %1718 = vmatpush2.msra.mxu0 0.0
    %1719 = vmatprep.subr.mxu0 0.0
    %1720 = vmatpush2.msra.mxu0 0.0
    %1721 = vmatprep.mubr.f32.mxu0 0.0
    %1722 = vmatmul.mubr.f32.gmra.mxu0 %v1655
    %v1723 = vpop.f32.mrf.mxu0
    %v1724 = vadd.f32 %v736, %v1723
    %v1725 = vpop.f32.mrf.mxu0
    %1726 = vdwg.mxu0
    %v1727 = vld [vmem:[#allocation9] sm:$0xff]
    %v1728 = vld [vmem:[#allocation9 + $0x8] sm:$0xff]
    %v1729 = vld [vmem:[#allocation9 + $0x10] sm:$0xff]
    %v1730 = vld [vmem:[#allocation9 + $0x18] sm:$0xff]
    %1732 = vrot.lane.b32.xlu0 %v1641, 96
    %v1733 = vpop.permute.xlu0 %1732
    %v1734 = vsel %vm665, %v1733, 0
    %1736 = vmatprep.subr.mxu0 0.0
    %1737 = vmatpush1.msra.mxu0 0.0
    %1738 = vmatprep.subr.mxu0 0.0
    %1739 = vmatpush1.msra.mxu0 0.0
    %1740 = vmatprep.subr.mxu0 0.0
    %1741 = vmatpush1.msra.mxu0 0.0
    %1742 = vmatprep.subr.mxu0 0.0
    %1743 = vmatpush1.msra.mxu0 0.0
    %1744 = vmatprep.subr.mxu0 0.0
    %1745 = vmatpush1.msra.mxu0 0.0
    %1746 = vmatprep.subr.mxu0 0.0
    %1747 = vmatpush1.msra.mxu0 0.0
    %1748 = vmatprep.subr.mxu0 0.0
    %1749 = vmatpush1.msra.mxu0 0.0
    %1750 = vmatprep.subr.mxu0 0.0
    %1751 = vmatpush1.msra.mxu0 0.0
    %1752 = vmatprep.subr.mxu0 0.0
    %1753 = vmatpush1.msra.mxu0 0.0
    %1754 = vmatprep.subr.mxu0 0.0
    %1755 = vmatpush1.msra.mxu0 0.0
    %1756 = vmatprep.subr.mxu0 0.0
    %1757 = vmatpush1.msra.mxu0 0.0
    %1758 = vmatprep.subr.mxu0 0.0
    %1759 = vmatpush1.msra.mxu0 0.0
    %1760 = vmatprep.subr.mxu0 0.0
    %1761 = vmatpush1.msra.mxu0 %v1730
    %1762 = vmatprep.subr.mxu0 0.0
    %1763 = vmatpush1.msra.mxu0 %v1729
    %1764 = vmatprep.subr.mxu0 0.0
    %1765 = vmatpush1.msra.mxu0 %v1728
    %1766 = vmatprep.subr.mxu0 0.0
    %1767 = vmatpush1.msra.mxu0 %v1727
    %1768 = vmatprep.subr.mxu0 0.0
    %1769 = vmatpush2.msra.mxu0 0.0
    %1770 = vmatprep.subr.mxu0 0.0
    %1771 = vmatpush2.msra.mxu0 0.0
    %1772 = vmatprep.subr.mxu0 0.0
    %1773 = vmatpush2.msra.mxu0 0.0
    %1774 = vmatprep.subr.mxu0 0.0
    %1775 = vmatpush2.msra.mxu0 0.0
    %1776 = vmatprep.subr.mxu0 0.0
    %1777 = vmatpush2.msra.mxu0 0.0
    %1778 = vmatprep.subr.mxu0 0.0
    %1779 = vmatpush2.msra.mxu0 0.0
    %1780 = vmatprep.subr.mxu0 0.0
    %1781 = vmatpush2.msra.mxu0 0.0
    %1782 = vmatprep.subr.mxu0 0.0
    %1783 = vmatpush2.msra.mxu0 0.0
    %1784 = vmatprep.subr.mxu0 0.0
    %1785 = vmatpush2.msra.mxu0 0.0
    %1786 = vmatprep.subr.mxu0 0.0
    %1787 = vmatpush2.msra.mxu0 0.0
    %1788 = vmatprep.subr.mxu0 0.0
    %1789 = vmatpush2.msra.mxu0 0.0
    %1790 = vmatprep.subr.mxu0 0.0
    %1791 = vmatpush2.msra.mxu0 0.0
    %1792 = vmatprep.subr.mxu0 0.0
    %1793 = vmatpush2.msra.mxu0 0.0
    %1794 = vmatprep.subr.mxu0 0.0
    %1795 = vmatpush2.msra.mxu0 0.0
    %1796 = vmatprep.subr.mxu0 0.0
    %1797 = vmatpush2.msra.mxu0 0.0
    %1798 = vmatprep.subr.mxu0 0.0
    %1799 = vmatpush2.msra.mxu0 0.0
    %1800 = vmatprep.mubr.f32.mxu0 0.0
    %1801 = vmatmul.mubr.f32.gmra.mxu0 %v1734
    %v1802 = vpop.f32.mrf.mxu0
    %v1803 = vadd.f32 %v817, %v1802
    %v1804 = vpop.f32.mrf.mxu0
    %1805 = vdwg.mxu0
    %v1806 = vld [vmem:[#allocation3] sm:$0xf]
    %v1807 = vld [vmem:[#allocation3 + $0x4] sm:$0xf]
    %v1808 = vld [vmem:[#allocation3 + $0x8] sm:$0xf]
    %v1809 = vld [vmem:[#allocation3 + $0xc] sm:$0xf]
    %v1810 = vld [vmem:[#allocation14] sm:$0xf]
    %v1811 = vld [vmem:[#allocation14 + $0x4] sm:$0xf]
    %v1812 = vld [vmem:[#allocation14 + $0x8] sm:$0xf]
    %v1813 = vld [vmem:[#allocation14 + $0xc] sm:$0xf]
    %v1814 = vld [vmem:[#allocation15] sm:$0x1]
    %v1816 = vlaneseq
    %v1817 = vshrl.u32 %v1816, 7
    %v1818 = vsub.s32 0, %v1817
    %v1819 = vrot.slane %v1814, %v1818
    %v1821 = vld [vmem:[%s15] sm:$0x1]
    %v1823 = vlaneseq
    %v1824 = vshrl.u32 %v1823, 7
    %v1825 = vsub.s32 0, %v1824
    %v1826 = vrot.slane %v1821, %v1825
    %v1827 = vld [vmem:[#allocation2] sm:$0x1]
    %v1829 = vlaneseq
    %v1830 = vshrl.u32 %v1829, 7
    %v1831 = vsub.s32 0, %v1830
    %v1832 = vrot.slane %v1827, %v1831
    %1834 = vst [vmem:[#allocation17] sm:$0xff] 0.0
    %v1835 = vpack.c.bf16 %v1724, %v1724
    %v1840 = vunpack.c.l.b16 %v1806
    %v1841 = vunpack.c.l.b16 %v1807
    %v1842 = vunpack.c.l.b16 %v1808
    %v1843 = vunpack.c.l.b16 %v1809
    %v1844 = vpack.c.b16 %v1841, %v1840
    %v1845 = vpack.c.b16 %v1843, %v1842
    %v1849 = vsel %vm665, %v1835, 0
    %1851 = vmatprep.subr.bf16.mxu0 0
    %1852 = vmatpush1.bf16.msra.mxu0 0
    %1853 = vmatprep.subr.bf16.mxu0 0
    %1854 = vmatpush1.bf16.msra.mxu0 0
    %1855 = vmatprep.subr.bf16.mxu0 0
    %1856 = vmatpush1.bf16.msra.mxu0 0
    %1857 = vmatprep.subr.bf16.mxu0 0
    %1858 = vmatpush1.bf16.msra.mxu0 0
    %1859 = vmatprep.subr.bf16.mxu0 0
    %1860 = vmatpush1.bf16.msra.mxu0 0
    %1861 = vmatprep.subr.bf16.mxu0 0
    %1862 = vmatpush1.bf16.msra.mxu0 0
    %1863 = vmatprep.subr.bf16.mxu0 0
    %1864 = vmatpush1.bf16.msra.mxu0 %v1845
    %1865 = vmatprep.subr.bf16.mxu0 0
    %1866 = vmatpush1.bf16.msra.mxu0 %v1844
    %1867 = vmatprep.subr.bf16.mxu0 0
    %1868 = vmatpush2.bf16.msra.mxu0 0
    %1869 = vmatprep.subr.bf16.mxu0 0
    %1870 = vmatpush2.bf16.msra.mxu0 0
    %1871 = vmatprep.subr.bf16.mxu0 0
    %1872 = vmatpush2.bf16.msra.mxu0 0
    %1873 = vmatprep.subr.bf16.mxu0 0
    %1874 = vmatpush2.bf16.msra.mxu0 0
    %1875 = vmatprep.subr.bf16.mxu0 0
    %1876 = vmatpush2.bf16.msra.mxu0 0
    %1877 = vmatprep.subr.bf16.mxu0 0
    %1878 = vmatpush2.bf16.msra.mxu0 0
    %1879 = vmatprep.subr.bf16.mxu0 0
    %1880 = vmatpush2.bf16.msra.mxu0 0
    %1881 = vmatprep.subr.bf16.mxu0 0
    %1882 = vmatpush2.bf16.msra.mxu0 0
    %1883 = vmatprep.mubr.bf16.mxu0 0
    %1884 = vmatmul.mubr.bf16.gmra.mxu0 %v1849
    %v1885 = vpop.f32.mrf.mxu0
    %v1886 = vadd.f32 0.0, %v1885
    %v1887 = vpop.f32.mrf.mxu0
    %v1888 = vpop.f32.mrf.mxu0
    %v1889 = vpop.f32.mrf.mxu0
    %1890 = vdwg.mxu0
    %v1891 = vadd.f32 %v526, %v1886
    %v1892 = vtanh.pop %v1891
    %v1893 = vmul.f32 %v1892, 0.5
    %v1894 = vadd.f32 %v1893, 0.5
    %1896 = vrot.lane.b32.xlu0 %v1803, 32
    %v1897 = vpop.permute.xlu0 %1896
    %v1899 = vmul.f32 %v1894, %v1897
    %1901 = vrot.lane.b32.xlu0 %v1892, 32
    %v1902 = vpop.permute.xlu0 %1901
    %v1904 = vmul.f32 %v1894, %v1902
    %1906 = vrot.lane.b32.xlu0 %v1904, 32
    %v1907 = vpop.permute.xlu0 %1906
    %v1909 = vadd.f32 %v1899, %v1907
    %v1910 = vtanh.pop %v1909
    %1912 = vrot.lane.b32.xlu0 %v1910, 32
    %v1913 = vpop.permute.xlu0 %1912
    %v1915 = vmul.f32 %v1894, %v1913
    %1916 = vrot.lane.b32.xlu0 %v1826, 64
    %v1917 = vpop.permute.xlu0 %1916
    %v1919 = vmul.f32 %v1915, %v1917
    %1921 = vrot.lane.b32.xlu0 %v1919, 64
    %v1922 = vpop.permute.xlu0 %1921
    %v1924 = vsel %vm665, %v1922, 0.0
    %1925 = vadd.xlane.f32.xlu0 %v1924
    %v1926 = vpop.xlane.xlu0 %1925
    %v1927 = vadd.f32 %v1926, %v1832
    %v1928 = vxor.u32 %v1927, 2147483648
    %v1929 = vmul.f32 %v1928, 1.442695
    %v1930 = vpow.pop %v1929
    %v1931 = vadd.f32 %v1930, 1.0
    %v1932 = vrcp.pop %v1931
    %v1933 = vmul.f32 1.0, %v1932
    %v1934 = vpack.c.bf16 %v1915, %v1915
    %1936 = vrot.lane.b32.xlu0 %v1934, 64
    %v1937 = vpop.permute.xlu0 %1936
    %v1942 = vunpack.c.l.b16 %v1810
    %v1943 = vunpack.c.l.b16 %v1811
    %v1944 = vunpack.c.l.b16 %v1812
    %v1945 = vunpack.c.l.b16 %v1813
    %v1946 = vpack.c.b16 %v1943, %v1942
    %v1947 = vpack.c.b16 %v1945, %v1944
    %v1951 = vsel %vm665, %v1937, 0
    %1953 = vmatprep.subr.bf16.mxu0 0
    %1954 = vmatpush1.bf16.msra.mxu0 0
    %1955 = vmatprep.subr.bf16.mxu0 0
    %1956 = vmatpush1.bf16.msra.mxu0 0
    %1957 = vmatprep.subr.bf16.mxu0 0
    %1958 = vmatpush1.bf16.msra.mxu0 0
    %1959 = vmatprep.subr.bf16.mxu0 0
    %1960 = vmatpush1.bf16.msra.mxu0 0
    %1961 = vmatprep.subr.bf16.mxu0 0
    %1962 = vmatpush1.bf16.msra.mxu0 0
    %1963 = vmatprep.subr.bf16.mxu0 0
    %1964 = vmatpush1.bf16.msra.mxu0 0
    %1965 = vmatprep.subr.bf16.mxu0 0
    %1966 = vmatpush1.bf16.msra.mxu0 %v1947
    %1967 = vmatprep.subr.bf16.mxu0 0
    %1968 = vmatpush1.bf16.msra.mxu0 %v1946
    %1969 = vmatprep.subr.bf16.mxu0 0
    %1970 = vmatpush2.bf16.msra.mxu0 0
    %1971 = vmatprep.subr.bf16.mxu0 0
    %1972 = vmatpush2.bf16.msra.mxu0 0
    %1973 = vmatprep.subr.bf16.mxu0 0
    %1974 = vmatpush2.bf16.msra.mxu0 0
    %1975 = vmatprep.subr.bf16.mxu0 0
    %1976 = vmatpush2.bf16.msra.mxu0 0
    %1977 = vmatprep.subr.bf16.mxu0 0
    %1978 = vmatpush2.bf16.msra.mxu0 0
    %1979 = vmatprep.subr.bf16.mxu0 0
    %1980 = vmatpush2.bf16.msra.mxu0 0
    %1981 = vmatprep.subr.bf16.mxu0 0
    %1982 = vmatpush2.bf16.msra.mxu0 0
    %1983 = vmatprep.subr.bf16.mxu0 0
    %1984 = vmatpush2.bf16.msra.mxu0 0
    %1985 = vmatprep.mubr.bf16.mxu0 0
    %1986 = vmatmul.mubr.bf16.gmra.mxu0 %v1951
    %v1987 = vpop.f32.mrf.mxu0
    %v1988 = vadd.f32 %v1819, %v1987
    %v1989 = vpop.f32.mrf.mxu0
    %v1990 = vpop.f32.mrf.mxu0
    %v1991 = vpop.f32.mrf.mxu0
    %1992 = vdwg.mxu0
    %v1993 = vsub.f32 1.0, %v1933
    %1995 = vset.pattern.permute.xlu0 0
    %1996 = vperm.xlu0 %1995, %v1993
    %v1997 = vpop.permute.xlu0 %1996
    %v1999 = vmul.f32 %v1997, %v1988
    %2001 = vset.pattern.permute.xlu0 0
    %2002 = vperm.xlu0 %2001, %v1933
    %v2003 = vpop.permute.xlu0 %2002
    %v2005 = vmul.f32 %v2003, %v559
    %v2006 = vadd.f32 %v1999, %v2005
    %s2007 = scalar_lea.vmem [#allocation17], 8
    %2008 = vst [vmem:[%s2007] sm:$0xff] %v2006
    %2009 = vmatprep.subr.bf16.mxu0 0
    %2010 = vmatpush1.bf16.msra.mxu0 0
    %2011 = vmatprep.subr.bf16.mxu0 0
    %2012 = vmatpush1.bf16.msra.mxu0 0
    %2013 = vmatprep.subr.bf16.mxu0 0
    %2014 = vmatpush1.bf16.msra.mxu0 0
    %2015 = vmatprep.subr.bf16.mxu0 0
    %2016 = vmatpush1.bf16.msra.mxu0 0
    %2017 = vmatprep.subr.bf16.mxu0 0
    %2018 = vmatpush1.bf16.msra.mxu0 0
    %2019 = vmatprep.subr.bf16.mxu0 0
    %2020 = vmatpush1.bf16.msra.mxu0 0
    %2021 = vmatprep.subr.bf16.mxu0 0
    %2022 = vmatpush1.bf16.msra.mxu0 %v1845
    %2023 = vmatprep.subr.bf16.mxu0 0
    %2024 = vmatpush1.bf16.msra.mxu0 %v1844
    %2025 = vmatprep.subr.bf16.mxu0 0
    %2026 = vmatpush2.bf16.msra.mxu0 0
    %2027 = vmatprep.subr.bf16.mxu0 0
    %2028 = vmatpush2.bf16.msra.mxu0 0
    %2029 = vmatprep.subr.bf16.mxu0 0
    %2030 = vmatpush2.bf16.msra.mxu0 0
    %2031 = vmatprep.subr.bf16.mxu0 0
    %2032 = vmatpush2.bf16.msra.mxu0 0
    %2033 = vmatprep.subr.bf16.mxu0 0
    %2034 = vmatpush2.bf16.msra.mxu0 0
    %2035 = vmatprep.subr.bf16.mxu0 0
    %2036 = vmatpush2.bf16.msra.mxu0 0
    %2037 = vmatprep.subr.bf16.mxu0 0
    %2038 = vmatpush2.bf16.msra.mxu0 0
    %2039 = vmatprep.subr.bf16.mxu0 0
    %2040 = vmatpush2.bf16.msra.mxu0 0
    %2041 = vmatprep.mubr.bf16.mxu0 0
    %2042 = vmatmul.mubr.bf16.gmra.mxu0 %v1951
    %v2043 = vpop.f32.mrf.mxu0
    %v2044 = vadd.f32 0.0, %v2043
    %v2045 = vpop.f32.mrf.mxu0
    %v2046 = vpop.f32.mrf.mxu0
    %v2047 = vpop.f32.mrf.mxu0
    %2048 = vdwg.mxu0
    %v2049 = vadd.f32 %v531, %v2044
    %v2050 = vtanh.pop %v2049
    %v2051 = vmul.f32 %v2050, 0.5
    %v2052 = vadd.f32 %v2051, 0.5
    %v2053 = vmul.f32 %v2052, %v1909
    %2055 = vrot.lane.b32.xlu0 %v2050, 32
    %v2056 = vpop.permute.xlu0 %2055
    %v2058 = vmul.f32 %v2052, %v2056
    %2060 = vrot.lane.b32.xlu0 %v2058, 32
    %v2061 = vpop.permute.xlu0 %2060
    %v2063 = vadd.f32 %v2053, %v2061
    %v2064 = vtanh.pop %v2063
    %2066 = vrot.lane.b32.xlu0 %v2064, 32
    %v2067 = vpop.permute.xlu0 %2066
    %v2069 = vmul.f32 %v2052, %v2067
    %v2070 = vmul.f32 %v2069, %v1917
    %2072 = vrot.lane.b32.xlu0 %v2070, 64
    %v2073 = vpop.permute.xlu0 %2072
    %v2075 = vsel %vm665, %v2073, 0.0
    %2076 = vadd.xlane.f32.xlu0 %v2075
    %v2077 = vpop.xlane.xlu0 %2076
    %v2078 = vadd.f32 %v2077, %v1832
    %v2079 = vxor.u32 %v2078, 2147483648
    %v2080 = vmul.f32 %v2079, 1.442695
    %v2081 = vpow.pop %v2080
    %v2082 = vadd.f32 %v2081, 1.0
    %v2083 = vrcp.pop %v2082
    %v2084 = vmul.f32 1.0, %v2083
    %v2085 = vpack.c.bf16 %v2069, %v2069
    %2087 = vrot.lane.b32.xlu0 %v2085, 64
    %v2088 = vpop.permute.xlu0 %2087
    %v2090 = vsel %vm665, %v2088, 0
    %2092 = vmatprep.subr.bf16.mxu0 0
    %2093 = vmatpush1.bf16.msra.mxu0 0
    %2094 = vmatprep.subr.bf16.mxu0 0
    %2095 = vmatpush1.bf16.msra.mxu0 0
    %2096 = vmatprep.subr.bf16.mxu0 0
    %2097 = vmatpush1.bf16.msra.mxu0 0
    %2098 = vmatprep.subr.bf16.mxu0 0
    %2099 = vmatpush1.bf16.msra.mxu0 0
    %2100 = vmatprep.subr.bf16.mxu0 0
    %2101 = vmatpush1.bf16.msra.mxu0 0
    %2102 = vmatprep.subr.bf16.mxu0 0
    %2103 = vmatpush1.bf16.msra.mxu0 0
    %2104 = vmatprep.subr.bf16.mxu0 0
    %2105 = vmatpush1.bf16.msra.mxu0 %v1947
    %2106 = vmatprep.subr.bf16.mxu0 0
    %2107 = vmatpush1.bf16.msra.mxu0 %v1946
    %2108 = vmatprep.subr.bf16.mxu0 0
    %2109 = vmatpush2.bf16.msra.mxu0 0
    %2110 = vmatprep.subr.bf16.mxu0 0
    %2111 = vmatpush2.bf16.msra.mxu0 0
    %2112 = vmatprep.subr.bf16.mxu0 0
    %2113 = vmatpush2.bf16.msra.mxu0 0
    %2114 = vmatprep.subr.bf16.mxu0 0
    %2115 = vmatpush2.bf16.msra.mxu0 0
    %2116 = vmatprep.subr.bf16.mxu0 0
    %2117 = vmatpush2.bf16.msra.mxu0 0
    %2118 = vmatprep.subr.bf16.mxu0 0
    %2119 = vmatpush2.bf16.msra.mxu0 0
    %2120 = vmatprep.subr.bf16.mxu0 0
    %2121 = vmatpush2.bf16.msra.mxu0 0
    %2122 = vmatprep.subr.bf16.mxu0 0
    %2123 = vmatpush2.bf16.msra.mxu0 0
    %2124 = vmatprep.mubr.bf16.mxu0 0
    %2125 = vmatmul.mubr.bf16.gmra.mxu0 %v2090
    %v2126 = vpop.f32.mrf.mxu0
    %v2127 = vadd.f32 %v1819, %v2126
    %v2128 = vpop.f32.mrf.mxu0
    %v2129 = vpop.f32.mrf.mxu0
    %v2130 = vpop.f32.mrf.mxu0
    %2131 = vdwg.mxu0
    %v2132 = vsub.f32 1.0, %v2084
    %2134 = vset.pattern.permute.xlu0 0
    %2135 = vperm.xlu0 %2134, %v2132
    %v2136 = vpop.permute.xlu0 %2135
    %v2138 = vmul.f32 %v2136, %v2127
    %2140 = vset.pattern.permute.xlu0 0
    %2141 = vperm.xlu0 %2140, %v2084
    %v2142 = vpop.permute.xlu0 %2141
    %v2144 = vmul.f32 %v2142, %v559
    %v2145 = vadd.f32 %v2138, %v2144
    %s2146 = scalar_lea.vmem [#allocation17], 16
    %2147 = vst [vmem:[%s2146] sm:$0xff] %v2145
    %2148 = vmatprep.subr.bf16.mxu0 0
    %2149 = vmatpush1.bf16.msra.mxu0 0
    %2150 = vmatprep.subr.bf16.mxu0 0
    %2151 = vmatpush1.bf16.msra.mxu0 0
    %2152 = vmatprep.subr.bf16.mxu0 0
    %2153 = vmatpush1.bf16.msra.mxu0 0
    %2154 = vmatprep.subr.bf16.mxu0 0
    %2155 = vmatpush1.bf16.msra.mxu0 0
    %2156 = vmatprep.subr.bf16.mxu0 0
    %2157 = vmatpush1.bf16.msra.mxu0 0
    %2158 = vmatprep.subr.bf16.mxu0 0
    %2159 = vmatpush1.bf16.msra.mxu0 0
    %2160 = vmatprep.subr.bf16.mxu0 0
    %2161 = vmatpush1.bf16.msra.mxu0 %v1845
    %2162 = vmatprep.subr.bf16.mxu0 0
    %2163 = vmatpush1.bf16.msra.mxu0 %v1844
    %2164 = vmatprep.subr.bf16.mxu0 0
    %2165 = vmatpush2.bf16.msra.mxu0 0
    %2166 = vmatprep.subr.bf16.mxu0 0
    %2167 = vmatpush2.bf16.msra.mxu0 0
    %2168 = vmatprep.subr.bf16.mxu0 0
    %2169 = vmatpush2.bf16.msra.mxu0 0
    %2170 = vmatprep.subr.bf16.mxu0 0
    %2171 = vmatpush2.bf16.msra.mxu0 0
    %2172 = vmatprep.subr.bf16.mxu0 0
    %2173 = vmatpush2.bf16.msra.mxu0 0
    %2174 = vmatprep.subr.bf16.mxu0 0
    %2175 = vmatpush2.bf16.msra.mxu0 0
    %2176 = vmatprep.subr.bf16.mxu0 0
    %2177 = vmatpush2.bf16.msra.mxu0 0
    %2178 = vmatprep.subr.bf16.mxu0 0
    %2179 = vmatpush2.bf16.msra.mxu0 0
    %2180 = vmatprep.mubr.bf16.mxu0 0
    %2181 = vmatmul.mubr.bf16.gmra.mxu0 %v2090
    %v2182 = vpop.f32.mrf.mxu0
    %v2183 = vadd.f32 0.0, %v2182
    %v2184 = vpop.f32.mrf.mxu0
    %v2185 = vpop.f32.mrf.mxu0
    %v2186 = vpop.f32.mrf.mxu0
    %2187 = vdwg.mxu0
    %v2188 = vadd.f32 %v536, %v2183
    %v2189 = vtanh.pop %v2188
    %v2190 = vmul.f32 %v2189, 0.5
    %v2191 = vadd.f32 %v2190, 0.5
    %v2192 = vmul.f32 %v2191, %v2063
    %2194 = vrot.lane.b32.xlu0 %v2189, 32
    %v2195 = vpop.permute.xlu0 %2194
    %v2197 = vmul.f32 %v2191, %v2195
    %2199 = vrot.lane.b32.xlu0 %v2197, 32
    %v2200 = vpop.permute.xlu0 %2199
    %v2202 = vadd.f32 %v2192, %v2200
    %v2203 = vtanh.pop %v2202
    %2205 = vrot.lane.b32.xlu0 %v2203, 32
    %v2206 = vpop.permute.xlu0 %2205
    %v2208 = vmul.f32 %v2191, %v2206
    %v2209 = vmul.f32 %v2208, %v1917
    %2211 = vrot.lane.b32.xlu0 %v2209, 64
    %v2212 = vpop.permute.xlu0 %2211
    %v2214 = vsel %vm665, %v2212, 0.0
    %2215 = vadd.xlane.f32.xlu0 %v2214
    %v2216 = vpop.xlane.xlu0 %2215
    %v2217 = vadd.f32 %v2216, %v1832
    %v2218 = vxor.u32 %v2217, 2147483648
    %v2219 = vmul.f32 %v2218, 1.442695
    %v2220 = vpow.pop %v2219
    %v2221 = vadd.f32 %v2220, 1.0
    %v2222 = vrcp.pop %v2221
    %v2223 = vmul.f32 1.0, %v2222
    %v2224 = vpack.c.bf16 %v2208, %v2208
    %2226 = vrot.lane.b32.xlu0 %v2224, 64
    %v2227 = vpop.permute.xlu0 %2226
    %v2229 = vsel %vm665, %v2227, 0
    %2231 = vmatprep.subr.bf16.mxu0 0
    %2232 = vmatpush1.bf16.msra.mxu0 0
    %2233 = vmatprep.subr.bf16.mxu0 0
    %2234 = vmatpush1.bf16.msra.mxu0 0
    %2235 = vmatprep.subr.bf16.mxu0 0
    %2236 = vmatpush1.bf16.msra.mxu0 0
    %2237 = vmatprep.subr.bf16.mxu0 0
    %2238 = vmatpush1.bf16.msra.mxu0 0
    %2239 = vmatprep.subr.bf16.mxu0 0
    %2240 = vmatpush1.bf16.msra.mxu0 0
    %2241 = vmatprep.subr.bf16.mxu0 0
    %2242 = vmatpush1.bf16.msra.mxu0 0
    %2243 = vmatprep.subr.bf16.mxu0 0
    %2244 = vmatpush1.bf16.msra.mxu0 %v1947
    %2245 = vmatprep.subr.bf16.mxu0 0
    %2246 = vmatpush1.bf16.msra.mxu0 %v1946
    %2247 = vmatprep.subr.bf16.mxu0 0
    %2248 = vmatpush2.bf16.msra.mxu0 0
    %2249 = vmatprep.subr.bf16.mxu0 0
    %2250 = vmatpush2.bf16.msra.mxu0 0
    %2251 = vmatprep.subr.bf16.mxu0 0
    %2252 = vmatpush2.bf16.msra.mxu0 0
    %2253 = vmatprep.subr.bf16.mxu0 0
    %2254 = vmatpush2.bf16.msra.mxu0 0
    %2255 = vmatprep.subr.bf16.mxu0 0
    %2256 = vmatpush2.bf16.msra.mxu0 0
    %2257 = vmatprep.subr.bf16.mxu0 0
    %2258 = vmatpush2.bf16.msra.mxu0 0
    %2259 = vmatprep.subr.bf16.mxu0 0
    %2260 = vmatpush2.bf16.msra.mxu0 0
    %2261 = vmatprep.subr.bf16.mxu0 0
    %2262 = vmatpush2.bf16.msra.mxu0 0
    %2263 = vmatprep.mubr.bf16.mxu0 0
    %2264 = vmatmul.mubr.bf16.gmra.mxu0 %v2229
    %v2265 = vpop.f32.mrf.mxu0
    %v2266 = vadd.f32 %v1819, %v2265
    %v2267 = vpop.f32.mrf.mxu0
    %v2268 = vpop.f32.mrf.mxu0
    %v2269 = vpop.f32.mrf.mxu0
    %2270 = vdwg.mxu0
    %v2271 = vsub.f32 1.0, %v2223
    %2273 = vset.pattern.permute.xlu0 0
    %2274 = vperm.xlu0 %2273, %v2271
    %v2275 = vpop.permute.xlu0 %2274
    %v2277 = vmul.f32 %v2275, %v2266
    %2279 = vset.pattern.permute.xlu0 0
    %2280 = vperm.xlu0 %2279, %v2223
    %v2281 = vpop.permute.xlu0 %2280
    %v2283 = vmul.f32 %v2281, %v559
    %v2284 = vadd.f32 %v2277, %v2283
    %s2285 = scalar_lea.vmem [#allocation17], 24
    %2286 = vst [vmem:[%s2285] sm:$0xff] %v2284
    %2287 = vmatprep.subr.bf16.mxu0 0
    %2288 = vmatpush1.bf16.msra.mxu0 0
    %2289 = vmatprep.subr.bf16.mxu0 0
    %2290 = vmatpush1.bf16.msra.mxu0 0
    %2291 = vmatprep.subr.bf16.mxu0 0
    %2292 = vmatpush1.bf16.msra.mxu0 0
    %2293 = vmatprep.subr.bf16.mxu0 0
    %2294 = vmatpush1.bf16.msra.mxu0 0
    %2295 = vmatprep.subr.bf16.mxu0 0
    %2296 = vmatpush1.bf16.msra.mxu0 0
    %2297 = vmatprep.subr.bf16.mxu0 0
    %2298 = vmatpush1.bf16.msra.mxu0 0
    %2299 = vmatprep.subr.bf16.mxu0 0
    %2300 = vmatpush1.bf16.msra.mxu0 %v1845
    %2301 = vmatprep.subr.bf16.mxu0 0
    %2302 = vmatpush1.bf16.msra.mxu0 %v1844
    %2303 = vmatprep.subr.bf16.mxu0 0
    %2304 = vmatpush2.bf16.msra.mxu0 0
    %2305 = vmatprep.subr.bf16.mxu0 0
    %2306 = vmatpush2.bf16.msra.mxu0 0
    %2307 = vmatprep.subr.bf16.mxu0 0
    %2308 = vmatpush2.bf16.msra.mxu0 0
    %2309 = vmatprep.subr.bf16.mxu0 0
    %2310 = vmatpush2.bf16.msra.mxu0 0
    %2311 = vmatprep.subr.bf16.mxu0 0
    %2312 = vmatpush2.bf16.msra.mxu0 0
    %2313 = vmatprep.subr.bf16.mxu0 0
    %2314 = vmatpush2.bf16.msra.mxu0 0
    %2315 = vmatprep.subr.bf16.mxu0 0
    %2316 = vmatpush2.bf16.msra.mxu0 0
    %2317 = vmatprep.subr.bf16.mxu0 0
    %2318 = vmatpush2.bf16.msra.mxu0 0
    %2319 = vmatprep.mubr.bf16.mxu0 0
    %2320 = vmatmul.mubr.bf16.gmra.mxu0 %v2229
    %v2321 = vpop.f32.mrf.mxu0
    %v2322 = vadd.f32 0.0, %v2321
    %v2323 = vpop.f32.mrf.mxu0
    %v2324 = vpop.f32.mrf.mxu0
    %v2325 = vpop.f32.mrf.mxu0
    %2326 = vdwg.mxu0
    %v2327 = vadd.f32 %v541, %v2322
    %v2328 = vtanh.pop %v2327
    %v2329 = vmul.f32 %v2328, 0.5
    %v2330 = vadd.f32 %v2329, 0.5
    %v2331 = vmul.f32 %v2330, %v2202
    %2333 = vrot.lane.b32.xlu0 %v2328, 32
    %v2334 = vpop.permute.xlu0 %2333
    %v2336 = vmul.f32 %v2330, %v2334
    %2338 = vrot.lane.b32.xlu0 %v2336, 32
    %v2339 = vpop.permute.xlu0 %2338
    %v2341 = vadd.f32 %v2331, %v2339
    %v2342 = vtanh.pop %v2341
    %2344 = vrot.lane.b32.xlu0 %v2342, 32
    %v2345 = vpop.permute.xlu0 %2344
    %v2347 = vmul.f32 %v2330, %v2345
    %v2348 = vmul.f32 %v2347, %v1917
    %2350 = vrot.lane.b32.xlu0 %v2348, 64
    %v2351 = vpop.permute.xlu0 %2350
    %v2353 = vsel %vm665, %v2351, 0.0
    %2354 = vadd.xlane.f32.xlu0 %v2353
    %v2355 = vpop.xlane.xlu0 %2354
    %v2356 = vadd.f32 %v2355, %v1832
    %v2357 = vxor.u32 %v2356, 2147483648
    %v2358 = vmul.f32 %v2357, 1.442695
    %v2359 = vpow.pop %v2358
    %v2360 = vadd.f32 %v2359, 1.0
    %v2361 = vrcp.pop %v2360
    %v2362 = vmul.f32 1.0, %v2361
    %v2363 = vpack.c.bf16 %v2347, %v2347
    %2365 = vrot.lane.b32.xlu0 %v2363, 64
    %v2366 = vpop.permute.xlu0 %2365
    %v2368 = vsel %vm665, %v2366, 0
    %2370 = vmatprep.subr.bf16.mxu0 0
    %2371 = vmatpush1.bf16.msra.mxu0 0
    %2372 = vmatprep.subr.bf16.mxu0 0
    %2373 = vmatpush1.bf16.msra.mxu0 0
    %2374 = vmatprep.subr.bf16.mxu0 0
    %2375 = vmatpush1.bf16.msra.mxu0 0
    %2376 = vmatprep.subr.bf16.mxu0 0
    %2377 = vmatpush1.bf16.msra.mxu0 0
    %2378 = vmatprep.subr.bf16.mxu0 0
    %2379 = vmatpush1.bf16.msra.mxu0 0
    %2380 = vmatprep.subr.bf16.mxu0 0
    %2381 = vmatpush1.bf16.msra.mxu0 0
    %2382 = vmatprep.subr.bf16.mxu0 0
    %2383 = vmatpush1.bf16.msra.mxu0 %v1947
    %2384 = vmatprep.subr.bf16.mxu0 0
    %2385 = vmatpush1.bf16.msra.mxu0 %v1946
    %2386 = vmatprep.subr.bf16.mxu0 0
    %2387 = vmatpush2.bf16.msra.mxu0 0
    %2388 = vmatprep.subr.bf16.mxu0 0
    %2389 = vmatpush2.bf16.msra.mxu0 0
    %2390 = vmatprep.subr.bf16.mxu0 0
    %2391 = vmatpush2.bf16.msra.mxu0 0
    %2392 = vmatprep.subr.bf16.mxu0 0
    %2393 = vmatpush2.bf16.msra.mxu0 0
    %2394 = vmatprep.subr.bf16.mxu0 0
    %2395 = vmatpush2.bf16.msra.mxu0 0
    %2396 = vmatprep.subr.bf16.mxu0 0
    %2397 = vmatpush2.bf16.msra.mxu0 0
    %2398 = vmatprep.subr.bf16.mxu0 0
    %2399 = vmatpush2.bf16.msra.mxu0 0
    %2400 = vmatprep.subr.bf16.mxu0 0
    %2401 = vmatpush2.bf16.msra.mxu0 0
    %2402 = vmatprep.mubr.bf16.mxu0 0
    %2403 = vmatmul.mubr.bf16.gmra.mxu0 %v2368
    %v2404 = vpop.f32.mrf.mxu0
    %v2405 = vadd.f32 %v1819, %v2404
    %v2406 = vpop.f32.mrf.mxu0
    %v2407 = vpop.f32.mrf.mxu0
    %v2408 = vpop.f32.mrf.mxu0
    %2409 = vdwg.mxu0
    %v2410 = vsub.f32 1.0, %v2362
    %2412 = vset.pattern.permute.xlu0 0
    %2413 = vperm.xlu0 %2412, %v2410
    %v2414 = vpop.permute.xlu0 %2413
    %v2416 = vmul.f32 %v2414, %v2405
    %2418 = vset.pattern.permute.xlu0 0
    %2419 = vperm.xlu0 %2418, %v2362
    %v2420 = vpop.permute.xlu0 %2419
    %v2422 = vmul.f32 %v2420, %v559
    %v2423 = vadd.f32 %v2416, %v2422
    %s2424 = scalar_lea.vmem [#allocation17], 32
    %2425 = vst [vmem:[%s2424] sm:$0xff] %v2423
    %2426 = vmatprep.subr.bf16.mxu0 0
    %2427 = vmatpush1.bf16.msra.mxu0 0
    %2428 = vmatprep.subr.bf16.mxu0 0
    %2429 = vmatpush1.bf16.msra.mxu0 0
    %2430 = vmatprep.subr.bf16.mxu0 0
    %2431 = vmatpush1.bf16.msra.mxu0 0
    %2432 = vmatprep.subr.bf16.mxu0 0
    %2433 = vmatpush1.bf16.msra.mxu0 0
    %2434 = vmatprep.subr.bf16.mxu0 0
    %2435 = vmatpush1.bf16.msra.mxu0 0
    %2436 = vmatprep.subr.bf16.mxu0 0
    %2437 = vmatpush1.bf16.msra.mxu0 0
    %2438 = vmatprep.subr.bf16.mxu0 0
    %2439 = vmatpush1.bf16.msra.mxu0 %v1845
    %2440 = vmatprep.subr.bf16.mxu0 0
    %2441 = vmatpush1.bf16.msra.mxu0 %v1844
    %2442 = vmatprep.subr.bf16.mxu0 0
    %2443 = vmatpush2.bf16.msra.mxu0 0
    %2444 = vmatprep.subr.bf16.mxu0 0
    %2445 = vmatpush2.bf16.msra.mxu0 0
    %2446 = vmatprep.subr.bf16.mxu0 0
    %2447 = vmatpush2.bf16.msra.mxu0 0
    %2448 = vmatprep.subr.bf16.mxu0 0
    %2449 = vmatpush2.bf16.msra.mxu0 0
    %2450 = vmatprep.subr.bf16.mxu0 0
    %2451 = vmatpush2.bf16.msra.mxu0 0
    %2452 = vmatprep.subr.bf16.mxu0 0
    %2453 = vmatpush2.bf16.msra.mxu0 0
    %2454 = vmatprep.subr.bf16.mxu0 0
    %2455 = vmatpush2.bf16.msra.mxu0 0
    %2456 = vmatprep.subr.bf16.mxu0 0
    %2457 = vmatpush2.bf16.msra.mxu0 0
    %2458 = vmatprep.mubr.bf16.mxu0 0
    %2459 = vmatmul.mubr.bf16.gmra.mxu0 %v2368
    %v2460 = vpop.f32.mrf.mxu0
    %v2461 = vadd.f32 0.0, %v2460
    %v2462 = vpop.f32.mrf.mxu0
    %v2463 = vpop.f32.mrf.mxu0
    %v2464 = vpop.f32.mrf.mxu0
    %2465 = vdwg.mxu0
    %v2466 = vadd.f32 %v546, %v2461
    %v2467 = vtanh.pop %v2466
    %v2468 = vmul.f32 %v2467, 0.5
    %v2469 = vadd.f32 %v2468, 0.5
    %v2470 = vmul.f32 %v2469, %v2341
    %2472 = vrot.lane.b32.xlu0 %v2467, 32
    %v2473 = vpop.permute.xlu0 %2472
    %v2475 = vmul.f32 %v2469, %v2473
    %2477 = vrot.lane.b32.xlu0 %v2475, 32
    %v2478 = vpop.permute.xlu0 %2477
    %v2480 = vadd.f32 %v2470, %v2478
    %v2481 = vtanh.pop %v2480
    %2483 = vrot.lane.b32.xlu0 %v2481, 32
    %v2484 = vpop.permute.xlu0 %2483
    %v2486 = vmul.f32 %v2469, %v2484
    %v2487 = vmul.f32 %v2486, %v1917
    %2489 = vrot.lane.b32.xlu0 %v2487, 64
    %v2490 = vpop.permute.xlu0 %2489
    %v2492 = vsel %vm665, %v2490, 0.0
    %2493 = vadd.xlane.f32.xlu0 %v2492
    %v2494 = vpop.xlane.xlu0 %2493
    %v2495 = vadd.f32 %v2494, %v1832
    %v2496 = vxor.u32 %v2495, 2147483648
    %v2497 = vmul.f32 %v2496, 1.442695
    %v2498 = vpow.pop %v2497
    %v2499 = vadd.f32 %v2498, 1.0
    %v2500 = vrcp.pop %v2499
    %v2501 = vmul.f32 1.0, %v2500
    %v2502 = vpack.c.bf16 %v2486, %v2486
    %2504 = vrot.lane.b32.xlu0 %v2502, 64
    %v2505 = vpop.permute.xlu0 %2504
    %v2507 = vsel %vm665, %v2505, 0
    %2509 = vmatprep.subr.bf16.mxu0 0
    %2510 = vmatpush1.bf16.msra.mxu0 0
    %2511 = vmatprep.subr.bf16.mxu0 0
    %2512 = vmatpush1.bf16.msra.mxu0 0
    %2513 = vmatprep.subr.bf16.mxu0 0
    %2514 = vmatpush1.bf16.msra.mxu0 0
    %2515 = vmatprep.subr.bf16.mxu0 0
    %2516 = vmatpush1.bf16.msra.mxu0 0
    %2517 = vmatprep.subr.bf16.mxu0 0
    %2518 = vmatpush1.bf16.msra.mxu0 0
    %2519 = vmatprep.subr.bf16.mxu0 0
    %2520 = vmatpush1.bf16.msra.mxu0 0
    %2521 = vmatprep.subr.bf16.mxu0 0
    %2522 = vmatpush1.bf16.msra.mxu0 %v1947
    %2523 = vmatprep.subr.bf16.mxu0 0
    %2524 = vmatpush1.bf16.msra.mxu0 %v1946
    %2525 = vmatprep.subr.bf16.mxu0 0
    %2526 = vmatpush2.bf16.msra.mxu0 0
    %2527 = vmatprep.subr.bf16.mxu0 0
    %2528 = vmatpush2.bf16.msra.mxu0 0
    %2529 = vmatprep.subr.bf16.mxu0 0
    %2530 = vmatpush2.bf16.msra.mxu0 0
    %2531 = vmatprep.subr.bf16.mxu0 0
    %2532 = vmatpush2.bf16.msra.mxu0 0
    %2533 = vmatprep.subr.bf16.mxu0 0
    %2534 = vmatpush2.bf16.msra.mxu0 0
    %2535 = vmatprep.subr.bf16.mxu0 0
    %2536 = vmatpush2.bf16.msra.mxu0 0
    %2537 = vmatprep.subr.bf16.mxu0 0
    %2538 = vmatpush2.bf16.msra.mxu0 0
    %2539 = vmatprep.subr.bf16.mxu0 0
    %2540 = vmatpush2.bf16.msra.mxu0 0
    %2541 = vmatprep.mubr.bf16.mxu0 0
    %2542 = vmatmul.mubr.bf16.gmra.mxu0 %v2507
    %v2543 = vpop.f32.mrf.mxu0
    %v2544 = vadd.f32 %v1819, %v2543
    %v2545 = vpop.f32.mrf.mxu0
    %v2546 = vpop.f32.mrf.mxu0
    %v2547 = vpop.f32.mrf.mxu0
    %2548 = vdwg.mxu0
    %v2549 = vsub.f32 1.0, %v2501
    %2551 = vset.pattern.permute.xlu0 0
    %2552 = vperm.xlu0 %2551, %v2549
    %v2553 = vpop.permute.xlu0 %2552
    %v2555 = vmul.f32 %v2553, %v2544
    %2557 = vset.pattern.permute.xlu0 0
    %2558 = vperm.xlu0 %2557, %v2501
    %v2559 = vpop.permute.xlu0 %2558
    %v2561 = vmul.f32 %v2559, %v559
    %v2562 = vadd.f32 %v2555, %v2561
    %s2563 = scalar_lea.vmem [#allocation17], 40
    %2564 = vst [vmem:[%s2563] sm:$0xff] %v2562
    %2565 = vmatprep.subr.bf16.mxu0 0
    %2566 = vmatpush1.bf16.msra.mxu0 0
    %2567 = vmatprep.subr.bf16.mxu0 0
    %2568 = vmatpush1.bf16.msra.mxu0 0
    %2569 = vmatprep.subr.bf16.mxu0 0
    %2570 = vmatpush1.bf16.msra.mxu0 0
    %2571 = vmatprep.subr.bf16.mxu0 0
    %2572 = vmatpush1.bf16.msra.mxu0 0
    %2573 = vmatprep.subr.bf16.mxu0 0
    %2574 = vmatpush1.bf16.msra.mxu0 0
    %2575 = vmatprep.subr.bf16.mxu0 0
    %2576 = vmatpush1.bf16.msra.mxu0 0
    %2577 = vmatprep.subr.bf16.mxu0 0
    %2578 = vmatpush1.bf16.msra.mxu0 %v1845
    %2579 = vmatprep.subr.bf16.mxu0 0
    %2580 = vmatpush1.bf16.msra.mxu0 %v1844
    %2581 = vmatprep.subr.bf16.mxu0 0
    %2582 = vmatpush2.bf16.msra.mxu0 0
    %2583 = vmatprep.subr.bf16.mxu0 0
    %2584 = vmatpush2.bf16.msra.mxu0 0
    %2585 = vmatprep.subr.bf16.mxu0 0
    %2586 = vmatpush2.bf16.msra.mxu0 0
    %2587 = vmatprep.subr.bf16.mxu0 0
    %2588 = vmatpush2.bf16.msra.mxu0 0
    %2589 = vmatprep.subr.bf16.mxu0 0
    %2590 = vmatpush2.bf16.msra.mxu0 0
    %2591 = vmatprep.subr.bf16.mxu0 0
    %2592 = vmatpush2.bf16.msra.mxu0 0
    %2593 = vmatprep.subr.bf16.mxu0 0
    %2594 = vmatpush2.bf16.msra.mxu0 0
    %2595 = vmatprep.subr.bf16.mxu0 0
    %2596 = vmatpush2.bf16.msra.mxu0 0
    %2597 = vmatprep.mubr.bf16.mxu0 0
    %2598 = vmatmul.mubr.bf16.gmra.mxu0 %v2507
    %v2599 = vpop.f32.mrf.mxu0
    %v2600 = vadd.f32 0.0, %v2599
    %v2601 = vpop.f32.mrf.mxu0
    %v2602 = vpop.f32.mrf.mxu0
    %v2603 = vpop.f32.mrf.mxu0
    %2604 = vdwg.mxu0
    %v2605 = vadd.f32 %v551, %v2600
    %v2606 = vtanh.pop %v2605
    %v2607 = vmul.f32 %v2606, 0.5
    %v2608 = vadd.f32 %v2607, 0.5
    %v2609 = vmul.f32 %v2608, %v2480
    %2611 = vrot.lane.b32.xlu0 %v2606, 32
    %v2612 = vpop.permute.xlu0 %2611
    %v2614 = vmul.f32 %v2608, %v2612
    %2616 = vrot.lane.b32.xlu0 %v2614, 32
    %v2617 = vpop.permute.xlu0 %2616
    %v2619 = vadd.f32 %v2609, %v2617
    %v2620 = vtanh.pop %v2619
    %2622 = vrot.lane.b32.xlu0 %v2620, 32
    %v2623 = vpop.permute.xlu0 %2622
    %v2625 = vmul.f32 %v2608, %v2623
    %v2626 = vmul.f32 %v2625, %v1917
    %2628 = vrot.lane.b32.xlu0 %v2626, 64
    %v2629 = vpop.permute.xlu0 %2628
    %v2631 = vsel %vm665, %v2629, 0.0
    %2632 = vadd.xlane.f32.xlu0 %v2631
    %v2633 = vpop.xlane.xlu0 %2632
    %v2634 = vadd.f32 %v2633, %v1832
    %v2635 = vxor.u32 %v2634, 2147483648
    %v2636 = vmul.f32 %v2635, 1.442695
    %v2637 = vpow.pop %v2636
    %v2638 = vadd.f32 %v2637, 1.0
    %v2639 = vrcp.pop %v2638
    %v2640 = vmul.f32 1.0, %v2639
    %v2641 = vpack.c.bf16 %v2625, %v2625
    %2643 = vrot.lane.b32.xlu0 %v2641, 64
    %v2644 = vpop.permute.xlu0 %2643
    %v2646 = vsel %vm665, %v2644, 0
    %2648 = vmatprep.subr.bf16.mxu0 0
    %2649 = vmatpush1.bf16.msra.mxu0 0
    %2650 = vmatprep.subr.bf16.mxu0 0
    %2651 = vmatpush1.bf16.msra.mxu0 0
    %2652 = vmatprep.subr.bf16.mxu0 0
    %2653 = vmatpush1.bf16.msra.mxu0 0
    %2654 = vmatprep.subr.bf16.mxu0 0
    %2655 = vmatpush1.bf16.msra.mxu0 0
    %2656 = vmatprep.subr.bf16.mxu0 0
    %2657 = vmatpush1.bf16.msra.mxu0 0
    %2658 = vmatprep.subr.bf16.mxu0 0
    %2659 = vmatpush1.bf16.msra.mxu0 0
    %2660 = vmatprep.subr.bf16.mxu0 0
    %2661 = vmatpush1.bf16.msra.mxu0 %v1947
    %2662 = vmatprep.subr.bf16.mxu0 0
    %2663 = vmatpush1.bf16.msra.mxu0 %v1946
    %2664 = vmatprep.subr.bf16.mxu0 0
    %2665 = vmatpush2.bf16.msra.mxu0 0
    %2666 = vmatprep.subr.bf16.mxu0 0
    %2667 = vmatpush2.bf16.msra.mxu0 0
    %2668 = vmatprep.subr.bf16.mxu0 0
    %2669 = vmatpush2.bf16.msra.mxu0 0
    %2670 = vmatprep.subr.bf16.mxu0 0
    %2671 = vmatpush2.bf16.msra.mxu0 0
    %2672 = vmatprep.subr.bf16.mxu0 0
    %2673 = vmatpush2.bf16.msra.mxu0 0
    %2674 = vmatprep.subr.bf16.mxu0 0
    %2675 = vmatpush2.bf16.msra.mxu0 0
    %2676 = vmatprep.subr.bf16.mxu0 0
    %2677 = vmatpush2.bf16.msra.mxu0 0
    %2678 = vmatprep.subr.bf16.mxu0 0
    %2679 = vmatpush2.bf16.msra.mxu0 0
    %2680 = vmatprep.mubr.bf16.mxu0 0
    %2681 = vmatmul.mubr.bf16.gmra.mxu0 %v2646
    %v2682 = vpop.f32.mrf.mxu0
    %v2683 = vadd.f32 %v1819, %v2682
    %v2684 = vpop.f32.mrf.mxu0
    %v2685 = vpop.f32.mrf.mxu0
    %v2686 = vpop.f32.mrf.mxu0
    %2687 = vdwg.mxu0
    %v2688 = vsub.f32 1.0, %v2640
    %2690 = vset.pattern.permute.xlu0 0
    %2691 = vperm.xlu0 %2690, %v2688
    %v2692 = vpop.permute.xlu0 %2691
    %v2694 = vmul.f32 %v2692, %v2683
    %2696 = vset.pattern.permute.xlu0 0
    %2697 = vperm.xlu0 %2696, %v2640
    %v2698 = vpop.permute.xlu0 %2697
    %v2700 = vmul.f32 %v2698, %v559
    %v2701 = vadd.f32 %v2694, %v2700
    %s2702 = scalar_lea.vmem [#allocation17], 48
    %2703 = vst [vmem:[%s2702] sm:$0xff] %v2701
    %2704 = vmatprep.subr.bf16.mxu0 0
    %2705 = vmatpush1.bf16.msra.mxu0 0
    %2706 = vmatprep.subr.bf16.mxu0 0
    %2707 = vmatpush1.bf16.msra.mxu0 0
    %2708 = vmatprep.subr.bf16.mxu0 0
    %2709 = vmatpush1.bf16.msra.mxu0 0
    %2710 = vmatprep.subr.bf16.mxu0 0
    %2711 = vmatpush1.bf16.msra.mxu0 0
    %2712 = vmatprep.subr.bf16.mxu0 0
    %2713 = vmatpush1.bf16.msra.mxu0 0
    %2714 = vmatprep.subr.bf16.mxu0 0
    %2715 = vmatpush1.bf16.msra.mxu0 0
    %2716 = vmatprep.subr.bf16.mxu0 0
    %2717 = vmatpush1.bf16.msra.mxu0 %v1845
    %2718 = vmatprep.subr.bf16.mxu0 0
    %2719 = vmatpush1.bf16.msra.mxu0 %v1844
    %2720 = vmatprep.subr.bf16.mxu0 0
    %2721 = vmatpush2.bf16.msra.mxu0 0
    %2722 = vmatprep.subr.bf16.mxu0 0
    %2723 = vmatpush2.bf16.msra.mxu0 0
    %2724 = vmatprep.subr.bf16.mxu0 0
    %2725 = vmatpush2.bf16.msra.mxu0 0
    %2726 = vmatprep.subr.bf16.mxu0 0
    %2727 = vmatpush2.bf16.msra.mxu0 0
    %2728 = vmatprep.subr.bf16.mxu0 0
    %2729 = vmatpush2.bf16.msra.mxu0 0
    %2730 = vmatprep.subr.bf16.mxu0 0
    %2731 = vmatpush2.bf16.msra.mxu0 0
    %2732 = vmatprep.subr.bf16.mxu0 0
    %2733 = vmatpush2.bf16.msra.mxu0 0
    %2734 = vmatprep.subr.bf16.mxu0 0
    %2735 = vmatpush2.bf16.msra.mxu0 0
    %2736 = vmatprep.mubr.bf16.mxu0 0
    %2737 = vmatmul.mubr.bf16.gmra.mxu0 %v2646
    %v2738 = vpop.f32.mrf.mxu0
    %v2739 = vadd.f32 0.0, %v2738
    %v2740 = vpop.f32.mrf.mxu0
    %v2741 = vpop.f32.mrf.mxu0
    %v2742 = vpop.f32.mrf.mxu0
    %2743 = vdwg.mxu0
    %v2744 = vadd.f32 %v556, %v2739
    %v2745 = vtanh.pop %v2744
    %v2746 = vmul.f32 %v2745, 0.5
    %v2747 = vadd.f32 %v2746, 0.5
    %v2748 = vmul.f32 %v2747, %v2619
    %2750 = vrot.lane.b32.xlu0 %v2745, 32
    %v2751 = vpop.permute.xlu0 %2750
    %v2753 = vmul.f32 %v2747, %v2751
    %2755 = vrot.lane.b32.xlu0 %v2753, 32
    %v2756 = vpop.permute.xlu0 %2755
    %v2758 = vadd.f32 %v2748, %v2756
    %v2759 = vtanh.pop %v2758
    %2761 = vrot.lane.b32.xlu0 %v2759, 32
    %v2762 = vpop.permute.xlu0 %2761
    %v2764 = vmul.f32 %v2747, %v2762
    %v2765 = vmul.f32 %v2764, %v1917
    %2767 = vrot.lane.b32.xlu0 %v2765, 64
    %v2768 = vpop.permute.xlu0 %2767
    %v2770 = vsel %vm665, %v2768, 0.0
    %2771 = vadd.xlane.f32.xlu0 %v2770
    %v2772 = vpop.xlane.xlu0 %2771
    %v2773 = vadd.f32 %v2772, %v1832
    %v2774 = vxor.u32 %v2773, 2147483648
    %v2775 = vmul.f32 %v2774, 1.442695
    %v2776 = vpow.pop %v2775
    %v2777 = vadd.f32 %v2776, 1.0
    %v2778 = vrcp.pop %v2777
    %v2779 = vmul.f32 1.0, %v2778
    %v2780 = vpack.c.bf16 %v2764, %v2764
    %2782 = vrot.lane.b32.xlu0 %v2780, 64
    %v2783 = vpop.permute.xlu0 %2782
    %v2785 = vsel %vm665, %v2783, 0
    %2787 = vmatprep.subr.bf16.mxu0 0
    %2788 = vmatpush1.bf16.msra.mxu0 0
    %2789 = vmatprep.subr.bf16.mxu0 0
    %2790 = vmatpush1.bf16.msra.mxu0 0
    %2791 = vmatprep.subr.bf16.mxu0 0
    %2792 = vmatpush1.bf16.msra.mxu0 0
    %2793 = vmatprep.subr.bf16.mxu0 0
    %2794 = vmatpush1.bf16.msra.mxu0 0
    %2795 = vmatprep.subr.bf16.mxu0 0
    %2796 = vmatpush1.bf16.msra.mxu0 0
    %2797 = vmatprep.subr.bf16.mxu0 0
    %2798 = vmatpush1.bf16.msra.mxu0 0
    %2799 = vmatprep.subr.bf16.mxu0 0
    %2800 = vmatpush1.bf16.msra.mxu0 %v1947
    %2801 = vmatprep.subr.bf16.mxu0 0
    %2802 = vmatpush1.bf16.msra.mxu0 %v1946
    %2803 = vmatprep.subr.bf16.mxu0 0
    %2804 = vmatpush2.bf16.msra.mxu0 0
    %2805 = vmatprep.subr.bf16.mxu0 0
    %2806 = vmatpush2.bf16.msra.mxu0 0
    %2807 = vmatprep.subr.bf16.mxu0 0
    %2808 = vmatpush2.bf16.msra.mxu0 0
    %2809 = vmatprep.subr.bf16.mxu0 0
    %2810 = vmatpush2.bf16.msra.mxu0 0
    %2811 = vmatprep.subr.bf16.mxu0 0
    %2812 = vmatpush2.bf16.msra.mxu0 0
    %2813 = vmatprep.subr.bf16.mxu0 0
    %2814 = vmatpush2.bf16.msra.mxu0 0
    %2815 = vmatprep.subr.bf16.mxu0 0
    %2816 = vmatpush2.bf16.msra.mxu0 0
    %2817 = vmatprep.subr.bf16.mxu0 0
    %2818 = vmatpush2.bf16.msra.mxu0 0
    %2819 = vmatprep.mubr.bf16.mxu0 0
    %2820 = vmatmul.mubr.bf16.gmra.mxu0 %v2785
    %v2821 = vpop.f32.mrf.mxu0
    %v2822 = vadd.f32 %v1819, %v2821
    %v2823 = vpop.f32.mrf.mxu0
    %v2824 = vpop.f32.mrf.mxu0
    %v2825 = vpop.f32.mrf.mxu0
    %2826 = vdwg.mxu0
    %v2827 = vsub.f32 1.0, %v2779
    %2829 = vset.pattern.permute.xlu0 0
    %2830 = vperm.xlu0 %2829, %v2827
    %v2831 = vpop.permute.xlu0 %2830
    %v2833 = vmul.f32 %v2831, %v2822
    %2835 = vset.pattern.permute.xlu0 0
    %2836 = vperm.xlu0 %2835, %v2779
    %v2837 = vpop.permute.xlu0 %2836
    %v2839 = vmul.f32 %v2837, %v559
    %v2840 = vadd.f32 %v2833, %v2839
    %s2841 = scalar_lea.vmem [#allocation17], 56
    %2842 = vst [vmem:[%s2841] sm:$0xff] %v2840
    // Predicated region
    $region110: #{forward.1} parent=1 // pred_check
      _
    $region111: #{forward.1} parent=1 // pred_check_branch
      %2844 = sbr.rel (0) target = $region113
    $region112: #{forward.1} parent=1 // pred_region
      %s2846 = ssub.s32 1024, 1024
      %2847 = vsyncadd [#allocation5], %s2846
      %s2848 = sshll.u32 [#allocation17], 4
      %s2849 = int_to_ptr.vmem [resolvable:$true] %s2848
      %2854 = dma.vmem_to_hbm [thread:$0]  %s2849, 1024, %s19, [#allocation5], 128, 128, 8
    $region113: #{forward.1} parent=1 // pred_fallthru
      _
    // Predicated region
    $region114: #{forward.1} parent=1 // pred_check
      _
    $region115: #{forward.1} parent=1 // pred_check_branch
      %2856 = sbr.rel (0) target = $region117
    $region116: #{forward.1} parent=1 // pred_region
      %2857 = dma.done [#allocation5], 1024
    $region117: #{forward.1} parent=1 // pred_fallthru
      _
    %2858 = vsyncpa [#allocation4], 1
    %2859 = vsyncpa [#allocation7], 1
    %2860 = vsyncpa [#allocation10], 1
    %2861 = vsyncpa [#allocation13], 1
    %2862 = vsyncpa [#allocation16], 1
    %2863 = vsyncpa [#allocation5], 1

</llo_original>
